<compile_context>
chip_gen: v5e
topology: v5e:2x2
jax: 0.10.0
libtpu: 0.0.40
codegen_flags: <defaults>
</compile_context>

<pallas_src>
import numpy as np
import jax
import jax.numpy as jnp
from jax.experimental import pallas as pl
from jax.experimental.pallas import tpu as pltpu


# ----------------------------------------------------------------------------
# Model plan (mirrors CNN.__init__ nn.Sequential ordering)
# ----------------------------------------------------------------------------
def build_plan(in_channels, hidden_size, depth):
    plan = [("conv", in_channels, hidden_size[0])]
    for i in range(len(hidden_size)):
        for _ in range(depth - 1):
            plan.append(("conv", hidden_size[i], hidden_size[i]))
        plan.append(("pool",))
        if len(hidden_size) > i + 1:
            plan.append(("conv", hidden_size[i], hidden_size[i + 1]))
    return plan


def stage_geoms(plan, H0, W0):
    """Per-op geometry index + list of stage geometries (last = final spatial)."""
    geoms = [(H0, W0)]
    op_geom = []
    for op in plan:
        op_geom.append(len(geoms) - 1)
        if op[0] == "pool":
            H, W = geoms[-1]
            geoms.append((H // 2, W // 2))
    return op_geom, geoms


def fold_bn(w_oihw, b, gamma, beta, mean, var, eps=1e-5):
    """Fold eval-mode BatchNorm into the conv (OIHW weights + bias)."""
    scale = gamma / jnp.sqrt(var + eps)
    w_f = w_oihw * scale[:, None, None, None]
    b_f = (b - mean) * scale + beta
    return w_f, b_f


# ----------------------------------------------------------------------------
# Fused forward builder
# ----------------------------------------------------------------------------
def make_cnn_forward(input_shape, hidden_size, classes, depth,
                     conv_folded, lin_w, lin_b):
    C0, H0, W0 = input_shape
    plan = build_plan(C0, hidden_size, depth)
    op_geom, geoms = stage_geoms(plan, H0, W0)
    Hf, Wf = geoms[-1]
    C_last = hidden_size[-1]

    conv_ops = [op for op in plan if op[0] == "conv"]
    pool_idxs = [i for i, op in enumerate(plan) if op[0] == "pool"]
    n_conv, n_pool, n_stage = len(conv_ops), len(pool_idxs), len(geoms) - 1

    def rup8(c):
        return ((c + 7) // 8) * 8

    # ---- pack conv weights (BN already folded) as (Cout, 9*Cin) im2col matrices
    w_mats, b_cols, cin_pads = [], [], []
    for k, (_, cin, cout) in enumerate(conv_ops):
        cin_p = rup8(cin) if k == 0 else cin  # pad raw-input channels to sublane tile
        w_f, b_f = conv_folded[k]
        if cin_p > cin:
            w_f = jnp.pad(w_f, ((0, 0), (0, cin_p - cin), (0, 0), (0, 0)))
        # OIHW -> (O, kh, kw, I) -> (O, 9*I): row index tap*Cin + c, tap = kh*3+kw
        w_mat = jnp.transpose(w_f, (0, 2, 3, 1)).reshape(cout, 9 * cin_p)
        w_mats.append(w_mat)
        b_cols.append(b_f.reshape(cout, 1))
        cin_pads.append(cin_p)

    # ---- per-stage interior masks (1, Hp*Wp): 1.0 on interior, 0.0 on pad border
    masks = []
    for (H, W) in geoms[:-1]:
        Hp, Wp = H + 2, W + 2
        m = np.zeros((1, Hp * Wp), np.float32)
        for h in range(1, H + 1):
            m[0, h * Wp + 1:h * Wp + 1 + W] = 1.0
        masks.append(jnp.asarray(m))

    # ---- pool selection matrices: gather 2x2-window anchors; non-final pools
    #      scatter directly into the next stage's zero-padded flat layout
    sels = []
    for i in pool_idxs:
        H, W = geoms[op_geom[i]]
        Hp, Wp = H + 2, W + 2
        Ho, Wo = H // 2, W // 2
        if i != len(plan) - 1:
            Hop, Wop = Ho + 2, Wo + 2
            S = np.zeros((Hp * Wp, Hop * Wop), np.float32)
            for ho in range(Ho):
                for wo in range(Wo):
                    S[(2 * ho + 1) * Wp + (2 * wo + 1),
                      (ho + 1) * Wop + (wo + 1)] = 1.0
        else:
            S = np.zeros((Hp * Wp, Ho * Wo), np.float32)
            for ho in range(Ho):
                for wo in range(Wo):
                    S[(2 * ho + 1) * Wp + (2 * wo + 1), ho * Wo + wo] = 1.0
        sels.append(jnp.asarray(S))

    # ---- head weights (classes, C, Hf*Wf): torch flatten order folded in here
    wl3 = jnp.asarray(lin_w).T.reshape(classes, C_last, Hf * Wf)
    blc = jnp.asarray(lin_b).reshape(classes, 1)

    # ---- scratch sizing: flat padded image + (Wp+1)-wide margin on both sides
    act_rows = max([cin_pads[0]] + [op[2] for op in conv_ops])
    act_width = max((H + 2) * (W + 2) + 2 * (W + 3) for (H, W) in geoms[:-1])
    patch_rows = max(9 * cp for cp in cin_pads)
    patch_lanes = max((H + 2) * (W + 2)
                      for (H, W) in (geoms[op_geom[i]]
                                     for i, op in enumerate(plan)
                                     if op[0] == "conv"))

    # ------------------------------------------------------------------ kernel
    def kernel(*refs):
        p = 0
        x_ref = refs[p]; p += 1
        wrefs, brefs = [], []
        for _ in range(n_conv):
            wrefs.append(refs[p]); brefs.append(refs[p + 1]); p += 2
        mrefs = list(refs[p:p + n_stage]); p += n_stage
        srefs = list(refs[p:p + n_pool]); p += n_pool
        wl_ref, bl_ref = refs[p], refs[p + 1]; p += 2
        out_ref = refs[p]
        actA, actB, patch = refs[p + 1], refs[p + 2], refs[p + 3]

        # fresh zero state each grid step (margins + zero-padded borders)
        actA[...] = jnp.zeros(actA.shape, jnp.float32)
        actB[...] = jnp.zeros(actB.shape, jnp.float32)

        def conv(src, dst, w_ref, b_ref, m_ref, cin_p, cout, H, W):
            Hp, Wp = H + 2, W + 2
            Lp = Hp * Wp
            base = Wp + 1
            # im2col: 9 shifted copies stacked along the contraction axis
            t = 0
            for kh in range(3):
                for kw in range(3):
                    d = (kh - 1) * Wp + (kw - 1)
                    patch[t * cin_p:(t + 1) * cin_p, 0:Lp] = \
                        src[0:cin_p, base + d:base + d + Lp]
                    t += 1
            acc = jnp.dot(w_ref[...], patch[0:9 * cin_p, 0:Lp],
                          preferred_element_type=jnp.float32)
            acc = acc + b_ref[...]
            acc = jnp.maximum(acc, 0.0)                    # fused ReLU
            acc = jnp.where(m_ref[...] > 0.5, acc, 0.0)    # keep pad border zero
            dst[0:cout, base:base + Lp] = acc

        def pool_window_max(src, C, H, W):
            Hp, Wp = H + 2, W + 2
            Lp = Hp * Wp
            base = Wp + 1
            s00 = src[0:C, base:base + Lp]
            s01 = src[0:C, base + 1:base + 1 + Lp]
            s10 = src[0:C, base + Wp:base + Wp + Lp]
            s11 = src[0:C, base + Wp + 1:base + Wp + 1 + Lp]
            return jnp.maximum(jnp.maximum(s00, s01), jnp.maximum(s10, s11))

        # place the input image into actA's zero-padded stage-0 layout (in-kernel pad)
        H0_, W0_ = geoms[0]
        Wp0 = W0_ + 2
        base0 = Wp0 + 1
        for h in range(H0_):
            dst0 = base0 + (h + 1) * Wp0 + 1
            actA[0:C0, dst0:dst0 + W0_] = x_ref[:, h * W0_:(h + 1) * W0_]

        cur, nxt = actA, actB
        cur_C = cin_pads[0]
        ci = pi = 0
        feat = None
        for oi, op in enumerate(plan):
            gH, gW = geoms[op_geom[oi]]
            if op[0] == "conv":
                cout = op[2]
                conv(cur, nxt, wrefs[ci], brefs[ci], mrefs[op_geom[oi]],
                     cin_pads[ci], cout, gH, gW)
                cur, nxt = nxt, cur
                cur_C = cout
                ci += 1
            else:
                q = pool_window_max(cur, cur_C, gH, gW)
                pooled = jnp.dot(q, srefs[pi][...],
                                 preferred_element_type=jnp.float32)
                if oi == len(plan) - 1:
                    feat = pooled                           # (C_last, Hf*Wf)
                else:
                    Ho, Wo = gH // 2, gW // 2
                    Wop = Wo + 2
                    baseo = Wop + 1
                    Lpo = (Ho + 2) * Wop
                    nxt[0:cur_C, baseo:baseo + Lpo] = pooled
                    cur, nxt = nxt, cur
                pi += 1

        # head: Dropout is identity in eval mode; Linear in torch flatten order
        prod = feat[None, :, :] * wl_ref[...]               # (classes, C, Hf*Wf)
        logits = jnp.sum(jnp.sum(prod, axis=2), axis=1, keepdims=True) + bl_ref[...]
        out_ref[...] = logits                               # (classes, 1)

    # ------------------------------------------------------------- pallas_call
    const_inputs = []
    in_specs = [pl.BlockSpec((None, C0, H0 * W0), lambda n: (n, 0, 0))]

    def add_const(arr):
        const_inputs.append(arr)
        nd = arr.ndim
        in_specs.append(pl.BlockSpec(arr.shape, lambda n, _nd=nd: (0,) * _nd))

    for wm, bc in zip(w_mats, b_cols):
        add_const(wm)
        add_const(bc)
    for m in masks:
        add_const(m)
    for s in sels:
        add_const(s)
    add_const(wl3)
    add_const(blc)

    out_spec = pl.BlockSpec((None, classes, 1), lambda n: (n, 0, 0))
    scratch = [pltpu.VMEM((act_rows, act_width), jnp.float32),
               pltpu.VMEM((act_rows, act_width), jnp.float32),
               pltpu.VMEM((patch_rows, patch_lanes), jnp.float32)]

    @jax.jit
    def forward(x_nchw):
        N = x_nchw.shape[0]
        x_flat = x_nchw.reshape(N, C0, H0 * W0).astype(jnp.float32)
        out = pl.pallas_call(
            kernel,
            out_shape=jax.ShapeDtypeStruct((N, classes, 1), jnp.float32),
            grid=(N,),
            in_specs=in_specs,
            out_specs=out_spec,
            scratch_shapes=scratch,
            compiler_params=pltpu.CompilerParams(
                dimension_semantics=("parallel",)),
        )(x_flat, *const_inputs)
        return out[:, :, 0]

    return forward


# ----------------------------------------------------------------------------
# Parameter init (deterministic) and pure-JAX reference
# ----------------------------------------------------------------------------
def init_convblock(key, cin, cout):
    k = jax.random.split(key, 6)
    w = 0.1 * jax.random.normal(k[0], (cout, cin, 3, 3), jnp.float32)
    b = 0.1 * jax.random.normal(k[1], (cout,), jnp.float32)
    gamma = 1.0 + 0.1 * jax.random.normal(k[2], (cout,), jnp.float32)
    beta = 0.1 * jax.random.normal(k[3], (cout,), jnp.float32)
    mean = 0.1 * jax.random.normal(k[4], (cout,), jnp.float32)
    var = 1.0 + 0.1 * jnp.abs(jax.random.normal(k[5], (cout,), jnp.float32))
    return fold_bn(w, b, gamma, beta, mean, var)


def reference_forward(x_nchw, conv_folded, lin_w, lin_b, plan):
    x = jnp.transpose(x_nchw, (0, 2, 3, 1)).astype(jnp.float32)  # NCHW -> NHWC
    ci = 0
    for op in plan:
        if op[0] == "conv":
            w_oihw, b = conv_folded[ci]
            ci += 1
            w_hwio = jnp.transpose(w_oihw, (2, 3, 1, 0))
            y = jax.lax.conv_general_dilated(
                x, w_hwio, window_strides=(1, 1), padding="SAME",
                dimension_numbers=("NHWC", "HWIO", "NHWC"))
            x = jnp.maximum(y + b, 0.0)
        else:
            x = jax.lax.reduce_window(x, -jnp.inf, jax.lax.max,
                                      (1, 2, 2, 1), (1, 2, 2, 1), "VALID")
    x = jnp.transpose(x, (0, 3, 1, 2)).reshape(x.shape[0], -1)   # torch flatten
    return x @ lin_w + lin_b


# ----------------------------------------------------------------------------
if __name__ == "__main__":
    # CNN(input_shape=(4,16,16), hidden_size=[8,16], classes=10, depth=2, dropout=0.25)
    N = 2
    input_shape = (4, 16, 16)          # (C, H, W)
    hidden_size = [8, 16]
    classes = 10
    depth = 2
    pool_size = 2

    plan = build_plan(input_shape[0], hidden_size, depth)
    n_convs = sum(1 for op in plan if op[0] == "conv")

    root = jax.random.PRNGKey(0)
    keys = jax.random.split(root, n_convs + 3)

    conv_folded = []
    ki = 0
    for op in plan:
        if op[0] == "conv":
            conv_folded.append(init_convblock(keys[ki], op[1], op[2]))
            ki += 1

    final_dim = int((input_shape[1] // (pool_size ** len(hidden_size))) ** 2)
    feat_dim = hidden_size[-1] * final_dim
    lin_w = 0.1 * jax.random.normal(keys[ki], (feat_dim, classes), jnp.float32)
    lin_b = 0.1 * jax.random.normal(keys[ki + 1], (classes,), jnp.float32)

    x = jax.random.normal(keys[ki + 2], (N,) + input_shape, jnp.float32)

    forward = make_cnn_forward(input_shape, hidden_size, classes, depth,
                               conv_folded, lin_w, lin_b)
    out = jax.block_until_ready(forward(x))

    ref = jax.block_until_ready(
        reference_forward(x, conv_folded, lin_w, lin_b, plan))
    assert out.shape == (N, classes)
    assert jnp.allclose(out, ref, atol=5e-3, rtol=5e-3), (
        "max abs diff = %g" % float(jnp.max(jnp.abs(out - ref))))

    print("KERNEL_OK")
</pallas_src>

<mosaic_0001>
module attributes {stable_mosaic.version = 11 : i64} {
  func.func @kernel(%arg0: i32, %arg1: memref<1x4x256xf32, #tpu.memory_space<vmem>>, %arg2: memref<8x72xf32, #tpu.memory_space<vmem>>, %arg3: memref<8x1xf32, #tpu.memory_space<vmem>>, %arg4: memref<8x72xf32, #tpu.memory_space<vmem>>, %arg5: memref<8x1xf32, #tpu.memory_space<vmem>>, %arg6: memref<16x72xf32, #tpu.memory_space<vmem>>, %arg7: memref<16x1xf32, #tpu.memory_space<vmem>>, %arg8: memref<16x144xf32, #tpu.memory_space<vmem>>, %arg9: memref<16x1xf32, #tpu.memory_space<vmem>>, %arg10: memref<1x324xf32, #tpu.memory_space<vmem>>, %arg11: memref<1x100xf32, #tpu.memory_space<vmem>>, %arg12: memref<324x100xf32, #tpu.memory_space<vmem>>, %arg13: memref<100x16xf32, #tpu.memory_space<vmem>>, %arg14: memref<10x16x16xf32, #tpu.memory_space<vmem>>, %arg15: memref<10x1xf32, #tpu.memory_space<vmem>>, %arg16: memref<1x10x1xf32, #tpu.memory_space<vmem>>, %arg17: memref<16x362xf32, #tpu.memory_space<vmem>>, %arg18: memref<16x362xf32, #tpu.memory_space<vmem>>, %arg19: memref<144x324xf32, #tpu.memory_space<vmem>>) attributes {dimension_semantics = [#tpu.dimension_semantics<parallel>], iteration_bounds = array<i64: 2>, scalar_prefetch = 0 : i64, scratch_operands = 3 : i64, tpu.core_type = #tpu.core_type<tc>, window_params = [{transform_indices = @transform_0, window_bounds = array<i64: 1, 4, 256>}, {pipeline_mode = #tpu.pipeline_mode<synchronous>, transform_indices = @transform_1, window_bounds = array<i64: 8, 72>}, {pipeline_mode = #tpu.pipeline_mode<synchronous>, transform_indices = @transform_2, window_bounds = array<i64: 8, 1>}, {pipeline_mode = #tpu.pipeline_mode<synchronous>, transform_indices = @transform_3, window_bounds = array<i64: 8, 72>}, {pipeline_mode = #tpu.pipeline_mode<synchronous>, transform_indices = @transform_4, window_bounds = array<i64: 8, 1>}, {pipeline_mode = #tpu.pipeline_mode<synchronous>, transform_indices = @transform_5, window_bounds = array<i64: 16, 72>}, {pipeline_mode = #tpu.pipeline_mode<synchronous>, transform_indices = @transform_6, window_bounds = array<i64: 16, 1>}, {pipeline_mode = #tpu.pipeline_mode<synchronous>, transform_indices = @transform_7, window_bounds = array<i64: 16, 144>}, {pipeline_mode = #tpu.pipeline_mode<synchronous>, transform_indices = @transform_8, window_bounds = array<i64: 16, 1>}, {pipeline_mode = #tpu.pipeline_mode<synchronous>, transform_indices = @transform_9, window_bounds = array<i64: 1, 324>}, {pipeline_mode = #tpu.pipeline_mode<synchronous>, transform_indices = @transform_10, window_bounds = array<i64: 1, 100>}, {pipeline_mode = #tpu.pipeline_mode<synchronous>, transform_indices = @transform_11, window_bounds = array<i64: 324, 100>}, {pipeline_mode = #tpu.pipeline_mode<synchronous>, transform_indices = @transform_12, window_bounds = array<i64: 100, 16>}, {pipeline_mode = #tpu.pipeline_mode<synchronous>, transform_indices = @transform_13, window_bounds = array<i64: 10, 16, 16>}, {pipeline_mode = #tpu.pipeline_mode<synchronous>, transform_indices = @transform_14, window_bounds = array<i64: 10, 1>}, {transform_indices = @transform_15, window_bounds = array<i64: 1, 10, 1>}]} {
    %cst = arith.constant 0.000000e+00 : f32
    %0 = vector.broadcast %cst : f32 to vector<16x362xf32>
    %c0 = arith.constant 0 : index
    %c0_0 = arith.constant 0 : index
    %1 = vector.load %arg17[%c0, %c0_0] : memref<16x362xf32, #tpu.memory_space<vmem>>, vector<16x362xf32>
    tpu.vector_store %arg17[%c0, %c0_0], %0 {strides = array<i32>} : memref<16x362xf32, #tpu.memory_space<vmem>>, vector<16x362xf32>,
    %cst_1 = arith.constant 0.000000e+00 : f32
    %2 = vector.broadcast %cst_1 : f32 to vector<16x362xf32>
    %c0_2 = arith.constant 0 : index
    %c0_3 = arith.constant 0 : index
    %3 = vector.load %arg18[%c0_2, %c0_3] : memref<16x362xf32, #tpu.memory_space<vmem>>, vector<16x362xf32>
    tpu.vector_store %arg18[%c0_2, %c0_3], %2 {strides = array<i32>} : memref<16x362xf32, #tpu.memory_space<vmem>>, vector<16x362xf32>,
    %c0_4 = arith.constant 0 : index
    %c0_5 = arith.constant 0 : index
    %c0_6 = arith.constant 0 : index
    %4 = vector.load %arg1[%c0_4, %c0_5, %c0_6] : memref<1x4x256xf32, #tpu.memory_space<vmem>>, vector<1x4x16xf32>
    %5 = vector.shape_cast %4 : vector<1x4x16xf32> to vector<4x16xf32>
    %c0_7 = arith.constant 0 : index
    %c38 = arith.constant 38 : index
    %6 = vector.load %arg17[%c0_7, %c38] : memref<16x362xf32, #tpu.memory_space<vmem>>, vector<4x16xf32>
    tpu.vector_store %arg17[%c0_7, %c38], %5 {strides = array<i32>} : memref<16x362xf32, #tpu.memory_space<vmem>>, vector<4x16xf32>,
    %c0_8 = arith.constant 0 : index
    %c0_9 = arith.constant 0 : index
    %c16 = arith.constant 16 : index
    %7 = vector.load %arg1[%c0_8, %c0_9, %c16] : memref<1x4x256xf32, #tpu.memory_space<vmem>>, vector<1x4x16xf32>
    %8 = vector.shape_cast %7 : vector<1x4x16xf32> to vector<4x16xf32>
    %c0_10 = arith.constant 0 : index
    %c56 = arith.constant 56 : index
    %9 = vector.load %arg17[%c0_10, %c56] : memref<16x362xf32, #tpu.memory_space<vmem>>, vector<4x16xf32>
    tpu.vector_store %arg17[%c0_10, %c56], %8 {strides = array<i32>} : memref<16x362xf32, #tpu.memory_space<vmem>>, vector<4x16xf32>,
    %c0_11 = arith.constant 0 : index
    %c0_12 = arith.constant 0 : index
    %c32 = arith.constant 32 : index
    %10 = vector.load %arg1[%c0_11, %c0_12, %c32] : memref<1x4x256xf32, #tpu.memory_space<vmem>>, vector<1x4x16xf32>
    %11 = vector.shape_cast %10 : vector<1x4x16xf32> to vector<4x16xf32>
    %c0_13 = arith.constant 0 : index
    %c74 = arith.constant 74 : index
    %12 = vector.load %arg17[%c0_13, %c74] : memref<16x362xf32, #tpu.memory_space<vmem>>, vector<4x16xf32>
    tpu.vector_store %arg17[%c0_13, %c74], %11 {strides = array<i32>} : memref<16x362xf32, #tpu.memory_space<vmem>>, vector<4x16xf32>,
    %c0_14 = arith.constant 0 : index
    %c0_15 = arith.constant 0 : index
    %c48 = arith.constant 48 : index
    %13 = vector.load %arg1[%c0_14, %c0_15, %c48] : memref<1x4x256xf32, #tpu.memory_space<vmem>>, vector<1x4x16xf32>
    %14 = vector.shape_cast %13 : vector<1x4x16xf32> to vector<4x16xf32>
    %c0_16 = arith.constant 0 : index
    %c92 = arith.constant 92 : index
    %15 = vector.load %arg17[%c0_16, %c92] : memref<16x362xf32, #tpu.memory_space<vmem>>, vector<4x16xf32>
    tpu.vector_store %arg17[%c0_16, %c92], %14 {strides = array<i32>} : memref<16x362xf32, #tpu.memory_space<vmem>>, vector<4x16xf32>,
    %c0_17 = arith.constant 0 : index
    %c0_18 = arith.constant 0 : index
    %c64 = arith.constant 64 : index
    %16 = vector.load %arg1[%c0_17, %c0_18, %c64] : memref<1x4x256xf32, #tpu.memory_space<vmem>>, vector<1x4x16xf32>
    %17 = vector.shape_cast %16 : vector<1x4x16xf32> to vector<4x16xf32>
    %c0_19 = arith.constant 0 : index
    %c110 = arith.constant 110 : index
    %18 = vector.load %arg17[%c0_19, %c110] : memref<16x362xf32, #tpu.memory_space<vmem>>, vector<4x16xf32>
    tpu.vector_store %arg17[%c0_19, %c110], %17 {strides = array<i32>} : memref<16x362xf32, #tpu.memory_space<vmem>>, vector<4x16xf32>,
    %c0_20 = arith.constant 0 : index
    %c0_21 = arith.constant 0 : index
    %c80 = arith.constant 80 : index
    %19 = vector.load %arg1[%c0_20, %c0_21, %c80] : memref<1x4x256xf32, #tpu.memory_space<vmem>>, vector<1x4x16xf32>
    %20 = vector.shape_cast %19 : vector<1x4x16xf32> to vector<4x16xf32>
    %c0_22 = arith.constant 0 : index
    %c128 = arith.constant 128 : index
    %21 = vector.load %arg17[%c0_22, %c128] : memref<16x362xf32, #tpu.memory_space<vmem>>, vector<4x16xf32>
    tpu.vector_store %arg17[%c0_22, %c128], %20 {strides = array<i32>} : memref<16x362xf32, #tpu.memory_space<vmem>>, vector<4x16xf32>,
    %c0_23 = arith.constant 0 : index
    %c0_24 = arith.constant 0 : index
    %c96 = arith.constant 96 : index
    %22 = vector.load %arg1[%c0_23, %c0_24, %c96] : memref<1x4x256xf32, #tpu.memory_space<vmem>>, vector<1x4x16xf32>
    %23 = vector.shape_cast %22 : vector<1x4x16xf32> to vector<4x16xf32>
    %c0_25 = arith.constant 0 : index
    %c146 = arith.constant 146 : index
    %24 = vector.load %arg17[%c0_25, %c146] : memref<16x362xf32, #tpu.memory_space<vmem>>, vector<4x16xf32>
    tpu.vector_store %arg17[%c0_25, %c146], %23 {strides = array<i32>} : memref<16x362xf32, #tpu.memory_space<vmem>>, vector<4x16xf32>,
    %c0_26 = arith.constant 0 : index
    %c0_27 = arith.constant 0 : index
    %c112 = arith.constant 112 : index
    %25 = vector.load %arg1[%c0_26, %c0_27, %c112] : memref<1x4x256xf32, #tpu.memory_space<vmem>>, vector<1x4x16xf32>
    %26 = vector.shape_cast %25 : vector<1x4x16xf32> to vector<4x16xf32>
    %c0_28 = arith.constant 0 : index
    %c164 = arith.constant 164 : index
    %27 = vector.load %arg17[%c0_28, %c164] : memref<16x362xf32, #tpu.memory_space<vmem>>, vector<4x16xf32>
    tpu.vector_store %arg17[%c0_28, %c164], %26 {strides = array<i32>} : memref<16x362xf32, #tpu.memory_space<vmem>>, vector<4x16xf32>,
    %c0_29 = arith.constant 0 : index
    %c0_30 = arith.constant 0 : index
    %c128_31 = arith.constant 128 : index
    %28 = vector.load %arg1[%c0_29, %c0_30, %c128_31] : memref<1x4x256xf32, #tpu.memory_space<vmem>>, vector<1x4x16xf32>
    %29 = vector.shape_cast %28 : vector<1x4x16xf32> to vector<4x16xf32>
    %c0_32 = arith.constant 0 : index
    %c182 = arith.constant 182 : index
    %30 = vector.load %arg17[%c0_32, %c182] : memref<16x362xf32, #tpu.memory_space<vmem>>, vector<4x16xf32>
    tpu.vector_store %arg17[%c0_32, %c182], %29 {strides = array<i32>} : memref<16x362xf32, #tpu.memory_space<vmem>>, vector<4x16xf32>,
    %c0_33 = arith.constant 0 : index
    %c0_34 = arith.constant 0 : index
    %c144 = arith.constant 144 : index
    %31 = vector.load %arg1[%c0_33, %c0_34, %c144] : memref<1x4x256xf32, #tpu.memory_space<vmem>>, vector<1x4x16xf32>
    %32 = vector.shape_cast %31 : vector<1x4x16xf32> to vector<4x16xf32>
    %c0_35 = arith.constant 0 : index
    %c200 = arith.constant 200 : index
    %33 = vector.load %arg17[%c0_35, %c200] : memref<16x362xf32, #tpu.memory_space<vmem>>, vector<4x16xf32>
    tpu.vector_store %arg17[%c0_35, %c200], %32 {strides = array<i32>} : memref<16x362xf32, #tpu.memory_space<vmem>>, vector<4x16xf32>,
    %c0_36 = arith.constant 0 : index
    %c0_37 = arith.constant 0 : index
    %c160 = arith.constant 160 : index
    %34 = vector.load %arg1[%c0_36, %c0_37, %c160] : memref<1x4x256xf32, #tpu.memory_space<vmem>>, vector<1x4x16xf32>
    %35 = vector.shape_cast %34 : vector<1x4x16xf32> to vector<4x16xf32>
    %c0_38 = arith.constant 0 : index
    %c218 = arith.constant 218 : index
    %36 = vector.load %arg17[%c0_38, %c218] : memref<16x362xf32, #tpu.memory_space<vmem>>, vector<4x16xf32>
    tpu.vector_store %arg17[%c0_38, %c218], %35 {strides = array<i32>} : memref<16x362xf32, #tpu.memory_space<vmem>>, vector<4x16xf32>,
    %c0_39 = arith.constant 0 : index
    %c0_40 = arith.constant 0 : index
    %c176 = arith.constant 176 : index
    %37 = vector.load %arg1[%c0_39, %c0_40, %c176] : memref<1x4x256xf32, #tpu.memory_space<vmem>>, vector<1x4x16xf32>
    %38 = vector.shape_cast %37 : vector<1x4x16xf32> to vector<4x16xf32>
    %c0_41 = arith.constant 0 : index
    %c236 = arith.constant 236 : index
    %39 = vector.load %arg17[%c0_41, %c236] : memref<16x362xf32, #tpu.memory_space<vmem>>, vector<4x16xf32>
    tpu.vector_store %arg17[%c0_41, %c236], %38 {strides = array<i32>} : memref<16x362xf32, #tpu.memory_space<vmem>>, vector<4x16xf32>,
    %c0_42 = arith.constant 0 : index
    %c0_43 = arith.constant 0 : index
    %c192 = arith.constant 192 : index
    %40 = vector.load %arg1[%c0_42, %c0_43, %c192] : memref<1x4x256xf32, #tpu.memory_space<vmem>>, vector<1x4x16xf32>
    %41 = vector.shape_cast %40 : vector<1x4x16xf32> to vector<4x16xf32>
    %c0_44 = arith.constant 0 : index
    %c254 = arith.constant 254 : index
    %42 = vector.load %arg17[%c0_44, %c254] : memref<16x362xf32, #tpu.memory_space<vmem>>, vector<4x16xf32>
    tpu.vector_store %arg17[%c0_44, %c254], %41 {strides = array<i32>} : memref<16x362xf32, #tpu.memory_space<vmem>>, vector<4x16xf32>,
    %c0_45 = arith.constant 0 : index
    %c0_46 = arith.constant 0 : index
    %c208 = arith.constant 208 : index
    %43 = vector.load %arg1[%c0_45, %c0_46, %c208] : memref<1x4x256xf32, #tpu.memory_space<vmem>>, vector<1x4x16xf32>
    %44 = vector.shape_cast %43 : vector<1x4x16xf32> to vector<4x16xf32>
    %c0_47 = arith.constant 0 : index
    %c272 = arith.constant 272 : index
    %45 = vector.load %arg17[%c0_47, %c272] : memref<16x362xf32, #tpu.memory_space<vmem>>, vector<4x16xf32>
    tpu.vector_store %arg17[%c0_47, %c272], %44 {strides = array<i32>} : memref<16x362xf32, #tpu.memory_space<vmem>>, vector<4x16xf32>,
    %c0_48 = arith.constant 0 : index
    %c0_49 = arith.constant 0 : index
    %c224 = arith.constant 224 : index
    %46 = vector.load %arg1[%c0_48, %c0_49, %c224] : memref<1x4x256xf32, #tpu.memory_space<vmem>>, vector<1x4x16xf32>
    %47 = vector.shape_cast %46 : vector<1x4x16xf32> to vector<4x16xf32>
    %c0_50 = arith.constant 0 : index
    %c290 = arith.constant 290 : index
    %48 = vector.load %arg17[%c0_50, %c290] : memref<16x362xf32, #tpu.memory_space<vmem>>, vector<4x16xf32>
    tpu.vector_store %arg17[%c0_50, %c290], %47 {strides = array<i32>} : memref<16x362xf32, #tpu.memory_space<vmem>>, vector<4x16xf32>,
    %c0_51 = arith.constant 0 : index
    %c0_52 = arith.constant 0 : index
    %c240 = arith.constant 240 : index
    %49 = vector.load %arg1[%c0_51, %c0_52, %c240] : memref<1x4x256xf32, #tpu.memory_space<vmem>>, vector<1x4x16xf32>
    %50 = vector.shape_cast %49 : vector<1x4x16xf32> to vector<4x16xf32>
    %c0_53 = arith.constant 0 : index
    %c308 = arith.constant 308 : index
    %51 = vector.load %arg17[%c0_53, %c308] : memref<16x362xf32, #tpu.memory_space<vmem>>, vector<4x16xf32>
    tpu.vector_store %arg17[%c0_53, %c308], %50 {strides = array<i32>} : memref<16x362xf32, #tpu.memory_space<vmem>>, vector<4x16xf32>,
    %c0_54 = arith.constant 0 : index
    %c0_55 = arith.constant 0 : index
    %52 = vector.load %arg17[%c0_54, %c0_55] : memref<16x362xf32, #tpu.memory_space<vmem>>, vector<8x324xf32>
    %c0_56 = arith.constant 0 : index
    %c0_57 = arith.constant 0 : index
    %53 = vector.load %arg19[%c0_56, %c0_57] : memref<144x324xf32, #tpu.memory_space<vmem>>, vector<8x324xf32>
    tpu.vector_store %arg19[%c0_56, %c0_57], %52 {strides = array<i32>} : memref<144x324xf32, #tpu.memory_space<vmem>>, vector<8x324xf32>,
    %c0_58 = arith.constant 0 : index
    %c1 = arith.constant 1 : index
    %54 = vector.load %arg17[%c0_58, %c1] : memref<16x362xf32, #tpu.memory_space<vmem>>, vector<8x324xf32>
    %c8 = arith.constant 8 : index
    %c0_59 = arith.constant 0 : index
    %55 = vector.load %arg19[%c8, %c0_59] : memref<144x324xf32, #tpu.memory_space<vmem>>, vector<8x324xf32>
    tpu.vector_store %arg19[%c8, %c0_59], %54 {strides = array<i32>} : memref<144x324xf32, #tpu.memory_space<vmem>>, vector<8x324xf32>,
    %c0_60 = arith.constant 0 : index
    %c2 = arith.constant 2 : index
    %56 = vector.load %arg17[%c0_60, %c2] : memref<16x362xf32, #tpu.memory_space<vmem>>, vector<8x324xf32>
    %c16_61 = arith.constant 16 : index
    %c0_62 = arith.constant 0 : index
    %57 = vector.load %arg19[%c16_61, %c0_62] : memref<144x324xf32, #tpu.memory_space<vmem>>, vector<8x324xf32>
    tpu.vector_store %arg19[%c16_61, %c0_62], %56 {strides = array<i32>} : memref<144x324xf32, #tpu.memory_space<vmem>>, vector<8x324xf32>,
    %c0_63 = arith.constant 0 : index
    %c18 = arith.constant 18 : index
    %58 = vector.load %arg17[%c0_63, %c18] : memref<16x362xf32, #tpu.memory_space<vmem>>, vector<8x324xf32>
    %c24 = arith.constant 24 : index
    %c0_64 = arith.constant 0 : index
    %59 = vector.load %arg19[%c24, %c0_64] : memref<144x324xf32, #tpu.memory_space<vmem>>, vector<8x324xf32>
    tpu.vector_store %arg19[%c24, %c0_64], %58 {strides = array<i32>} : memref<144x324xf32, #tpu.memory_space<vmem>>, vector<8x324xf32>,
    %c0_65 = arith.constant 0 : index
    %c19 = arith.constant 19 : index
    %60 = vector.load %arg17[%c0_65, %c19] : memref<16x362xf32, #tpu.memory_space<vmem>>, vector<8x324xf32>
    %c32_66 = arith.constant 32 : index
    %c0_67 = arith.constant 0 : index
    %61 = vector.load %arg19[%c32_66, %c0_67] : memref<144x324xf32, #tpu.memory_space<vmem>>, vector<8x324xf32>
    tpu.vector_store %arg19[%c32_66, %c0_67], %60 {strides = array<i32>} : memref<144x324xf32, #tpu.memory_space<vmem>>, vector<8x324xf32>,
    %c0_68 = arith.constant 0 : index
    %c20 = arith.constant 20 : index
    %62 = vector.load %arg17[%c0_68, %c20] : memref<16x362xf32, #tpu.memory_space<vmem>>, vector<8x324xf32>
    %c40 = arith.constant 40 : index
    %c0_69 = arith.constant 0 : index
    %63 = vector.load %arg19[%c40, %c0_69] : memref<144x324xf32, #tpu.memory_space<vmem>>, vector<8x324xf32>
    tpu.vector_store %arg19[%c40, %c0_69], %62 {strides = array<i32>} : memref<144x324xf32, #tpu.memory_space<vmem>>, vector<8x324xf32>,
    %c0_70 = arith.constant 0 : index
    %c36 = arith.constant 36 : index
    %64 = vector.load %arg17[%c0_70, %c36] : memref<16x362xf32, #tpu.memory_space<vmem>>, vector<8x324xf32>
    %c48_71 = arith.constant 48 : index
    %c0_72 = arith.constant 0 : index
    %65 = vector.load %arg19[%c48_71, %c0_72] : memref<144x324xf32, #tpu.memory_space<vmem>>, vector<8x324xf32>
    tpu.vector_store %arg19[%c48_71, %c0_72], %64 {strides = array<i32>} : memref<144x324xf32, #tpu.memory_space<vmem>>, vector<8x324xf32>,
    %c0_73 = arith.constant 0 : index
    %c37 = arith.constant 37 : index
    %66 = vector.load %arg17[%c0_73, %c37] : memref<16x362xf32, #tpu.memory_space<vmem>>, vector<8x324xf32>
    %c56_74 = arith.constant 56 : index
    %c0_75 = arith.constant 0 : index
    %67 = vector.load %arg19[%c56_74, %c0_75] : memref<144x324xf32, #tpu.memory_space<vmem>>, vector<8x324xf32>
    tpu.vector_store %arg19[%c56_74, %c0_75], %66 {strides = array<i32>} : memref<144x324xf32, #tpu.memory_space<vmem>>, vector<8x324xf32>,
    %c0_76 = arith.constant 0 : index
    %c38_77 = arith.constant 38 : index
    %68 = vector.load %arg17[%c0_76, %c38_77] : memref<16x362xf32, #tpu.memory_space<vmem>>, vector<8x324xf32>
    %c64_78 = arith.constant 64 : index
    %c0_79 = arith.constant 0 : index
    %69 = vector.load %arg19[%c64_78, %c0_79] : memref<144x324xf32, #tpu.memory_space<vmem>>, vector<8x324xf32>
    tpu.vector_store %arg19[%c64_78, %c0_79], %68 {strides = array<i32>} : memref<144x324xf32, #tpu.memory_space<vmem>>, vector<8x324xf32>,
    %c0_80 = arith.constant 0 : index
    %c0_81 = arith.constant 0 : index
    %70 = vector.load %arg2[%c0_80, %c0_81] : memref<8x72xf32, #tpu.memory_space<vmem>>, vector<8x72xf32>
    %c0_82 = arith.constant 0 : index
    %c0_83 = arith.constant 0 : index
    %71 = vector.load %arg19[%c0_82, %c0_83] : memref<144x324xf32, #tpu.memory_space<vmem>>, vector<72x324xf32>
    %cst_84 = arith.constant dense<0.000000e+00> : vector<8x324xf32>
    %72 = tpu.matmul %70, %71, %cst_84 {dimension_numbers = #tpu.dot_dimension_numbers<[1], [0], [0], [1], [0, 0, 1, 1], [], []>} : vector<8x72xf32>, vector<72x324xf32>, vector<8x324xf32> -> vector<8x324xf32>
    %c0_85 = arith.constant 0 : index
    %c0_86 = arith.constant 0 : index
    %73 = vector.load %arg3[%c0_85, %c0_86] : memref<8x1xf32, #tpu.memory_space<vmem>>, vector<8x1xf32>
    %74 = vector.broadcast %73 : vector<8x1xf32> to vector<8x324xf32>
    %75 = arith.addf %72, %74 : vector<8x324xf32>
    %cst_87 = arith.constant 0.000000e+00 : f32
    %76 = vector.broadcast %cst_87 : f32 to vector<8x324xf32>
    %77 = arith.maximumf %75, %76 : vector<8x324xf32>
    %c0_88 = arith.constant 0 : index
    %c0_89 = arith.constant 0 : index
    %78 = vector.load %arg10[%c0_88, %c0_89] : memref<1x324xf32, #tpu.memory_space<vmem>>, vector<1x324xf32>
    %cst_90 = arith.constant 5.000000e-01 : f32
    %79 = vector.broadcast %cst_90 : f32 to vector<1x324xf32>
    %80 = arith.cmpf ogt, %78, %79 : vector<1x324xf32>
    %cst_91 = arith.constant 0.000000e+00 : f32
    %81 = vector.shape_cast %80 : vector<1x324xi1> to vector<1x324xi1>
    %82 = vector.broadcast %81 : vector<1x324xi1> to vector<8x324xi1>
    %83 = vector.broadcast %cst_91 : f32 to vector<8x324xf32>
    %84 = arith.select %82, %77, %83 : vector<8x324xi1>, vector<8x324xf32>
    %c0_92 = arith.constant 0 : index
    %c19_93 = arith.constant 19 : index
    %85 = vector.load %arg18[%c0_92, %c19_93] : memref<16x362xf32, #tpu.memory_space<vmem>>, vector<8x324xf32>
    tpu.vector_store %arg18[%c0_92, %c19_93], %84 {strides = array<i32>} : memref<16x362xf32, #tpu.memory_space<vmem>>, vector<8x324xf32>,
    %c0_94 = arith.constant 0 : index
    %c0_95 = arith.constant 0 : index
    %86 = vector.load %arg18[%c0_94, %c0_95] : memref<16x362xf32, #tpu.memory_space<vmem>>, vector<8x324xf32>
    %c0_96 = arith.constant 0 : index
    %c0_97 = arith.constant 0 : index
    %87 = vector.load %arg19[%c0_96, %c0_97] : memref<144x324xf32, #tpu.memory_space<vmem>>, vector<8x324xf32>
    tpu.vector_store %arg19[%c0_96, %c0_97], %86 {strides = array<i32>} : memref<144x324xf32, #tpu.memory_space<vmem>>, vector<8x324xf32>,
    %c0_98 = arith.constant 0 : index
    %c1_99 = arith.constant 1 : index
    %88 = vector.load %arg18[%c0_98, %c1_99] : memref<16x362xf32, #tpu.memory_space<vmem>>, vector<8x324xf32>
    %c8_100 = arith.constant 8 : index
    %c0_101 = arith.constant 0 : index
    %89 = vector.load %arg19[%c8_100, %c0_101] : memref<144x324xf32, #tpu.memory_space<vmem>>, vector<8x324xf32>
    tpu.vector_store %arg19[%c8_100, %c0_101], %88 {strides = array<i32>} : memref<144x324xf32, #tpu.memory_space<vmem>>, vector<8x324xf32>,
    %c0_102 = arith.constant 0 : index
    %c2_103 = arith.constant 2 : index
    %90 = vector.load %arg18[%c0_102, %c2_103] : memref<16x362xf32, #tpu.memory_space<vmem>>, vector<8x324xf32>
    %c16_104 = arith.constant 16 : index
    %c0_105 = arith.constant 0 : index
    %91 = vector.load %arg19[%c16_104, %c0_105] : memref<144x324xf32, #tpu.memory_space<vmem>>, vector<8x324xf32>
    tpu.vector_store %arg19[%c16_104, %c0_105], %90 {strides = array<i32>} : memref<144x324xf32, #tpu.memory_space<vmem>>, vector<8x324xf32>,
    %c0_106 = arith.constant 0 : index
    %c18_107 = arith.constant 18 : index
    %92 = vector.load %arg18[%c0_106, %c18_107] : memref<16x362xf32, #tpu.memory_space<vmem>>, vector<8x324xf32>
    %c24_108 = arith.constant 24 : index
    %c0_109 = arith.constant 0 : index
    %93 = vector.load %arg19[%c24_108, %c0_109] : memref<144x324xf32, #tpu.memory_space<vmem>>, vector<8x324xf32>
    tpu.vector_store %arg19[%c24_108, %c0_109], %92 {strides = array<i32>} : memref<144x324xf32, #tpu.memory_space<vmem>>, vector<8x324xf32>,
    %c0_110 = arith.constant 0 : index
    %c19_111 = arith.constant 19 : index
    %94 = vector.load %arg18[%c0_110, %c19_111] : memref<16x362xf32, #tpu.memory_space<vmem>>, vector<8x324xf32>
    %c32_112 = arith.constant 32 : index
    %c0_113 = arith.constant 0 : index
    %95 = vector.load %arg19[%c32_112, %c0_113] : memref<144x324xf32, #tpu.memory_space<vmem>>, vector<8x324xf32>
    tpu.vector_store %arg19[%c32_112, %c0_113], %94 {strides = array<i32>} : memref<144x324xf32, #tpu.memory_space<vmem>>, vector<8x324xf32>,
    %c0_114 = arith.constant 0 : index
    %c20_115 = arith.constant 20 : index
    %96 = vector.load %arg18[%c0_114, %c20_115] : memref<16x362xf32, #tpu.memory_space<vmem>>, vector<8x324xf32>
    %c40_116 = arith.constant 40 : index
    %c0_117 = arith.constant 0 : index
    %97 = vector.load %arg19[%c40_116, %c0_117] : memref<144x324xf32, #tpu.memory_space<vmem>>, vector<8x324xf32>
    tpu.vector_store %arg19[%c40_116, %c0_117], %96 {strides = array<i32>} : memref<144x324xf32, #tpu.memory_space<vmem>>, vector<8x324xf32>,
    %c0_118 = arith.constant 0 : index
    %c36_119 = arith.constant 36 : index
    %98 = vector.load %arg18[%c0_118, %c36_119] : memref<16x362xf32, #tpu.memory_space<vmem>>, vector<8x324xf32>
    %c48_120 = arith.constant 48 : index
    %c0_121 = arith.constant 0 : index
    %99 = vector.load %arg19[%c48_120, %c0_121] : memref<144x324xf32, #tpu.memory_space<vmem>>, vector<8x324xf32>
    tpu.vector_store %arg19[%c48_120, %c0_121], %98 {strides = array<i32>} : memref<144x324xf32, #tpu.memory_space<vmem>>, vector<8x324xf32>,
    %c0_122 = arith.constant 0 : index
    %c37_123 = arith.constant 37 : index
    %100 = vector.load %arg18[%c0_122, %c37_123] : memref<16x362xf32, #tpu.memory_space<vmem>>, vector<8x324xf32>
    %c56_124 = arith.constant 56 : index
    %c0_125 = arith.constant 0 : index
    %101 = vector.load %arg19[%c56_124, %c0_125] : memref<144x324xf32, #tpu.memory_space<vmem>>, vector<8x324xf32>
    tpu.vector_store %arg19[%c56_124, %c0_125], %100 {strides = array<i32>} : memref<144x324xf32, #tpu.memory_space<vmem>>, vector<8x324xf32>,
    %c0_126 = arith.constant 0 : index
    %c38_127 = arith.constant 38 : index
    %102 = vector.load %arg18[%c0_126, %c38_127] : memref<16x362xf32, #tpu.memory_space<vmem>>, vector<8x324xf32>
    %c64_128 = arith.constant 64 : index
    %c0_129 = arith.constant 0 : index
    %103 = vector.load %arg19[%c64_128, %c0_129] : memref<144x324xf32, #tpu.memory_space<vmem>>, vector<8x324xf32>
    tpu.vector_store %arg19[%c64_128, %c0_129], %102 {strides = array<i32>} : memref<144x324xf32, #tpu.memory_space<vmem>>, vector<8x324xf32>,
    %c0_130 = arith.constant 0 : index
    %c0_131 = arith.constant 0 : index
    %104 = vector.load %arg4[%c0_130, %c0_131] : memref<8x72xf32, #tpu.memory_space<vmem>>, vector<8x72xf32>
    %c0_132 = arith.constant 0 : index
    %c0_133 = arith.constant 0 : index
    %105 = vector.load %arg19[%c0_132, %c0_133] : memref<144x324xf32, #tpu.memory_space<vmem>>, vector<72x324xf32>
    %cst_134 = arith.constant dense<0.000000e+00> : vector<8x324xf32>
    %106 = tpu.matmul %104, %105, %cst_134 {dimension_numbers = #tpu.dot_dimension_numbers<[1], [0], [0], [1], [0, 0, 1, 1], [], []>} : vector<8x72xf32>, vector<72x324xf32>, vector<8x324xf32> -> vector<8x324xf32>
    %c0_135 = arith.constant 0 : index
    %c0_136 = arith.constant 0 : index
    %107 = vector.load %arg5[%c0_135, %c0_136] : memref<8x1xf32, #tpu.memory_space<vmem>>, vector<8x1xf32>
    %108 = vector.broadcast %107 : vector<8x1xf32> to vector<8x324xf32>
    %109 = arith.addf %106, %108 : vector<8x324xf32>
    %cst_137 = arith.constant 0.000000e+00 : f32
    %110 = vector.broadcast %cst_137 : f32 to vector<8x324xf32>
    %111 = arith.maximumf %109, %110 : vector<8x324xf32>
    %c0_138 = arith.constant 0 : index
    %c0_139 = arith.constant 0 : index
    %112 = vector.load %arg10[%c0_138, %c0_139] : memref<1x324xf32, #tpu.memory_space<vmem>>, vector<1x324xf32>
    %cst_140 = arith.constant 5.000000e-01 : f32
    %113 = vector.broadcast %cst_140 : f32 to vector<1x324xf32>
    %114 = arith.cmpf ogt, %112, %113 : vector<1x324xf32>
    %cst_141 = arith.constant 0.000000e+00 : f32
    %115 = vector.shape_cast %114 : vector<1x324xi1> to vector<1x324xi1>
    %116 = vector.broadcast %115 : vector<1x324xi1> to vector<8x324xi1>
    %117 = vector.broadcast %cst_141 : f32 to vector<8x324xf32>
    %118 = arith.select %116, %111, %117 : vector<8x324xi1>, vector<8x324xf32>
    %c0_142 = arith.constant 0 : index
    %c19_143 = arith.constant 19 : index
    %119 = vector.load %arg17[%c0_142, %c19_143] : memref<16x362xf32, #tpu.memory_space<vmem>>, vector<8x324xf32>
    tpu.vector_store %arg17[%c0_142, %c19_143], %118 {strides = array<i32>} : memref<16x362xf32, #tpu.memory_space<vmem>>, vector<8x324xf32>,
    %c0_144 = arith.constant 0 : index
    %c19_145 = arith.constant 19 : index
    %120 = vector.load %arg17[%c0_144, %c19_145] : memref<16x362xf32, #tpu.memory_space<vmem>>, vector<8x324xf32>
    %c0_146 = arith.constant 0 : index
    %c20_147 = arith.constant 20 : index
    %121 = vector.load %arg17[%c0_146, %c20_147] : memref<16x362xf32, #tpu.memory_space<vmem>>, vector<8x324xf32>
    %c0_148 = arith.constant 0 : index
    %c37_149 = arith.constant 37 : index
    %122 = vector.load %arg17[%c0_148, %c37_149] : memref<16x362xf32, #tpu.memory_space<vmem>>, vector<8x324xf32>
    %c0_150 = arith.constant 0 : index
    %c38_151 = arith.constant 38 : index
    %123 = vector.load %arg17[%c0_150, %c38_151] : memref<16x362xf32, #tpu.memory_space<vmem>>, vector<8x324xf32>
    %124 = arith.maximumf %120, %121 : vector<8x324xf32>
    %125 = arith.maximumf %122, %123 : vector<8x324xf32>
    %126 = arith.maximumf %124, %125 : vector<8x324xf32>
    %c0_152 = arith.constant 0 : index
    %c0_153 = arith.constant 0 : index
    %127 = vector.load %arg12[%c0_152, %c0_153] : memref<324x100xf32, #tpu.memory_space<vmem>>, vector<324x100xf32>
    %cst_154 = arith.constant dense<0.000000e+00> : vector<8x100xf32>
    %128 = tpu.matmul %126, %127, %cst_154 {dimension_numbers = #tpu.dot_dimension_numbers<[1], [0], [0], [1], [0, 0, 1, 1], [], []>} : vector<8x324xf32>, vector<324x100xf32>, vector<8x100xf32> -> vector<8x100xf32>
    %c0_155 = arith.constant 0 : index
    %c11 = arith.constant 11 : index
    %129 = vector.load %arg18[%c0_155, %c11] : memref<16x362xf32, #tpu.memory_space<vmem>>, vector<8x100xf32>
    tpu.vector_store %arg18[%c0_155, %c11], %128 {strides = array<i32>} : memref<16x362xf32, #tpu.memory_space<vmem>>, vector<8x100xf32>,
    %c0_156 = arith.constant 0 : index
    %c0_157 = arith.constant 0 : index
    %130 = vector.load %arg18[%c0_156, %c0_157] : memref<16x362xf32, #tpu.memory_space<vmem>>, vector<8x100xf32>
    %c0_158 = arith.constant 0 : index
    %c0_159 = arith.constant 0 : index
    %131 = vector.load %arg19[%c0_158, %c0_159] : memref<144x324xf32, #tpu.memory_space<vmem>>, vector<8x100xf32>
    tpu.vector_store %arg19[%c0_158, %c0_159], %130 {strides = array<i32>} : memref<144x324xf32, #tpu.memory_space<vmem>>, vector<8x100xf32>,
    %c0_160 = arith.constant 0 : index
    %c1_161 = arith.constant 1 : index
    %132 = vector.load %arg18[%c0_160, %c1_161] : memref<16x362xf32, #tpu.memory_space<vmem>>, vector<8x100xf32>
    %c8_162 = arith.constant 8 : index
    %c0_163 = arith.constant 0 : index
    %133 = vector.load %arg19[%c8_162, %c0_163] : memref<144x324xf32, #tpu.memory_space<vmem>>, vector<8x100xf32>
    tpu.vector_store %arg19[%c8_162, %c0_163], %132 {strides = array<i32>} : memref<144x324xf32, #tpu.memory_space<vmem>>, vector<8x100xf32>,
    %c0_164 = arith.constant 0 : index
    %c2_165 = arith.constant 2 : index
    %134 = vector.load %arg18[%c0_164, %c2_165] : memref<16x362xf32, #tpu.memory_space<vmem>>, vector<8x100xf32>
    %c16_166 = arith.constant 16 : index
    %c0_167 = arith.constant 0 : index
    %135 = vector.load %arg19[%c16_166, %c0_167] : memref<144x324xf32, #tpu.memory_space<vmem>>, vector<8x100xf32>
    tpu.vector_store %arg19[%c16_166, %c0_167], %134 {strides = array<i32>} : memref<144x324xf32, #tpu.memory_space<vmem>>, vector<8x100xf32>,
    %c0_168 = arith.constant 0 : index
    %c10 = arith.constant 10 : index
    %136 = vector.load %arg18[%c0_168, %c10] : memref<16x362xf32, #tpu.memory_space<vmem>>, vector<8x100xf32>
    %c24_169 = arith.constant 24 : index
    %c0_170 = arith.constant 0 : index
    %137 = vector.load %arg19[%c24_169, %c0_170] : memref<144x324xf32, #tpu.memory_space<vmem>>, vector<8x100xf32>
    tpu.vector_store %arg19[%c24_169, %c0_170], %136 {strides = array<i32>} : memref<144x324xf32, #tpu.memory_space<vmem>>, vector<8x100xf32>,
    %c0_171 = arith.constant 0 : index
    %c11_172 = arith.constant 11 : index
    %138 = vector.load %arg18[%c0_171, %c11_172] : memref<16x362xf32, #tpu.memory_space<vmem>>, vector<8x100xf32>
    %c32_173 = arith.constant 32 : index
    %c0_174 = arith.constant 0 : index
    %139 = vector.load %arg19[%c32_173, %c0_174] : memref<144x324xf32, #tpu.memory_space<vmem>>, vector<8x100xf32>
    tpu.vector_store %arg19[%c32_173, %c0_174], %138 {strides = array<i32>} : memref<144x324xf32, #tpu.memory_space<vmem>>, vector<8x100xf32>,
    %c0_175 = arith.constant 0 : index
    %c12 = arith.constant 12 : index
    %140 = vector.load %arg18[%c0_175, %c12] : memref<16x362xf32, #tpu.memory_space<vmem>>, vector<8x100xf32>
    %c40_176 = arith.constant 40 : index
    %c0_177 = arith.constant 0 : index
    %141 = vector.load %arg19[%c40_176, %c0_177] : memref<144x324xf32, #tpu.memory_space<vmem>>, vector<8x100xf32>
    tpu.vector_store %arg19[%c40_176, %c0_177], %140 {strides = array<i32>} : memref<144x324xf32, #tpu.memory_space<vmem>>, vector<8x100xf32>,
    %c0_178 = arith.constant 0 : index
    %c20_179 = arith.constant 20 : index
    %142 = vector.load %arg18[%c0_178, %c20_179] : memref<16x362xf32, #tpu.memory_space<vmem>>, vector<8x100xf32>
    %c48_180 = arith.constant 48 : index
    %c0_181 = arith.constant 0 : index
    %143 = vector.load %arg19[%c48_180, %c0_181] : memref<144x324xf32, #tpu.memory_space<vmem>>, vector<8x100xf32>
    tpu.vector_store %arg19[%c48_180, %c0_181], %142 {strides = array<i32>} : memref<144x324xf32, #tpu.memory_space<vmem>>, vector<8x100xf32>,
    %c0_182 = arith.constant 0 : index
    %c21 = arith.constant 21 : index
    %144 = vector.load %arg18[%c0_182, %c21] : memref<16x362xf32, #tpu.memory_space<vmem>>, vector<8x100xf32>
    %c56_183 = arith.constant 56 : index
    %c0_184 = arith.constant 0 : index
    %145 = vector.load %arg19[%c56_183, %c0_184] : memref<144x324xf32, #tpu.memory_space<vmem>>, vector<8x100xf32>
    tpu.vector_store %arg19[%c56_183, %c0_184], %144 {strides = array<i32>} : memref<144x324xf32, #tpu.memory_space<vmem>>, vector<8x100xf32>,
    %c0_185 = arith.constant 0 : index
    %c22 = arith.constant 22 : index
    %146 = vector.load %arg18[%c0_185, %c22] : memref<16x362xf32, #tpu.memory_space<vmem>>, vector<8x100xf32>
    %c64_186 = arith.constant 64 : index
    %c0_187 = arith.constant 0 : index
    %147 = vector.load %arg19[%c64_186, %c0_187] : memref<144x324xf32, #tpu.memory_space<vmem>>, vector<8x100xf32>
    tpu.vector_store %arg19[%c64_186, %c0_187], %146 {strides = array<i32>} : memref<144x324xf32, #tpu.memory_space<vmem>>, vector<8x100xf32>,
    %c0_188 = arith.constant 0 : index
    %c0_189 = arith.constant 0 : index
    %148 = vector.load %arg6[%c0_188, %c0_189] : memref<16x72xf32, #tpu.memory_space<vmem>>, vector<16x72xf32>
    %c0_190 = arith.constant 0 : index
    %c0_191 = arith.constant 0 : index
    %149 = vector.load %arg19[%c0_190, %c0_191] : memref<144x324xf32, #tpu.memory_space<vmem>>, vector<72x100xf32>
    %cst_192 = arith.constant dense<0.000000e+00> : vector<16x100xf32>
    %150 = tpu.matmul %148, %149, %cst_192 {dimension_numbers = #tpu.dot_dimension_numbers<[1], [0], [0], [1], [0, 0, 1, 1], [], []>} : vector<16x72xf32>, vector<72x100xf32>, vector<16x100xf32> -> vector<16x100xf32>
    %c0_193 = arith.constant 0 : index
    %c0_194 = arith.constant 0 : index
    %151 = vector.load %arg7[%c0_193, %c0_194] : memref<16x1xf32, #tpu.memory_space<vmem>>, vector<16x1xf32>
    %152 = vector.broadcast %151 : vector<16x1xf32> to vector<16x100xf32>
    %153 = arith.addf %150, %152 : vector<16x100xf32>
    %cst_195 = arith.constant 0.000000e+00 : f32
    %154 = vector.broadcast %cst_195 : f32 to vector<16x100xf32>
    %155 = arith.maximumf %153, %154 : vector<16x100xf32>
    %c0_196 = arith.constant 0 : index
    %c0_197 = arith.constant 0 : index
    %156 = vector.load %arg11[%c0_196, %c0_197] : memref<1x100xf32, #tpu.memory_space<vmem>>, vector<1x100xf32>
    %cst_198 = arith.constant 5.000000e-01 : f32
    %157 = vector.broadcast %cst_198 : f32 to vector<1x100xf32>
    %158 = arith.cmpf ogt, %156, %157 : vector<1x100xf32>
    %cst_199 = arith.constant 0.000000e+00 : f32
    %159 = vector.shape_cast %158 : vector<1x100xi1> to vector<1x100xi1>
    %160 = vector.broadcast %159 : vector<1x100xi1> to vector<16x100xi1>
    %161 = vector.broadcast %cst_199 : f32 to vector<16x100xf32>
    %162 = arith.select %160, %155, %161 : vector<16x100xi1>, vector<16x100xf32>
    %c0_200 = arith.constant 0 : index
    %c11_201 = arith.constant 11 : index
    %163 = vector.load %arg17[%c0_200, %c11_201] : memref<16x362xf32, #tpu.memory_space<vmem>>, vector<16x100xf32>
    tpu.vector_store %arg17[%c0_200, %c11_201], %162 {strides = array<i32>} : memref<16x362xf32, #tpu.memory_space<vmem>>, vector<16x100xf32>,
    %c0_202 = arith.constant 0 : index
    %c0_203 = arith.constant 0 : index
    %164 = vector.load %arg17[%c0_202, %c0_203] : memref<16x362xf32, #tpu.memory_space<vmem>>, vector<16x100xf32>
    %c0_204 = arith.constant 0 : index
    %c0_205 = arith.constant 0 : index
    %165 = vector.load %arg19[%c0_204, %c0_205] : memref<144x324xf32, #tpu.memory_space<vmem>>, vector<16x100xf32>
    tpu.vector_store %arg19[%c0_204, %c0_205], %164 {strides = array<i32>} : memref<144x324xf32, #tpu.memory_space<vmem>>, vector<16x100xf32>,
    %c0_206 = arith.constant 0 : index
    %c1_207 = arith.constant 1 : index
    %166 = vector.load %arg17[%c0_206, %c1_207] : memref<16x362xf32, #tpu.memory_space<vmem>>, vector<16x100xf32>
    %c16_208 = arith.constant 16 : index
    %c0_209 = arith.constant 0 : index
    %167 = vector.load %arg19[%c16_208, %c0_209] : memref<144x324xf32, #tpu.memory_space<vmem>>, vector<16x100xf32>
    tpu.vector_store %arg19[%c16_208, %c0_209], %166 {strides = array<i32>} : memref<144x324xf32, #tpu.memory_space<vmem>>, vector<16x100xf32>,
    %c0_210 = arith.constant 0 : index
    %c2_211 = arith.constant 2 : index
    %168 = vector.load %arg17[%c0_210, %c2_211] : memref<16x362xf32, #tpu.memory_space<vmem>>, vector<16x100xf32>
    %c32_212 = arith.constant 32 : index
    %c0_213 = arith.constant 0 : index
    %169 = vector.load %arg19[%c32_212, %c0_213] : memref<144x324xf32, #tpu.memory_space<vmem>>, vector<16x100xf32>
    tpu.vector_store %arg19[%c32_212, %c0_213], %168 {strides = array<i32>} : memref<144x324xf32, #tpu.memory_space<vmem>>, vector<16x100xf32>,
    %c0_214 = arith.constant 0 : index
    %c10_215 = arith.constant 10 : index
    %170 = vector.load %arg17[%c0_214, %c10_215] : memref<16x362xf32, #tpu.memory_space<vmem>>, vector<16x100xf32>
    %c48_216 = arith.constant 48 : index
    %c0_217 = arith.constant 0 : index
    %171 = vector.load %arg19[%c48_216, %c0_217] : memref<144x324xf32, #tpu.memory_space<vmem>>, vector<16x100xf32>
    tpu.vector_store %arg19[%c48_216, %c0_217], %170 {strides = array<i32>} : memref<144x324xf32, #tpu.memory_space<vmem>>, vector<16x100xf32>,
    %c0_218 = arith.constant 0 : index
    %c11_219 = arith.constant 11 : index
    %172 = vector.load %arg17[%c0_218, %c11_219] : memref<16x362xf32, #tpu.memory_space<vmem>>, vector<16x100xf32>
    %c64_220 = arith.constant 64 : index
    %c0_221 = arith.constant 0 : index
    %173 = vector.load %arg19[%c64_220, %c0_221] : memref<144x324xf32, #tpu.memory_space<vmem>>, vector<16x100xf32>
    tpu.vector_store %arg19[%c64_220, %c0_221], %172 {strides = array<i32>} : memref<144x324xf32, #tpu.memory_space<vmem>>, vector<16x100xf32>,
    %c0_222 = arith.constant 0 : index
    %c12_223 = arith.constant 12 : index
    %174 = vector.load %arg17[%c0_222, %c12_223] : memref<16x362xf32, #tpu.memory_space<vmem>>, vector<16x100xf32>
    %c80_224 = arith.constant 80 : index
    %c0_225 = arith.constant 0 : index
    %175 = vector.load %arg19[%c80_224, %c0_225] : memref<144x324xf32, #tpu.memory_space<vmem>>, vector<16x100xf32>
    tpu.vector_store %arg19[%c80_224, %c0_225], %174 {strides = array<i32>} : memref<144x324xf32, #tpu.memory_space<vmem>>, vector<16x100xf32>,
    %c0_226 = arith.constant 0 : index
    %c20_227 = arith.constant 20 : index
    %176 = vector.load %arg17[%c0_226, %c20_227] : memref<16x362xf32, #tpu.memory_space<vmem>>, vector<16x100xf32>
    %c96_228 = arith.constant 96 : index
    %c0_229 = arith.constant 0 : index
    %177 = vector.load %arg19[%c96_228, %c0_229] : memref<144x324xf32, #tpu.memory_space<vmem>>, vector<16x100xf32>
    tpu.vector_store %arg19[%c96_228, %c0_229], %176 {strides = array<i32>} : memref<144x324xf32, #tpu.memory_space<vmem>>, vector<16x100xf32>,
    %c0_230 = arith.constant 0 : index
    %c21_231 = arith.constant 21 : index
    %178 = vector.load %arg17[%c0_230, %c21_231] : memref<16x362xf32, #tpu.memory_space<vmem>>, vector<16x100xf32>
    %c112_232 = arith.constant 112 : index
    %c0_233 = arith.constant 0 : index
    %179 = vector.load %arg19[%c112_232, %c0_233] : memref<144x324xf32, #tpu.memory_space<vmem>>, vector<16x100xf32>
    tpu.vector_store %arg19[%c112_232, %c0_233], %178 {strides = array<i32>} : memref<144x324xf32, #tpu.memory_space<vmem>>, vector<16x100xf32>,
    %c0_234 = arith.constant 0 : index
    %c22_235 = arith.constant 22 : index
    %180 = vector.load %arg17[%c0_234, %c22_235] : memref<16x362xf32, #tpu.memory_space<vmem>>, vector<16x100xf32>
    %c128_236 = arith.constant 128 : index
    %c0_237 = arith.constant 0 : index
    %181 = vector.load %arg19[%c128_236, %c0_237] : memref<144x324xf32, #tpu.memory_space<vmem>>, vector<16x100xf32>
    tpu.vector_store %arg19[%c128_236, %c0_237], %180 {strides = array<i32>} : memref<144x324xf32, #tpu.memory_space<vmem>>, vector<16x100xf32>,
    %c0_238 = arith.constant 0 : index
    %c0_239 = arith.constant 0 : index
    %182 = vector.load %arg8[%c0_238, %c0_239] : memref<16x144xf32, #tpu.memory_space<vmem>>, vector<16x144xf32>
    %c0_240 = arith.constant 0 : index
    %c0_241 = arith.constant 0 : index
    %183 = vector.load %arg19[%c0_240, %c0_241] : memref<144x324xf32, #tpu.memory_space<vmem>>, vector<144x100xf32>
    %cst_242 = arith.constant dense<0.000000e+00> : vector<16x100xf32>
    %184 = tpu.matmul %182, %183, %cst_242 {dimension_numbers = #tpu.dot_dimension_numbers<[1], [0], [0], [1], [0, 0, 1, 1], [], []>} : vector<16x144xf32>, vector<144x100xf32>, vector<16x100xf32> -> vector<16x100xf32>
    %c0_243 = arith.constant 0 : index
    %c0_244 = arith.constant 0 : index
    %185 = vector.load %arg9[%c0_243, %c0_244] : memref<16x1xf32, #tpu.memory_space<vmem>>, vector<16x1xf32>
    %186 = vector.broadcast %185 : vector<16x1xf32> to vector<16x100xf32>
    %187 = arith.addf %184, %186 : vector<16x100xf32>
    %cst_245 = arith.constant 0.000000e+00 : f32
    %188 = vector.broadcast %cst_245 : f32 to vector<16x100xf32>
    %189 = arith.maximumf %187, %188 : vector<16x100xf32>
    %c0_246 = arith.constant 0 : index
    %c0_247 = arith.constant 0 : index
    %190 = vector.load %arg11[%c0_246, %c0_247] : memref<1x100xf32, #tpu.memory_space<vmem>>, vector<1x100xf32>
    %cst_248 = arith.constant 5.000000e-01 : f32
    %191 = vector.broadcast %cst_248 : f32 to vector<1x100xf32>
    %192 = arith.cmpf ogt, %190, %191 : vector<1x100xf32>
    %cst_249 = arith.constant 0.000000e+00 : f32
    %193 = vector.shape_cast %192 : vector<1x100xi1> to vector<1x100xi1>
    %194 = vector.broadcast %193 : vector<1x100xi1> to vector<16x100xi1>
    %195 = vector.broadcast %cst_249 : f32 to vector<16x100xf32>
    %196 = arith.select %194, %189, %195 : vector<16x100xi1>, vector<16x100xf32>
    %c0_250 = arith.constant 0 : index
    %c11_251 = arith.constant 11 : index
    %197 = vector.load %arg18[%c0_250, %c11_251] : memref<16x362xf32, #tpu.memory_space<vmem>>, vector<16x100xf32>
    tpu.vector_store %arg18[%c0_250, %c11_251], %196 {strides = array<i32>} : memref<16x362xf32, #tpu.memory_space<vmem>>, vector<16x100xf32>,
    %c0_252 = arith.constant 0 : index
    %c11_253 = arith.constant 11 : index
    %198 = vector.load %arg18[%c0_252, %c11_253] : memref<16x362xf32, #tpu.memory_space<vmem>>, vector<16x100xf32>
    %c0_254 = arith.constant 0 : index
    %c12_255 = arith.constant 12 : index
    %199 = vector.load %arg18[%c0_254, %c12_255] : memref<16x362xf32, #tpu.memory_space<vmem>>, vector<16x100xf32>
    %c0_256 = arith.constant 0 : index
    %c21_257 = arith.constant 21 : index
    %200 = vector.load %arg18[%c0_256, %c21_257] : memref<16x362xf32, #tpu.memory_space<vmem>>, vector<16x100xf32>
    %c0_258 = arith.constant 0 : index
    %c22_259 = arith.constant 22 : index
    %201 = vector.load %arg18[%c0_258, %c22_259] : memref<16x362xf32, #tpu.memory_space<vmem>>, vector<16x100xf32>
    %202 = arith.maximumf %198, %199 : vector<16x100xf32>
    %203 = arith.maximumf %200, %201 : vector<16x100xf32>
    %204 = arith.maximumf %202, %203 : vector<16x100xf32>
    %c0_260 = arith.constant 0 : index
    %c0_261 = arith.constant 0 : index
    %205 = vector.load %arg13[%c0_260, %c0_261] : memref<100x16xf32, #tpu.memory_space<vmem>>, vector<100x16xf32>
    %cst_262 = arith.constant dense<0.000000e+00> : vector<16x16xf32>
    %206 = tpu.matmul %204, %205, %cst_262 {dimension_numbers = #tpu.dot_dimension_numbers<[1], [0], [0], [1], [0, 0, 1, 1], [], []>} : vector<16x100xf32>, vector<100x16xf32>, vector<16x16xf32> -> vector<16x16xf32>
    %207 = vector.shape_cast %206 : vector<16x16xf32> to vector<1x16x16xf32>
    %c0_263 = arith.constant 0 : index
    %c0_264 = arith.constant 0 : index
    %c0_265 = arith.constant 0 : index
    %208 = vector.load %arg14[%c0_263, %c0_264, %c0_265] : memref<10x16x16xf32, #tpu.memory_space<vmem>>, vector<10x16x16xf32>
    %209 = vector.broadcast %207 : vector<1x16x16xf32> to vector<10x16x16xf32>
    %210 = arith.mulf %209, %208 : vector<10x16x16xf32>
    %cst_266 = arith.constant dense<0.000000e+00> : vector<10x16xf32>
    %211 = vector.multi_reduction <add>, %210, %cst_266 [2] : vector<10x16x16xf32> to vector<10x16xf32>
    %cst_267 = arith.constant dense<0.000000e+00> : vector<10xf32>
    %212 = vector.multi_reduction <add>, %211, %cst_267 [1] : vector<10x16xf32> to vector<10xf32>
    %213 = vector.shape_cast %212 : vector<10xf32> to vector<10x1xf32>
    %c0_268 = arith.constant 0 : index
    %c0_269 = arith.constant 0 : index
    %214 = vector.load %arg15[%c0_268, %c0_269] : memref<10x1xf32, #tpu.memory_space<vmem>>, vector<10x1xf32>
    %215 = arith.addf %213, %214 : vector<10x1xf32>
    %c0_270 = arith.constant 0 : index
    %c0_271 = arith.constant 0 : index
    %c0_272 = arith.constant 0 : index
    %216 = vector.load %arg16[%c0_270, %c0_271, %c0_272] : memref<1x10x1xf32, #tpu.memory_space<vmem>>, vector<1x10x1xf32>
    %217 = vector.shape_cast %216 : vector<1x10x1xf32> to vector<10x1xf32>
    %218 = vector.shape_cast %215 : vector<10x1xf32> to vector<1x10x1xf32>
    tpu.vector_store %arg16[%c0_270, %c0_271, %c0_272], %218 {strides = array<i32>} : memref<1x10x1xf32, #tpu.memory_space<vmem>>, vector<1x10x1xf32>,
    return
  }
  func.func @transform_0(%arg0: i32) -> (i32, i32, i32) {
    %c0_i32 = arith.constant 0 : i32
    %c0_i32_0 = arith.constant 0 : i32
    %c0_i32_1 = arith.constant 0 : i32
    return %arg0, %c0_i32, %c0_i32_0 : i32, i32, i32
  }
  func.func @transform_1(%arg0: i32) -> (i32, i32) {
    %c0_i32 = arith.constant 0 : i32
    %c0_i32_0 = arith.constant 0 : i32
    %c0_i32_1 = arith.constant 0 : i32
    return %c0_i32, %c0_i32_0 : i32, i32
  }
  func.func @transform_2(%arg0: i32) -> (i32, i32) {
    %c0_i32 = arith.constant 0 : i32
    %c0_i32_0 = arith.constant 0 : i32
    %c0_i32_1 = arith.constant 0 : i32
    return %c0_i32, %c0_i32_0 : i32, i32
  }
  func.func @transform_3(%arg0: i32) -> (i32, i32) {
    %c0_i32 = arith.constant 0 : i32
    %c0_i32_0 = arith.constant 0 : i32
    %c0_i32_1 = arith.constant 0 : i32
    return %c0_i32, %c0_i32_0 : i32, i32
  }
  func.func @transform_4(%arg0: i32) -> (i32, i32) {
    %c0_i32 = arith.constant 0 : i32
    %c0_i32_0 = arith.constant 0 : i32
    %c0_i32_1 = arith.constant 0 : i32
    return %c0_i32, %c0_i32_0 : i32, i32
  }
  func.func @transform_5(%arg0: i32) -> (i32, i32) {
    %c0_i32 = arith.constant 0 : i32
    %c0_i32_0 = arith.constant 0 : i32
    %c0_i32_1 = arith.constant 0 : i32
    return %c0_i32, %c0_i32_0 : i32, i32
  }
  func.func @transform_6(%arg0: i32) -> (i32, i32) {
    %c0_i32 = arith.constant 0 : i32
    %c0_i32_0 = arith.constant 0 : i32
    %c0_i32_1 = arith.constant 0 : i32
    return %c0_i32, %c0_i32_0 : i32, i32
  }
  func.func @transform_7(%arg0: i32) -> (i32, i32) {
    %c0_i32 = arith.constant 0 : i32
    %c0_i32_0 = arith.constant 0 : i32
    %c0_i32_1 = arith.constant 0 : i32
    return %c0_i32, %c0_i32_0 : i32, i32
  }
  func.func @transform_8(%arg0: i32) -> (i32, i32) {
    %c0_i32 = arith.constant 0 : i32
    %c0_i32_0 = arith.constant 0 : i32
    %c0_i32_1 = arith.constant 0 : i32
    return %c0_i32, %c0_i32_0 : i32, i32
  }
  func.func @transform_9(%arg0: i32) -> (i32, i32) {
    %c0_i32 = arith.constant 0 : i32
    %c0_i32_0 = arith.constant 0 : i32
    %c0_i32_1 = arith.constant 0 : i32
    return %c0_i32, %c0_i32_0 : i32, i32
  }
  func.func @transform_10(%arg0: i32) -> (i32, i32) {
    %c0_i32 = arith.constant 0 : i32
    %c0_i32_0 = arith.constant 0 : i32
    %c0_i32_1 = arith.constant 0 : i32
    return %c0_i32, %c0_i32_0 : i32, i32
  }
  func.func @transform_11(%arg0: i32) -> (i32, i32) {
    %c0_i32 = arith.constant 0 : i32
    %c0_i32_0 = arith.constant 0 : i32
    %c0_i32_1 = arith.constant 0 : i32
    return %c0_i32, %c0_i32_0 : i32, i32
  }
  func.func @transform_12(%arg0: i32) -> (i32, i32) {
    %c0_i32 = arith.constant 0 : i32
    %c0_i32_0 = arith.constant 0 : i32
    %c0_i32_1 = arith.constant 0 : i32
    return %c0_i32, %c0_i32_0 : i32, i32
  }
  func.func @transform_13(%arg0: i32) -> (i32, i32, i32) {
    %c0_i32 = arith.constant 0 : i32
    %c0_i32_0 = arith.constant 0 : i32
    %c0_i32_1 = arith.constant 0 : i32
    %c0_i32_2 = arith.constant 0 : i32
    return %c0_i32, %c0_i32_0, %c0_i32_1 : i32, i32, i32
  }
  func.func @transform_14(%arg0: i32) -> (i32, i32) {
    %c0_i32 = arith.constant 0 : i32
    %c0_i32_0 = arith.constant 0 : i32
    %c0_i32_1 = arith.constant 0 : i32
    return %c0_i32, %c0_i32_0 : i32, i32
  }
  func.func @transform_15(%arg0: i32) -> (i32, i32, i32) {
    %c0_i32 = arith.constant 0 : i32
    %c0_i32_0 = arith.constant 0 : i32
    %c0_i32_1 = arith.constant 0 : i32
    return %arg0, %c0_i32, %c0_i32_0 : i32, i32, i32
  }
}

</mosaic_0001>

<llo_original>
// kernel: forward.1
$region0: #{forward.1}
  #allocation0 [shape = 'u32[]', space=smem, size = 0x4, offset = 0x4, fixed_abs, tag = 'smem constant byte address 0x4 - core index']
  #allocation1 [shape = 'u32[72,128]{1,0:T(1,128)}', space=vmem, size = 0x9000, scoped, tag = 'internal scratch']
  #allocation2 [shape = 'f32[16,362]{1,0:T(8,128)}', space=vmem, size = 0x6000, scoped, tag = 'scratch operand']
  #allocation3 [shape = 'f32[16,362]{1,0:T(8,128)}', space=vmem, size = 0x6000, scoped, tag = 'scratch operand']
  #allocation4 [shape = 'f32[144,324]{1,0:T(8,128)}', space=vmem, size = 0x36000, scoped, tag = 'scratch operand']
  %s0 = inlined_call_operand.vmem [shape: f32[2,4,256], index: 0, kind: input, shape index: {}]
  %s1 = inlined_call_operand.hbm [shape: f32[8,72], index: 1, kind: input, shape index: {}]
  %s2 = inlined_call_operand.hbm [shape: f32[8,1], index: 2, kind: input, shape index: {}]
  %s3 = inlined_call_operand.hbm [shape: f32[8,72], index: 3, kind: input, shape index: {}]
  %s4 = inlined_call_operand.hbm [shape: f32[8,1], index: 4, kind: input, shape index: {}]
  %s5 = inlined_call_operand.hbm [shape: f32[16,72], index: 5, kind: input, shape index: {}]
  %s6 = inlined_call_operand.hbm [shape: f32[16,1], index: 6, kind: input, shape index: {}]
  %s7 = inlined_call_operand.vmem [shape: f32[16,144], index: 7, kind: input, shape index: {}]
  %s8 = inlined_call_operand.hbm [shape: f32[16,1], index: 8, kind: input, shape index: {}]
  %s9 = inlined_call_operand.vmem [shape: f32[1,324], index: 9, kind: input, shape index: {}]
  %s10 = inlined_call_operand.vmem [shape: f32[1,100], index: 10, kind: input, shape index: {}]
  %s11 = inlined_call_operand.hbm [shape: f32[324,100], index: 11, kind: input, shape index: {}]
  %s12 = inlined_call_operand.vmem [shape: f32[100,16], index: 12, kind: input, shape index: {}]
  %s13 = inlined_call_operand.hbm [shape: f32[10,16,16], index: 13, kind: input, shape index: {}]
  %s14 = inlined_call_operand.vmem [shape: f32[10,1], index: 14, kind: input, shape index: {}]
  %s15 = inlined_call_operand.vmem [shape: f32[2,10,1], index: 15, kind: output, shape index: {}]
  %s16 = sld [smem:[#allocation0]]
  $region129: #{forward.1} parent=0
    _
  %s18 = ssub.s32 1, %s16
  %s19 = scalar_select 0, %s18, %s16
  $region1: #{forward.1} parent=0
    #allocation5 [shape = 'u8[4096]{0}', space=vmem, size = 0x1000, scoped, tag = 'input window, operand 1, single buffered']
    #allocation6 [shape = 's32[2]{0}', space=sflag, size = 0x8, scoped, tag = 'scoped memory for forward.1']
    #allocation7 [shape = 'u8[4096]{0}', space=vmem, size = 0x1000, scoped, tag = 'input window, operand 2, single buffered']
    #allocation8 [shape = 's32[1]{0}', space=sflag, size = 0x4, scoped, tag = 'scoped memory for forward.1']
    #allocation9 [shape = 'u8[4096]{0}', space=vmem, size = 0x1000, scoped, tag = 'input window, operand 3, single buffered']
    #allocation10 [shape = 'u8[4096]{0}', space=vmem, size = 0x1000, scoped, tag = 'input window, operand 4, single buffered']
    #allocation11 [shape = 's32[1]{0}', space=sflag, size = 0x4, scoped, tag = 'scoped memory for forward.1']
    #allocation12 [shape = 'u8[8192]{0}', space=vmem, size = 0x2000, scoped, tag = 'input window, operand 5, single buffered']
    #allocation13 [shape = 'u8[8192]{0}', space=vmem, size = 0x2000, scoped, tag = 'input window, operand 6, single buffered']
    #allocation14 [shape = 's32[1]{0}', space=sflag, size = 0x4, scoped, tag = 'scoped memory for forward.1']
    #allocation15 [shape = 'u8[8192]{0}', space=vmem, size = 0x2000, scoped, tag = 'input window, operand 8, single buffered']
    #allocation16 [shape = 'u8[167936]{0}', space=vmem, size = 0x29000, scoped, tag = 'input window, operand 11, single buffered']
    #allocation17 [shape = 's32[1]{0}', space=sflag, size = 0x4, scoped, tag = 'scoped memory for forward.1']
    #allocation18 [shape = 'u8[81920]{0}', space=vmem, size = 0x14000, scoped, tag = 'input window, operand 13, single buffered']
    %20 = vsyncpa [#allocation6], 0
    %21 = vsyncpa [#allocation8], 0
    %22 = vsyncpa [#allocation11], 0
    %23 = vsyncpa [#allocation14], 0
    %24 = vsyncpa [#allocation17], 0
    loop: start=0, step=1, limit=4
    $region2: #{forward.1} parent=1 // loop_pre_header
      _
    $region3: #{forward.1} parent=1 // loop_header
      %s26 = sphi 0, %s30
      %p27 = scmp.ge.s32.totalorder %s26, 4
      %s36 = sphi 0, %s38
      %s39 = sphi 0, %s36
      %s40 = sphi 0, %s39
      %s56 = sphi 0, %s40
      %s60 = sphi 0, %s60
      %s62 = sphi 0, %s60
      %s63 = sphi 0, %s62
      %s77 = sphi 0, %s63
      %s81 = sphi 0, %s81
      %s83 = sphi 0, %s81
      %s84 = sphi 0, %s83
      %s98 = sphi 0, %s84
      %s102 = sphi 0, %s102
      %s104 = sphi 0, %s102
      %s105 = sphi 0, %s104
      %s119 = sphi 0, %s105
      %s123 = sphi 0, %s123
      %s125 = sphi 0, %s123
      %s126 = sphi 0, %s125
      %s140 = sphi 0, %s126
      %s144 = sphi 0, %s144
      %s146 = sphi 0, %s144
      %s147 = sphi 0, %s146
      %s161 = sphi 0, %s147
      %s165 = sphi 0, %s165
      %s167 = sphi 0, %s165
      %s168 = sphi 0, %s167
      %s182 = sphi 0, %s168
      %s186 = sphi 0, %s186
      %s188 = sphi 0, %s186
      %s189 = sphi 0, %s188
      %s203 = sphi 0, %s189
      %s207 = sphi 0, %s207
      %s209 = sphi 0, %s207
      %s210 = sphi 0, %s209
      %s224 = sphi 0, %s210
      %s228 = sphi 0, %s228
      %s230 = sphi 0, %s228
      %s231 = sphi 0, %s230
      %s245 = sphi 0, %s231
      %s249 = sphi 0, %s249
      %s251 = sphi 0, %s249
      %s252 = sphi 0, %s251
      %s266 = sphi 0, %s252
      %s270 = sphi 0, %s270
      %s272 = sphi 0, %s270
      %s273 = sphi 0, %s272
      %s287 = sphi 0, %s273
      %s291 = sphi 0, %s291
      %s293 = sphi 0, %s291
      %s294 = sphi 0, %s293
      %s308 = sphi 0, %s294
      %s312 = sphi 0, %s312
      %s314 = sphi 0, %s312
      %s315 = sphi 0, %s314
      %s329 = sphi 0, %s315
      %s333 = sphi 0, %s333
      %s335 = sphi 0, %s333
      %s336 = sphi 0, %s335
      %s350 = sphi 0, %s336
      %s356 = sphi 0, %s358
      %s359 = sphi 0, %s356
      %s360 = sphi 0, %s359
      %s376 = sphi 0, %s360
    $region4: #{forward.1} parent=1 // loop_header_branch
      %29 = sbr.rel (%p27) target = $region8
    $region5: #{forward.1} parent=1 // loop_body
      %s31 = ssub.s32 %s26, 1
      %s32 = ssub.s32 %s26, 2
      %s33 = sadd.s32 %s26, 1
      %s34 = ssub.s32 %s26, %s33
      %p35 = scmp.eq.s32.totalorder %s34, 0
      %s37 = sadd.s32 %s36, 1
      %s38 = scalar_select %p35, %s36, %s37
      %p41 = pneg %p35
      %p42 = scmp.eq.s32.totalorder %s26, 1
      %p43 = por %p41, %p42
      %p44 = scmp.ne.s32.totalorder %s36, %s39
      %p45 = scmp.eq.s32.totalorder %s26, 0
      %p46 = por %p44, %p45
      %p47 = scmp.ne.s32.totalorder %s36, %s39
      %p48 = scmp.eq.s32.totalorder %s31, 1
      %p49 = por %p47, %p48
      %p50 = scmp.ne.s32.totalorder %s39, %s40
      %p51 = scmp.eq.s32.totalorder %s31, 0
      %p52 = por %p50, %p51
      %p53 = scmp.ne.s32.totalorder %s39, %s40
      %p54 = scmp.eq.s32.totalorder %s32, 1
      %p55 = por %p53, %p54
      %p57 = scmp.ne.s32.totalorder %s40, %s56
      %p58 = scmp.eq.s32.totalorder %s32, 0
      %p59 = por %p57, %p58
      %s61 = sadd.s32 %s60, 1
      %p64 = scmp.eq.s32.totalorder %s26, 1
      %p65 = scmp.ne.s32.totalorder %s60, %s62
      %p66 = scmp.eq.s32.totalorder %s26, 0
      %p67 = por %p65, %p66
      %p68 = scmp.ne.s32.totalorder %s60, %s62
      %p69 = scmp.eq.s32.totalorder %s31, 1
      %p70 = por %p68, %p69
      %p71 = scmp.ne.s32.totalorder %s62, %s63
      %p72 = scmp.eq.s32.totalorder %s31, 0
      %p73 = por %p71, %p72
      %p74 = scmp.ne.s32.totalorder %s62, %s63
      %p75 = scmp.eq.s32.totalorder %s32, 1
      %p76 = por %p74, %p75
      %p78 = scmp.ne.s32.totalorder %s63, %s77
      %p79 = scmp.eq.s32.totalorder %s32, 0
      %p80 = por %p78, %p79
      %s82 = sadd.s32 %s81, 1
      %p85 = scmp.eq.s32.totalorder %s26, 1
      %p86 = scmp.ne.s32.totalorder %s81, %s83
      %p87 = scmp.eq.s32.totalorder %s26, 0
      %p88 = por %p86, %p87
      %p89 = scmp.ne.s32.totalorder %s81, %s83
      %p90 = scmp.eq.s32.totalorder %s31, 1
      %p91 = por %p89, %p90
      %p92 = scmp.ne.s32.totalorder %s83, %s84
      %p93 = scmp.eq.s32.totalorder %s31, 0
      %p94 = por %p92, %p93
      %p95 = scmp.ne.s32.totalorder %s83, %s84
      %p96 = scmp.eq.s32.totalorder %s32, 1
      %p97 = por %p95, %p96
      %p99 = scmp.ne.s32.totalorder %s84, %s98
      %p100 = scmp.eq.s32.totalorder %s32, 0
      %p101 = por %p99, %p100
      %s103 = sadd.s32 %s102, 1
      %p106 = scmp.eq.s32.totalorder %s26, 1
      %p107 = scmp.ne.s32.totalorder %s102, %s104
      %p108 = scmp.eq.s32.totalorder %s26, 0
      %p109 = por %p107, %p108
      %p110 = scmp.ne.s32.totalorder %s102, %s104
      %p111 = scmp.eq.s32.totalorder %s31, 1
      %p112 = por %p110, %p111
      %p113 = scmp.ne.s32.totalorder %s104, %s105
      %p114 = scmp.eq.s32.totalorder %s31, 0
      %p115 = por %p113, %p114
      %p116 = scmp.ne.s32.totalorder %s104, %s105
      %p117 = scmp.eq.s32.totalorder %s32, 1
      %p118 = por %p116, %p117
      %p120 = scmp.ne.s32.totalorder %s105, %s119
      %p121 = scmp.eq.s32.totalorder %s32, 0
      %p122 = por %p120, %p121
      %s124 = sadd.s32 %s123, 1
      %p127 = scmp.eq.s32.totalorder %s26, 1
      %p128 = scmp.ne.s32.totalorder %s123, %s125
      %p129 = scmp.eq.s32.totalorder %s26, 0
      %p130 = por %p128, %p129
      %p131 = scmp.ne.s32.totalorder %s123, %s125
      %p132 = scmp.eq.s32.totalorder %s31, 1
      %p133 = por %p131, %p132
      %p134 = scmp.ne.s32.totalorder %s125, %s126
      %p135 = scmp.eq.s32.totalorder %s31, 0
      %p136 = por %p134, %p135
      %p137 = scmp.ne.s32.totalorder %s125, %s126
      %p138 = scmp.eq.s32.totalorder %s32, 1
      %p139 = por %p137, %p138
      %p141 = scmp.ne.s32.totalorder %s126, %s140
      %p142 = scmp.eq.s32.totalorder %s32, 0
      %p143 = por %p141, %p142
      %s145 = sadd.s32 %s144, 1
      %p148 = scmp.eq.s32.totalorder %s26, 1
      %p149 = scmp.ne.s32.totalorder %s144, %s146
      %p150 = scmp.eq.s32.totalorder %s26, 0
      %p151 = por %p149, %p150
      %p152 = scmp.ne.s32.totalorder %s144, %s146
      %p153 = scmp.eq.s32.totalorder %s31, 1
      %p154 = por %p152, %p153
      %p155 = scmp.ne.s32.totalorder %s146, %s147
      %p156 = scmp.eq.s32.totalorder %s31, 0
      %p157 = por %p155, %p156
      %p158 = scmp.ne.s32.totalorder %s146, %s147
      %p159 = scmp.eq.s32.totalorder %s32, 1
      %p160 = por %p158, %p159
      %p162 = scmp.ne.s32.totalorder %s147, %s161
      %p163 = scmp.eq.s32.totalorder %s32, 0
      %p164 = por %p162, %p163
      %s166 = sadd.s32 %s165, 1
      %p169 = scmp.eq.s32.totalorder %s26, 1
      %p170 = scmp.ne.s32.totalorder %s165, %s167
      %p171 = scmp.eq.s32.totalorder %s26, 0
      %p172 = por %p170, %p171
      %p173 = scmp.ne.s32.totalorder %s165, %s167
      %p174 = scmp.eq.s32.totalorder %s31, 1
      %p175 = por %p173, %p174
      %p176 = scmp.ne.s32.totalorder %s167, %s168
      %p177 = scmp.eq.s32.totalorder %s31, 0
      %p178 = por %p176, %p177
      %p179 = scmp.ne.s32.totalorder %s167, %s168
      %p180 = scmp.eq.s32.totalorder %s32, 1
      %p181 = por %p179, %p180
      %p183 = scmp.ne.s32.totalorder %s168, %s182
      %p184 = scmp.eq.s32.totalorder %s32, 0
      %p185 = por %p183, %p184
      %s187 = sadd.s32 %s186, 1
      %p190 = scmp.eq.s32.totalorder %s26, 1
      %p191 = scmp.ne.s32.totalorder %s186, %s188
      %p192 = scmp.eq.s32.totalorder %s26, 0
      %p193 = por %p191, %p192
      %p194 = scmp.ne.s32.totalorder %s186, %s188
      %p195 = scmp.eq.s32.totalorder %s31, 1
      %p196 = por %p194, %p195
      %p197 = scmp.ne.s32.totalorder %s188, %s189
      %p198 = scmp.eq.s32.totalorder %s31, 0
      %p199 = por %p197, %p198
      %p200 = scmp.ne.s32.totalorder %s188, %s189
      %p201 = scmp.eq.s32.totalorder %s32, 1
      %p202 = por %p200, %p201
      %p204 = scmp.ne.s32.totalorder %s189, %s203
      %p205 = scmp.eq.s32.totalorder %s32, 0
      %p206 = por %p204, %p205
      %s208 = sadd.s32 %s207, 1
      %p211 = scmp.eq.s32.totalorder %s26, 1
      %p212 = scmp.ne.s32.totalorder %s207, %s209
      %p213 = scmp.eq.s32.totalorder %s26, 0
      %p214 = por %p212, %p213
      %p215 = scmp.ne.s32.totalorder %s207, %s209
      %p216 = scmp.eq.s32.totalorder %s31, 1
      %p217 = por %p215, %p216
      %p218 = scmp.ne.s32.totalorder %s209, %s210
      %p219 = scmp.eq.s32.totalorder %s31, 0
      %p220 = por %p218, %p219
      %p221 = scmp.ne.s32.totalorder %s209, %s210
      %p222 = scmp.eq.s32.totalorder %s32, 1
      %p223 = por %p221, %p222
      %p225 = scmp.ne.s32.totalorder %s210, %s224
      %p226 = scmp.eq.s32.totalorder %s32, 0
      %p227 = por %p225, %p226
      %s229 = sadd.s32 %s228, 1
      %p232 = scmp.eq.s32.totalorder %s26, 1
      %p233 = scmp.ne.s32.totalorder %s228, %s230
      %p234 = scmp.eq.s32.totalorder %s26, 0
      %p235 = por %p233, %p234
      %p236 = scmp.ne.s32.totalorder %s228, %s230
      %p237 = scmp.eq.s32.totalorder %s31, 1
      %p238 = por %p236, %p237
      %p239 = scmp.ne.s32.totalorder %s230, %s231
      %p240 = scmp.eq.s32.totalorder %s31, 0
      %p241 = por %p239, %p240
      %p242 = scmp.ne.s32.totalorder %s230, %s231
      %p243 = scmp.eq.s32.totalorder %s32, 1
      %p244 = por %p242, %p243
      %p246 = scmp.ne.s32.totalorder %s231, %s245
      %p247 = scmp.eq.s32.totalorder %s32, 0
      %p248 = por %p246, %p247
      %s250 = sadd.s32 %s249, 1
      %p253 = scmp.eq.s32.totalorder %s26, 1
      %p254 = scmp.ne.s32.totalorder %s249, %s251
      %p255 = scmp.eq.s32.totalorder %s26, 0
      %p256 = por %p254, %p255
      %p257 = scmp.ne.s32.totalorder %s249, %s251
      %p258 = scmp.eq.s32.totalorder %s31, 1
      %p259 = por %p257, %p258
      %p260 = scmp.ne.s32.totalorder %s251, %s252
      %p261 = scmp.eq.s32.totalorder %s31, 0
      %p262 = por %p260, %p261
      %p263 = scmp.ne.s32.totalorder %s251, %s252
      %p264 = scmp.eq.s32.totalorder %s32, 1
      %p265 = por %p263, %p264
      %p267 = scmp.ne.s32.totalorder %s252, %s266
      %p268 = scmp.eq.s32.totalorder %s32, 0
      %p269 = por %p267, %p268
      %s271 = sadd.s32 %s270, 1
      %p274 = scmp.eq.s32.totalorder %s26, 1
      %p275 = scmp.ne.s32.totalorder %s270, %s272
      %p276 = scmp.eq.s32.totalorder %s26, 0
      %p277 = por %p275, %p276
      %p278 = scmp.ne.s32.totalorder %s270, %s272
      %p279 = scmp.eq.s32.totalorder %s31, 1
      %p280 = por %p278, %p279
      %p281 = scmp.ne.s32.totalorder %s272, %s273
      %p282 = scmp.eq.s32.totalorder %s31, 0
      %p283 = por %p281, %p282
      %p284 = scmp.ne.s32.totalorder %s272, %s273
      %p285 = scmp.eq.s32.totalorder %s32, 1
      %p286 = por %p284, %p285
      %p288 = scmp.ne.s32.totalorder %s273, %s287
      %p289 = scmp.eq.s32.totalorder %s32, 0
      %p290 = por %p288, %p289
      %s292 = sadd.s32 %s291, 1
      %p295 = scmp.eq.s32.totalorder %s26, 1
      %p296 = scmp.ne.s32.totalorder %s291, %s293
      %p297 = scmp.eq.s32.totalorder %s26, 0
      %p298 = por %p296, %p297
      %p299 = scmp.ne.s32.totalorder %s291, %s293
      %p300 = scmp.eq.s32.totalorder %s31, 1
      %p301 = por %p299, %p300
      %p302 = scmp.ne.s32.totalorder %s293, %s294
      %p303 = scmp.eq.s32.totalorder %s31, 0
      %p304 = por %p302, %p303
      %p305 = scmp.ne.s32.totalorder %s293, %s294
      %p306 = scmp.eq.s32.totalorder %s32, 1
      %p307 = por %p305, %p306
      %p309 = scmp.ne.s32.totalorder %s294, %s308
      %p310 = scmp.eq.s32.totalorder %s32, 0
      %p311 = por %p309, %p310
      %s313 = sadd.s32 %s312, 1
      %p316 = scmp.eq.s32.totalorder %s26, 1
      %p317 = scmp.ne.s32.totalorder %s312, %s314
      %p318 = scmp.eq.s32.totalorder %s26, 0
      %p319 = por %p317, %p318
      %p320 = scmp.ne.s32.totalorder %s312, %s314
      %p321 = scmp.eq.s32.totalorder %s31, 1
      %p322 = por %p320, %p321
      %p323 = scmp.ne.s32.totalorder %s314, %s315
      %p324 = scmp.eq.s32.totalorder %s31, 0
      %p325 = por %p323, %p324
      %p326 = scmp.ne.s32.totalorder %s314, %s315
      %p327 = scmp.eq.s32.totalorder %s32, 1
      %p328 = por %p326, %p327
      %p330 = scmp.ne.s32.totalorder %s315, %s329
      %p331 = scmp.eq.s32.totalorder %s32, 0
      %p332 = por %p330, %p331
      %s334 = sadd.s32 %s333, 1
      %p337 = scmp.eq.s32.totalorder %s26, 1
      %p338 = scmp.ne.s32.totalorder %s333, %s335
      %p339 = scmp.eq.s32.totalorder %s26, 0
      %p340 = por %p338, %p339
      %p341 = scmp.ne.s32.totalorder %s333, %s335
      %p342 = scmp.eq.s32.totalorder %s31, 1
      %p343 = por %p341, %p342
      %p344 = scmp.ne.s32.totalorder %s335, %s336
      %p345 = scmp.eq.s32.totalorder %s31, 0
      %p346 = por %p344, %p345
      %p347 = scmp.ne.s32.totalorder %s335, %s336
      %p348 = scmp.eq.s32.totalorder %s32, 1
      %p349 = por %p347, %p348
      %p351 = scmp.ne.s32.totalorder %s336, %s350
      %p352 = scmp.eq.s32.totalorder %s32, 0
      %p353 = por %p351, %p352
      %s354 = ssub.s32 %s26, %s33
      %p355 = scmp.eq.s32.totalorder %s354, 0
      %s357 = sadd.s32 %s356, 1
      %s358 = scalar_select %p355, %s356, %s357
      %p361 = pneg %p355
      %p362 = scmp.eq.s32.totalorder %s26, 1
      %p363 = por %p361, %p362
      %p364 = scmp.ne.s32.totalorder %s356, %s359
      %p365 = scmp.eq.s32.totalorder %s26, 0
      %p366 = por %p364, %p365
      %p367 = scmp.ne.s32.totalorder %s356, %s359
      %p368 = scmp.eq.s32.totalorder %s31, 1
      %p369 = por %p367, %p368
      %p370 = scmp.ne.s32.totalorder %s359, %s360
      %p371 = scmp.eq.s32.totalorder %s31, 0
      %p372 = por %p370, %p371
      %p373 = scmp.ne.s32.totalorder %s359, %s360
      %p374 = scmp.eq.s32.totalorder %s32, 1
      %p375 = por %p373, %p374
      %p377 = scmp.ne.s32.totalorder %s360, %s376
      %p378 = scmp.eq.s32.totalorder %s32, 0
      %p379 = por %p377, %p378
      %p380 = scmp.le.s32.totalorder 1, %s26
      %p381 = scmp.lt.s32.totalorder %s26, 3
      %p382 = pnand %p380, %p381
      %p383 = pneg %p382
      // Predicated region
      $region9: #{forward.1} parent=5 // pred_check
        _
      $region10: #{forward.1} parent=5 // pred_check_branch
        %385 = sbr.rel (%p382) target = $region12
      $region11: #{forward.1} parent=5 // pred_region
        %s386 = ssub.s32 %s26, 1
        // Predicated region
        $region13: #{forward.1} parent=11 // pred_check
          %p387 = pneg %p73
        $region14: #{forward.1} parent=11 // pred_check_branch
          %389 = sbr.rel (%p387) target = $region16
        $region15: #{forward.1} parent=11 // pred_region
          %391 = vsyncadd [#allocation6], 0
          %s393 = sshll.u32 %s1, 4
          %s394 = int_to_ptr.hbm [resolvable:$true] %s393
          %s395 = sshll.u32 [#allocation5], 4
          %s396 = int_to_ptr.vmem [resolvable:$true] %s395
          %398 = dma.hbm_to_vmem [thread:$0]  %s394, 128, %s396, [#allocation6]
        $region16: #{forward.1} parent=11 // pred_fallthru
          _
        // Predicated region
        $region17: #{forward.1} parent=11 // pred_check
          %p399 = pneg %p94
        $region18: #{forward.1} parent=11 // pred_check_branch
          %401 = sbr.rel (%p399) target = $region20
        $region19: #{forward.1} parent=11 // pred_region
          %403 = vsyncadd [#allocation8], 0
          %s405 = sshll.u32 %s2, 4
          %s406 = int_to_ptr.hbm [resolvable:$true] %s405
          %s407 = sshll.u32 [#allocation7], 4
          %s408 = int_to_ptr.vmem [resolvable:$true] %s407
          %410 = dma.hbm_to_vmem [thread:$0]  %s406, 128, %s408, [#allocation8]
        $region20: #{forward.1} parent=11 // pred_fallthru
          _
        // Predicated region
        $region21: #{forward.1} parent=11 // pred_check
          %p411 = pneg %p115
        $region22: #{forward.1} parent=11 // pred_check_branch
          %413 = sbr.rel (%p411) target = $region24
        $region23: #{forward.1} parent=11 // pred_region
          %415 = vsyncadd [#allocation8], 0
          %s417 = sshll.u32 %s3, 4
          %s418 = int_to_ptr.hbm [resolvable:$true] %s417
          %s419 = sshll.u32 [#allocation9], 4
          %s420 = int_to_ptr.vmem [resolvable:$true] %s419
          %422 = dma.hbm_to_vmem [thread:$0]  %s418, 128, %s420, [#allocation8]
        $region24: #{forward.1} parent=11 // pred_fallthru
          _
        // Predicated region
        $region25: #{forward.1} parent=11 // pred_check
          %p423 = pneg %p136
        $region26: #{forward.1} parent=11 // pred_check_branch
          %425 = sbr.rel (%p423) target = $region28
        $region27: #{forward.1} parent=11 // pred_region
          %427 = vsyncadd [#allocation11], 0
          %s429 = sshll.u32 %s4, 4
          %s430 = int_to_ptr.hbm [resolvable:$true] %s429
          %s431 = sshll.u32 [#allocation10], 4
          %s432 = int_to_ptr.vmem [resolvable:$true] %s431
          %434 = dma.hbm_to_vmem [thread:$0]  %s430, 128, %s432, [#allocation11]
        $region28: #{forward.1} parent=11 // pred_fallthru
          _
        // Predicated region
        $region29: #{forward.1} parent=11 // pred_check
          %p435 = pneg %p157
        $region30: #{forward.1} parent=11 // pred_check_branch
          %437 = sbr.rel (%p435) target = $region32
        $region31: #{forward.1} parent=11 // pred_region
          %439 = vsyncadd [#allocation11], 0
          %s440 = sshll.u32 %s5, 4
          %s441 = int_to_ptr.hbm [resolvable:$true] %s440
          %s442 = sshll.u32 [#allocation12], 4
          %s443 = int_to_ptr.vmem [resolvable:$true] %s442
          %448 = dma.hbm_to_vmem [thread:$0]  %s441, 256, %s443, [#allocation11], 128, 128, 8
        $region32: #{forward.1} parent=11 // pred_fallthru
          _
        // Predicated region
        $region33: #{forward.1} parent=11 // pred_check
          %p449 = pneg %p178
        $region34: #{forward.1} parent=11 // pred_check_branch
          %451 = sbr.rel (%p449) target = $region36
        $region35: #{forward.1} parent=11 // pred_region
          %453 = vsyncadd [#allocation14], 0
          %s454 = sshll.u32 %s6, 4
          %s455 = int_to_ptr.hbm [resolvable:$true] %s454
          %s456 = sshll.u32 [#allocation13], 4
          %s457 = int_to_ptr.vmem [resolvable:$true] %s456
          %462 = dma.hbm_to_vmem [thread:$0]  %s455, 256, %s457, [#allocation14], 128, 128, 8
        $region36: #{forward.1} parent=11 // pred_fallthru
          _
        // Predicated region
        $region37: #{forward.1} parent=11 // pred_check
          %p463 = pneg %p199
        $region38: #{forward.1} parent=11 // pred_check_branch
          %465 = sbr.rel (%p463) target = $region40
        $region39: #{forward.1} parent=11 // pred_region
          _
        $region40: #{forward.1} parent=11 // pred_fallthru
          _
        // Predicated region
        $region41: #{forward.1} parent=11 // pred_check
          %p466 = pneg %p220
        $region42: #{forward.1} parent=11 // pred_check_branch
          %468 = sbr.rel (%p466) target = $region44
        $region43: #{forward.1} parent=11 // pred_region
          %470 = vsyncadd [#allocation14], 0
          %s471 = sshll.u32 %s8, 4
          %s472 = int_to_ptr.hbm [resolvable:$true] %s471
          %s473 = sshll.u32 [#allocation15], 4
          %s474 = int_to_ptr.vmem [resolvable:$true] %s473
          %479 = dma.hbm_to_vmem [thread:$0]  %s472, 256, %s474, [#allocation14], 128, 128, 8
        $region44: #{forward.1} parent=11 // pred_fallthru
          _
        // Predicated region
        $region45: #{forward.1} parent=11 // pred_check
          %p480 = pneg %p241
        $region46: #{forward.1} parent=11 // pred_check_branch
          %482 = sbr.rel (%p480) target = $region48
        $region47: #{forward.1} parent=11 // pred_region
          _
        $region48: #{forward.1} parent=11 // pred_fallthru
          _
        // Predicated region
        $region49: #{forward.1} parent=11 // pred_check
          %p483 = pneg %p262
        $region50: #{forward.1} parent=11 // pred_check_branch
          %485 = sbr.rel (%p483) target = $region52
        $region51: #{forward.1} parent=11 // pred_region
          _
        $region52: #{forward.1} parent=11 // pred_fallthru
          _
        // Predicated region
        $region53: #{forward.1} parent=11 // pred_check
          %p486 = pneg %p283
        $region54: #{forward.1} parent=11 // pred_check_branch
          %488 = sbr.rel (%p486) target = $region56
        $region55: #{forward.1} parent=11 // pred_region
          %490 = vsyncadd [#allocation17], 0
          %s491 = sshll.u32 %s11, 4
          %s492 = int_to_ptr.hbm [resolvable:$true] %s491
          %s493 = sshll.u32 [#allocation16], 4
          %s494 = int_to_ptr.vmem [resolvable:$true] %s493
          %499 = dma.hbm_to_vmem [thread:$0]  %s492, 5248, %s494, [#allocation17], 128, 128, 8
        $region56: #{forward.1} parent=11 // pred_fallthru
          _
        // Predicated region
        $region57: #{forward.1} parent=11 // pred_check
          %p500 = pneg %p304
        $region58: #{forward.1} parent=11 // pred_check_branch
          %502 = sbr.rel (%p500) target = $region60
        $region59: #{forward.1} parent=11 // pred_region
          _
        $region60: #{forward.1} parent=11 // pred_fallthru
          _
        // Predicated region
        $region61: #{forward.1} parent=11 // pred_check
          %p503 = pneg %p325
        $region62: #{forward.1} parent=11 // pred_check_branch
          %505 = sbr.rel (%p503) target = $region64
        $region63: #{forward.1} parent=11 // pred_region
          %507 = vsyncadd [#allocation17], 0
          %s508 = sshll.u32 %s13, 4
          %s509 = int_to_ptr.hbm [resolvable:$true] %s508
          %s510 = sshll.u32 [#allocation18], 4
          %s511 = int_to_ptr.vmem [resolvable:$true] %s510
          %516 = dma.hbm_to_vmem [thread:$0]  %s509, 2560, %s511, [#allocation17], 128, 128, 8
        $region64: #{forward.1} parent=11 // pred_fallthru
          _
        // Predicated region
        $region65: #{forward.1} parent=11 // pred_check
          %p517 = pneg %p346
        $region66: #{forward.1} parent=11 // pred_check_branch
          %519 = sbr.rel (%p517) target = $region68
        $region67: #{forward.1} parent=11 // pred_region
          _
        $region68: #{forward.1} parent=11 // pred_fallthru
          _
      $region12: #{forward.1} parent=5 // pred_fallthru
        _
      %p520 = scmp.lt.s32.totalorder %s26, 2
      // Predicated region
      $region69: #{forward.1} parent=5 // pred_check
        %p521 = pneg %p520
      $region70: #{forward.1} parent=5 // pred_check_branch
        %523 = sbr.rel (%p521) target = $region72
      $region71: #{forward.1} parent=5 // pred_region
        // Predicated region
        $region73: #{forward.1} parent=71 // pred_check
          %p524 = pneg %p46
        $region74: #{forward.1} parent=71 // pred_check_branch
          %526 = sbr.rel (%p524) target = $region76
        $region75: #{forward.1} parent=71 // pred_region
          %p527 = scmp.lt.s32.totalorder %s26, 1
          %s528 = scalar_select %p527, %s26, 1
          %s529 = smul.addr %s528, 2
          %s530 = smul.addr %s529, 4
          %s531 = scalar_lea.vmem %s0, %s530
        $region76: #{forward.1} parent=71 // pred_fallthru
          _
      $region72: #{forward.1} parent=5 // pred_fallthru
        _
      %p532 = scmp.le.s32.totalorder 1, %s26
      %p533 = scmp.lt.s32.totalorder %s26, 3
      %p534 = pnand %p532, %p533
      %p535 = pneg %p534
      // Predicated region
      $region77: #{forward.1} parent=5 // pred_check
        _
      $region78: #{forward.1} parent=5 // pred_check_branch
        %537 = sbr.rel (%p534) target = $region80
      $region79: #{forward.1} parent=5 // pred_region
        %s538 = ssub.s32 %s26, 1
        // Predicated region
        $region81: #{forward.1} parent=79 // pred_check
          %p539 = pneg %p73
        $region82: #{forward.1} parent=79 // pred_check_branch
          %541 = sbr.rel (%p539) target = $region84
        $region83: #{forward.1} parent=79 // pred_region
          %543 = dma.done [#allocation6], 128
        $region84: #{forward.1} parent=79 // pred_fallthru
          _
        // Predicated region
        $region85: #{forward.1} parent=79 // pred_check
          %p544 = pneg %p94
        $region86: #{forward.1} parent=79 // pred_check_branch
          %546 = sbr.rel (%p544) target = $region88
        $region87: #{forward.1} parent=79 // pred_region
          %548 = dma.done [#allocation8], 128
        $region88: #{forward.1} parent=79 // pred_fallthru
          _
        // Predicated region
        $region89: #{forward.1} parent=79 // pred_check
          %p549 = pneg %p115
        $region90: #{forward.1} parent=79 // pred_check_branch
          %551 = sbr.rel (%p549) target = $region92
        $region91: #{forward.1} parent=79 // pred_region
          %553 = dma.done [#allocation8], 128
        $region92: #{forward.1} parent=79 // pred_fallthru
          _
        // Predicated region
        $region93: #{forward.1} parent=79 // pred_check
          %p554 = pneg %p136
        $region94: #{forward.1} parent=79 // pred_check_branch
          %556 = sbr.rel (%p554) target = $region96
        $region95: #{forward.1} parent=79 // pred_region
          %558 = dma.done [#allocation11], 128
        $region96: #{forward.1} parent=79 // pred_fallthru
          _
        // Predicated region
        $region97: #{forward.1} parent=79 // pred_check
          %p559 = pneg %p157
        $region98: #{forward.1} parent=79 // pred_check_branch
          %561 = sbr.rel (%p559) target = $region100
        $region99: #{forward.1} parent=79 // pred_region
          %563 = dma.done [#allocation11], 256
        $region100: #{forward.1} parent=79 // pred_fallthru
          _
        // Predicated region
        $region101: #{forward.1} parent=79 // pred_check
          %p564 = pneg %p178
        $region102: #{forward.1} parent=79 // pred_check_branch
          %566 = sbr.rel (%p564) target = $region104
        $region103: #{forward.1} parent=79 // pred_region
          %568 = dma.done [#allocation14], 256
        $region104: #{forward.1} parent=79 // pred_fallthru
          _
        // Predicated region
        $region105: #{forward.1} parent=79 // pred_check
          %p569 = pneg %p220
        $region106: #{forward.1} parent=79 // pred_check_branch
          %571 = sbr.rel (%p569) target = $region108
        $region107: #{forward.1} parent=79 // pred_region
          %573 = dma.done [#allocation14], 256
        $region108: #{forward.1} parent=79 // pred_fallthru
          _
        // Predicated region
        $region109: #{forward.1} parent=79 // pred_check
          %p574 = pneg %p283
        $region110: #{forward.1} parent=79 // pred_check_branch
          %576 = sbr.rel (%p574) target = $region112
        $region111: #{forward.1} parent=79 // pred_region
          %578 = dma.done [#allocation17], 5248
        $region112: #{forward.1} parent=79 // pred_fallthru
          _
        // Predicated region
        $region113: #{forward.1} parent=79 // pred_check
          %p579 = pneg %p325
        $region114: #{forward.1} parent=79 // pred_check_branch
          %581 = sbr.rel (%p579) target = $region116
        $region115: #{forward.1} parent=79 // pred_region
          %583 = dma.done [#allocation17], 2560
        $region116: #{forward.1} parent=79 // pred_fallthru
          _
        %p584 = scmp.lt.s32.totalorder %s31, 1
        %s585 = scalar_select %p584, %s31, 1
        %s586 = smul.addr %s585, 2
        %s587 = smul.addr %s586, 4
        %s588 = scalar_lea.vmem %s0, %s587
        %p589 = pneg %p52
        %p590 = pneg %p49
        %p591 = pneg %p73
        %p592 = pneg %p70
        %p593 = pneg %p94
        %p594 = pneg %p91
        %p595 = pneg %p115
        %p596 = pneg %p112
        %p597 = pneg %p136
        %p598 = pneg %p133
        %p599 = pneg %p157
        %p600 = pneg %p154
        %p601 = pneg %p178
        %p602 = pneg %p175
        %p603 = pneg %p199
        %p604 = pneg %p196
        %p605 = pneg %p220
        %p606 = pneg %p217
        %p607 = pneg %p241
        %p608 = pneg %p238
        %p609 = pneg %p262
        %p610 = pneg %p259
        %p611 = pneg %p283
        %p612 = pneg %p280
        %p613 = pneg %p304
        %p614 = pneg %p301
        %p615 = pneg %p325
        %p616 = pneg %p322
        %p617 = pneg %p346
        %p618 = pneg %p343
        %p619 = pneg %p372
        %p620 = pneg %p369
        %p621 = scmp.lt.s32.totalorder %s31, 1
        %s622 = scalar_select %p621, %s31, 1
        %s623 = smul.addr %s622, 2
        %s624 = smul.addr %s623, 8
        %s625 = scalar_lea.vmem %s15, %s624
        %p626 = scmp.lt.s32.totalorder %s31, 1
        %s627 = scalar_select %p626, %s31, 1
        %s628 = smul.addr %s627, 2
        %s629 = smul.addr %s628, 4
        %s630 = scalar_lea.vmem %s0, %s629
        %p631 = scmp.lt.s32.totalorder %s31, 1
        %s632 = scalar_select %p631, %s31, 1
        %s633 = smul.addr %s632, 2
        %s634 = smul.addr %s633, 8
        %s635 = scalar_lea.vmem %s15, %s634
        %636 = vst [vmem:[#allocation2] sm:$0xff] 0.0
        %637 = vst [vmem:[#allocation2 + $0x8] sm:$0xff] 0.0
        %vm638 = vcmask 867328
        %639 = vst.msk [vmem:[#allocation2 + $0x10] sm:$0xff] %vm638, 0.0
        %640 = vst [vmem:[#allocation2 + $0x18] sm:$0xff] 0.0
        %641 = vst [vmem:[#allocation2 + $0x20] sm:$0xff] 0.0
        %642 = vst.msk [vmem:[#allocation2 + $0x28] sm:$0xff] %vm638, 0.0
        %643 = vst [vmem:[#allocation3] sm:$0xff] 0.0
        %644 = vst [vmem:[#allocation3 + $0x8] sm:$0xff] 0.0
        %645 = vst.msk [vmem:[#allocation3 + $0x10] sm:$0xff] %vm638, 0.0
        %646 = vst [vmem:[#allocation3 + $0x18] sm:$0xff] 0.0
        %647 = vst [vmem:[#allocation3 + $0x20] sm:$0xff] 0.0
        %648 = vst.msk [vmem:[#allocation3 + $0x28] sm:$0xff] %vm638, 0.0
        %v649 = vld [vmem:[%s630] sm:$0xf]
        %651 = vst [vmem:[#allocation1] ss:$2 sm:$0xff] %v649
        %v652 = vld.sshfl [vmem:[#allocation1] sm:$0xff pattern:$0x75316420]
        %653 = vrot.lane.b32.xlu0 %v652, 38
        %v654 = vpop.permute.xlu0 %653
        %vm656 = vcmask 437552
        %657 = vst.msk [vmem:[#allocation2] sm:$0xf] %vm656, %v654
        %v658 = vld [vmem:[%s630] sm:$0xf]
        %660 = vst [vmem:[#allocation1] ss:$2 sm:$0xff] %v658
        %v661 = vld.sshfl [vmem:[#allocation1] sm:$0xff pattern:$0x75316420]
        %662 = vrot.lane.b32.xlu0 %v661, 40
        %v663 = vpop.permute.xlu0 %662
        %vm665 = vcmask 585152
        %666 = vst.msk [vmem:[#allocation2] sm:$0xf] %vm665, %v663
        %v667 = vld [vmem:[%s630] sm:$0xf]
        %669 = vst [vmem:[#allocation1] ss:$2 sm:$0xff] %v667
        %v670 = vld.sshfl [vmem:[#allocation1] sm:$0xff pattern:$0x75316420]
        %671 = vrot.lane.b32.xlu0 %v670, 42
        %v672 = vpop.permute.xlu0 %671
        %vm674 = vcmask 732752
        %675 = vst.msk [vmem:[#allocation2] sm:$0xf] %vm674, %v672
        %v676 = vld [vmem:[%s630] sm:$0xf]
        %678 = vst [vmem:[#allocation1] ss:$2 sm:$0xff] %v676
        %v679 = vld.sshfl [vmem:[#allocation1] sm:$0xff pattern:$0x75316420]
        %680 = vrot.lane.b32.xlu0 %v679, 44
        %v681 = vpop.permute.xlu0 %680
        %vm683 = vcmask 880352
        %684 = vst.msk [vmem:[#allocation2] sm:$0xf] %vm683, %v681
        %v685 = vld [vmem:[%s630] sm:$0xf]
        %687 = vst [vmem:[#allocation1] ss:$2 sm:$0xff] %v685
        %v688 = vld.sshfl [vmem:[#allocation1] sm:$0xff pattern:$0x75316420]
        %689 = vrot.lane.b32.xlu0 %v688, 46
        %v690 = vpop.permute.xlu0 %689
        %vm692 = vcmask 1027952
        %693 = vst.msk [vmem:[#allocation2] sm:$0xf] %vm692, %v690
        %v694 = vld [vmem:[%s630] sm:$0xf]
        %696 = vst [vmem:[#allocation1] ss:$2 sm:$0xff] %v694
        %v697 = vld.sshfl [vmem:[#allocation1] sm:$0xff pattern:$0x75316420]
        %698 = vrot.lane.b32.xlu0 %v697, 48
        %v699 = vpop.permute.xlu0 %698
        %vm701 = vcmask 125952
        %702 = vst.msk [vmem:[#allocation2 + $0x8] sm:$0xf] %vm701, %v699
        %v703 = vld [vmem:[%s630] sm:$0xf]
        %705 = vst [vmem:[#allocation1] ss:$2 sm:$0xff] %v703
        %v706 = vld.sshfl [vmem:[#allocation1] sm:$0xff pattern:$0x75316420]
        %707 = vrot.lane.b32.xlu0 %v706, 50
        %v708 = vpop.permute.xlu0 %707
        %vm710 = vcmask 273552
        %711 = vst.msk [vmem:[#allocation2 + $0x8] sm:$0xf] %vm710, %v708
        %v712 = vld [vmem:[%s630] sm:$0xf]
        %714 = vst [vmem:[#allocation1] ss:$2 sm:$0xff] %v712
        %v715 = vld.sshfl [vmem:[#allocation1] sm:$0xff pattern:$0x75316420]
        %716 = vrot.lane.b32.xlu0 %v715, 52
        %v717 = vpop.permute.xlu0 %716
        %vm719 = vcmask 421152
        %720 = vst.msk [vmem:[#allocation2 + $0x8] sm:$0xf] %vm719, %v717
        %v721 = vld [vmem:[%s630 + $0x4] sm:$0xf]
        %723 = vst [vmem:[#allocation1] ss:$2 sm:$0xff] %v721
        %v724 = vld.sshfl [vmem:[#allocation1] sm:$0xff pattern:$0x75316420]
        %725 = vrot.lane.b32.xlu0 %v724, 54
        %v726 = vpop.permute.xlu0 %725
        %vm728 = vcmask 568752
        %729 = vst.msk [vmem:[#allocation2 + $0x8] sm:$0xf] %vm728, %v726
        %v730 = vld [vmem:[%s630 + $0x4] sm:$0xf]
        %732 = vst [vmem:[#allocation1] ss:$2 sm:$0xff] %v730
        %v733 = vld.sshfl [vmem:[#allocation1] sm:$0xff pattern:$0x75316420]
        %734 = vrot.lane.b32.xlu0 %v733, 56
        %v735 = vpop.permute.xlu0 %734
        %vm737 = vcmask 716352
        %738 = vst.msk [vmem:[#allocation2 + $0x8] sm:$0xf] %vm737, %v735
        %v739 = vld [vmem:[%s630 + $0x4] sm:$0xf]
        %741 = vst [vmem:[#allocation1] ss:$2 sm:$0xff] %v739
        %v742 = vld.sshfl [vmem:[#allocation1] sm:$0xff pattern:$0x75316420]
        %743 = vrot.lane.b32.xlu0 %v742, 58
        %v744 = vpop.permute.xlu0 %743
        %vm746 = vcmask 863952
        %747 = vst.msk [vmem:[#allocation2 + $0x8] sm:$0xf] %vm746, %v744
        %v748 = vld [vmem:[%s630 + $0x4] sm:$0xf]
        %750 = vst [vmem:[#allocation1] ss:$2 sm:$0xff] %v748
        %v751 = vld.sshfl [vmem:[#allocation1] sm:$0xff pattern:$0x75316420]
        %752 = vrot.lane.b32.xlu0 %v751, 60
        %v753 = vpop.permute.xlu0 %752
        %vm755 = vcmask 1011552
        %756 = vst.msk [vmem:[#allocation2 + $0x8] sm:$0xf] %vm755, %v753
        %v757 = vld [vmem:[%s630 + $0x4] sm:$0xf]
        %759 = vst [vmem:[#allocation1] ss:$2 sm:$0xff] %v757
        %v760 = vld.sshfl [vmem:[#allocation1] sm:$0xff pattern:$0x75316420]
        %761 = vrot.lane.b32.xlu0 %v760, 62
        %v762 = vpop.permute.xlu0 %761
        %vm764 = vcmask 1044464
        %765 = vst.msk [vmem:[#allocation2 + $0x8] sm:$0xf] %vm764, %v762
        %vm766 = vcmask 109568
        %767 = vst.msk [vmem:[#allocation2 + $0x10] sm:$0xf] %vm766, %v762
        %v768 = vld [vmem:[%s630 + $0x4] sm:$0xf]
        %770 = vst [vmem:[#allocation1] ss:$2 sm:$0xff] %v768
        %v771 = vld.sshfl [vmem:[#allocation1] sm:$0xff pattern:$0x75316420]
        %772 = vrot.lane.b32.xlu0 %v771, 64
        %v773 = vpop.permute.xlu0 %772
        %vm775 = vcmask 257152
        %776 = vst.msk [vmem:[#allocation2 + $0x10] sm:$0xf] %vm775, %v773
        %v777 = vld [vmem:[%s630 + $0x4] sm:$0xf]
        %779 = vst [vmem:[#allocation1] ss:$2 sm:$0xff] %v777
        %v780 = vld.sshfl [vmem:[#allocation1] sm:$0xff pattern:$0x75316420]
        %781 = vrot.lane.b32.xlu0 %v780, 66
        %v782 = vpop.permute.xlu0 %781
        %vm784 = vcmask 404752
        %785 = vst.msk [vmem:[#allocation2 + $0x10] sm:$0xf] %vm784, %v782
        %v786 = vld [vmem:[%s630 + $0x4] sm:$0xf]
        %788 = vst [vmem:[#allocation1] ss:$2 sm:$0xff] %v786
        %v789 = vld.sshfl [vmem:[#allocation1] sm:$0xff pattern:$0x75316420]
        %790 = vrot.lane.b32.xlu0 %v789, 68
        %v791 = vpop.permute.xlu0 %790
        %vm793 = vcmask 552352
        %794 = vst.msk [vmem:[#allocation2 + $0x10] sm:$0xf] %vm793, %v791
        %v795 = vld [vmem:[#allocation2] sm:$0xff]
        %v796 = vld [vmem:[#allocation2 + $0x8] sm:$0xff]
        %v797 = vld [vmem:[#allocation2 + $0x10] sm:$0xff]
        %798 = vst [vmem:[#allocation4] sm:$0xff] %v795
        %799 = vst [vmem:[#allocation4 + $0x8] sm:$0xff] %v796
        %vm800 = vcmask 556032
        %801 = vst.msk [vmem:[#allocation4 + $0x10] sm:$0xff] %vm800, %v797
        %v802 = vld [vmem:[#allocation2] sm:$0xff]
        %v803 = vld [vmem:[#allocation2 + $0x8] sm:$0xff]
        %v804 = vld [vmem:[#allocation2 + $0x10] sm:$0xff]
        %808 = vrot.lane.b32.xlu0 %v802, 127
        %v809 = vpop.permute.xlu0 %808
        %810 = vrot.lane.b32.xlu0 %v803, 127
        %v811 = vpop.permute.xlu0 %810
        %812 = vrot.lane.b32.xlu0 %v804, 127
        %v813 = vpop.permute.xlu0 %812
        %vm814 = vcmask 1039360
        %v815 = vsel %vm814, %v809, %v811
        %v816 = vsel %vm814, %v811, %v813
        %820 = vst [vmem:[#allocation4 + $0x18] sm:$0xff] %v815
        %821 = vst [vmem:[#allocation4 + $0x20] sm:$0xff] %v816
        %822 = vst.msk [vmem:[#allocation4 + $0x28] sm:$0xff] %vm800, %v813
        %v823 = vld [vmem:[#allocation2] sm:$0xff]
        %v824 = vld [vmem:[#allocation2 + $0x8] sm:$0xff]
        %v825 = vld [vmem:[#allocation2 + $0x10] sm:$0xff]
        %829 = vrot.lane.b32.xlu0 %v823, 126
        %v830 = vpop.permute.xlu0 %829
        %831 = vrot.lane.b32.xlu0 %v824, 126
        %v832 = vpop.permute.xlu0 %831
        %833 = vrot.lane.b32.xlu0 %v825, 126
        %v834 = vpop.permute.xlu0 %833
        %vm835 = vcmask 1031168
        %v836 = vsel %vm835, %v830, %v832
        %v837 = vsel %vm835, %v832, %v834
        %841 = vst [vmem:[#allocation4 + $0x30] sm:$0xff] %v836
        %842 = vst [vmem:[#allocation4 + $0x38] sm:$0xff] %v837
        %843 = vst.msk [vmem:[#allocation4 + $0x40] sm:$0xff] %vm800, %v834
        %v844 = vld [vmem:[#allocation2] sm:$0xff]
        %v845 = vld [vmem:[#allocation2 + $0x8] sm:$0xff]
        %v846 = vld [vmem:[#allocation2 + $0x10] sm:$0xff]
        %850 = vrot.lane.b32.xlu0 %v844, 110
        %v851 = vpop.permute.xlu0 %850
        %852 = vrot.lane.b32.xlu0 %v845, 110
        %v853 = vpop.permute.xlu0 %852
        %854 = vrot.lane.b32.xlu0 %v846, 110
        %v855 = vpop.permute.xlu0 %854
        %vm856 = vcmask 900096
        %v857 = vsel %vm856, %v851, %v853
        %v858 = vsel %vm856, %v853, %v855
        %862 = vst [vmem:[#allocation4 + $0x48] sm:$0xff] %v857
        %863 = vst [vmem:[#allocation4 + $0x50] sm:$0xff] %v858
        %864 = vst.msk [vmem:[#allocation4 + $0x58] sm:$0xff] %vm800, %v855
        %v865 = vld [vmem:[#allocation2] sm:$0xff]
        %v866 = vld [vmem:[#allocation2 + $0x8] sm:$0xff]
        %v867 = vld [vmem:[#allocation2 + $0x10] sm:$0xff]
        %871 = vrot.lane.b32.xlu0 %v865, 109
        %v872 = vpop.permute.xlu0 %871
        %873 = vrot.lane.b32.xlu0 %v866, 109
        %v874 = vpop.permute.xlu0 %873
        %875 = vrot.lane.b32.xlu0 %v867, 109
        %v876 = vpop.permute.xlu0 %875
        %vm877 = vcmask 891904
        %v878 = vsel %vm877, %v872, %v874
        %v879 = vsel %vm877, %v874, %v876
        %883 = vst [vmem:[#allocation4 + $0x60] sm:$0xff] %v878
        %884 = vst [vmem:[#allocation4 + $0x68] sm:$0xff] %v879
        %885 = vst.msk [vmem:[#allocation4 + $0x70] sm:$0xff] %vm800, %v876
        %v886 = vld [vmem:[#allocation2] sm:$0xff]
        %v887 = vld [vmem:[#allocation2 + $0x8] sm:$0xff]
        %v888 = vld [vmem:[#allocation2 + $0x10] sm:$0xff]
        %892 = vrot.lane.b32.xlu0 %v886, 108
        %v893 = vpop.permute.xlu0 %892
        %894 = vrot.lane.b32.xlu0 %v887, 108
        %v895 = vpop.permute.xlu0 %894
        %896 = vrot.lane.b32.xlu0 %v888, 108
        %v897 = vpop.permute.xlu0 %896
        %vm898 = vcmask 883712
        %v899 = vsel %vm898, %v893, %v895
        %v900 = vsel %vm898, %v895, %v897
        %904 = vst [vmem:[#allocation4 + $0x78] sm:$0xff] %v899
        %905 = vst [vmem:[#allocation4 + $0x80] sm:$0xff] %v900
        %906 = vst.msk [vmem:[#allocation4 + $0x88] sm:$0xff] %vm800, %v897
        %v907 = vld [vmem:[#allocation2] sm:$0xff]
        %v908 = vld [vmem:[#allocation2 + $0x8] sm:$0xff]
        %v909 = vld [vmem:[#allocation2 + $0x10] sm:$0xff]
        %913 = vrot.lane.b32.xlu0 %v907, 92
        %v914 = vpop.permute.xlu0 %913
        %915 = vrot.lane.b32.xlu0 %v908, 92
        %v916 = vpop.permute.xlu0 %915
        %917 = vrot.lane.b32.xlu0 %v909, 92
        %v918 = vpop.permute.xlu0 %917
        %vm919 = vcmask 752640
        %v920 = vsel %vm919, %v914, %v916
        %v921 = vsel %vm919, %v916, %v918
        %925 = vst [vmem:[#allocation4 + $0x90] sm:$0xff] %v920
        %926 = vst [vmem:[#allocation4 + $0x98] sm:$0xff] %v921
        %927 = vst.msk [vmem:[#allocation4 + $0xa0] sm:$0xff] %vm800, %v918
        %v928 = vld [vmem:[#allocation2] sm:$0xff]
        %v929 = vld [vmem:[#allocation2 + $0x8] sm:$0xff]
        %v930 = vld [vmem:[#allocation2 + $0x10] sm:$0xff]
        %934 = vrot.lane.b32.xlu0 %v928, 91
        %v935 = vpop.permute.xlu0 %934
        %936 = vrot.lane.b32.xlu0 %v929, 91
        %v937 = vpop.permute.xlu0 %936
        %938 = vrot.lane.b32.xlu0 %v930, 91
        %v939 = vpop.permute.xlu0 %938
        %vm940 = vcmask 744448
        %v941 = vsel %vm940, %v935, %v937
        %v942 = vsel %vm940, %v937, %v939
        %946 = vst [vmem:[#allocation4 + $0xa8] sm:$0xff] %v941
        %947 = vst [vmem:[#allocation4 + $0xb0] sm:$0xff] %v942
        %948 = vst.msk [vmem:[#allocation4 + $0xb8] sm:$0xff] %vm800, %v939
        %v949 = vld [vmem:[#allocation2] sm:$0xff]
        %v950 = vld [vmem:[#allocation2 + $0x8] sm:$0xff]
        %v951 = vld [vmem:[#allocation2 + $0x10] sm:$0xff]
        %955 = vrot.lane.b32.xlu0 %v949, 90
        %v956 = vpop.permute.xlu0 %955
        %957 = vrot.lane.b32.xlu0 %v950, 90
        %v958 = vpop.permute.xlu0 %957
        %959 = vrot.lane.b32.xlu0 %v951, 90
        %v960 = vpop.permute.xlu0 %959
        %vm961 = vcmask 736256
        %v962 = vsel %vm961, %v956, %v958
        %v963 = vsel %vm961, %v958, %v960
        %967 = vst [vmem:[#allocation4 + $0xc0] sm:$0xff] %v962
        %968 = vst [vmem:[#allocation4 + $0xc8] sm:$0xff] %v963
        %969 = vst.msk [vmem:[#allocation4 + $0xd0] sm:$0xff] %vm800, %v960
        %v970 = vld [vmem:[#allocation5] sm:$0xff]
        %v971 = vld [vmem:[#allocation4] sm:$0xff]
        %v972 = vld [vmem:[#allocation4 + $0x8] sm:$0xff]
        %v973 = vld [vmem:[#allocation4 + $0x10] sm:$0xff]
        %v974 = vld [vmem:[#allocation4 + $0x18] sm:$0xff]
        %v975 = vld [vmem:[#allocation4 + $0x20] sm:$0xff]
        %v976 = vld [vmem:[#allocation4 + $0x28] sm:$0xff]
        %v977 = vld [vmem:[#allocation4 + $0x30] sm:$0xff]
        %v978 = vld [vmem:[#allocation4 + $0x38] sm:$0xff]
        %v979 = vld [vmem:[#allocation4 + $0x40] sm:$0xff]
        %v980 = vld [vmem:[#allocation4 + $0x48] sm:$0xff]
        %v981 = vld [vmem:[#allocation4 + $0x50] sm:$0xff]
        %v982 = vld [vmem:[#allocation4 + $0x58] sm:$0xff]
        %v983 = vld [vmem:[#allocation4 + $0x60] sm:$0xff]
        %v984 = vld [vmem:[#allocation4 + $0x68] sm:$0xff]
        %v985 = vld [vmem:[#allocation4 + $0x70] sm:$0xff]
        %v986 = vld [vmem:[#allocation4 + $0x78] sm:$0xff]
        %v987 = vld [vmem:[#allocation4 + $0x80] sm:$0xff]
        %v988 = vld [vmem:[#allocation4 + $0x88] sm:$0xff]
        %v989 = vld [vmem:[#allocation4 + $0x90] sm:$0xff]
        %v990 = vld [vmem:[#allocation4 + $0x98] sm:$0xff]
        %v991 = vld [vmem:[#allocation4 + $0xa0] sm:$0xff]
        %v992 = vld [vmem:[#allocation4 + $0xa8] sm:$0xff]
        %v993 = vld [vmem:[#allocation4 + $0xb0] sm:$0xff]
        %v994 = vld [vmem:[#allocation4 + $0xb8] sm:$0xff]
        %v995 = vld [vmem:[#allocation4 + $0xc0] sm:$0xff]
        %v996 = vld [vmem:[#allocation4 + $0xc8] sm:$0xff]
        %v997 = vld [vmem:[#allocation4 + $0xd0] sm:$0xff]
        %v998 = vld [vmem:[#allocation7] sm:$0xff]
        %1000 = vset.pattern.permute.xlu0 0
        %1001 = vperm.xlu0 %1000, %v998
        %v1002 = vpop.permute.xlu0 %1001
        %vm1004 = vcmask 588800
        %v1006 = vsel %vm1004, %v970, 0
        %1008 = vmatpush.msra.mxu0 0.0
        %1009 = vmatpush.msra.mxu0 0.0
        %1010 = vmatpush.msra.mxu0 0.0
        %1011 = vmatpush.msra.mxu0 0.0
        %1012 = vmatpush.msra.mxu0 0.0
        %1013 = vmatpush.msra.mxu0 0.0
        %1014 = vmatpush.msra.mxu0 0.0
        %1015 = vmatpush.msra.mxu0 %v995
        %1016 = vmatpush.msra.mxu0 %v992
        %1017 = vmatpush.msra.mxu0 %v989
        %1018 = vmatpush.msra.mxu0 %v986
        %1019 = vmatpush.msra.mxu0 %v983
        %1020 = vmatpush.msra.mxu0 %v980
        %1021 = vmatpush.msra.mxu0 %v977
        %1022 = vmatpush.msra.mxu0 %v974
        %1023 = vmatpush.msra.mxu0 %v971
        %1024 = vmatmul.f32.gmra.mxu0 %v1006
        %v1025 = vpop.f32.mrf.mxu0
        %v1026 = vadd.f32 %v1002, %v1025
        %1027 = vdwg.mxu0
        %1028 = vmatpush.msra.mxu0 0.0
        %1029 = vmatpush.msra.mxu0 0.0
        %1030 = vmatpush.msra.mxu0 0.0
        %1031 = vmatpush.msra.mxu0 0.0
        %1032 = vmatpush.msra.mxu0 0.0
        %1033 = vmatpush.msra.mxu0 0.0
        %1034 = vmatpush.msra.mxu0 0.0
        %1035 = vmatpush.msra.mxu0 %v996
        %1036 = vmatpush.msra.mxu0 %v993
        %1037 = vmatpush.msra.mxu0 %v990
        %1038 = vmatpush.msra.mxu0 %v987
        %1039 = vmatpush.msra.mxu0 %v984
        %1040 = vmatpush.msra.mxu0 %v981
        %1041 = vmatpush.msra.mxu0 %v978
        %1042 = vmatpush.msra.mxu0 %v975
        %1043 = vmatpush.msra.mxu0 %v972
        %1044 = vmatmul.f32.gmra.mxu0 %v1006
        %v1045 = vpop.f32.mrf.mxu0
        %v1046 = vadd.f32 %v1002, %v1045
        %1047 = vdwg.mxu0
        %1048 = vmatpush.msra.mxu0 0.0
        %1049 = vmatpush.msra.mxu0 0.0
        %1050 = vmatpush.msra.mxu0 0.0
        %1051 = vmatpush.msra.mxu0 0.0
        %1052 = vmatpush.msra.mxu0 0.0
        %1053 = vmatpush.msra.mxu0 0.0
        %1054 = vmatpush.msra.mxu0 0.0
        %1055 = vmatpush.msra.mxu0 %v997
        %1056 = vmatpush.msra.mxu0 %v994
        %1057 = vmatpush.msra.mxu0 %v991
        %1058 = vmatpush.msra.mxu0 %v988
        %1059 = vmatpush.msra.mxu0 %v985
        %1060 = vmatpush.msra.mxu0 %v982
        %1061 = vmatpush.msra.mxu0 %v979
        %1062 = vmatpush.msra.mxu0 %v976
        %1063 = vmatpush.msra.mxu0 %v973
        %1064 = vmatmul.f32.gmra.mxu0 %v1006
        %v1065 = vpop.f32.mrf.mxu0
        %v1066 = vadd.f32 %v1002, %v1065
        %1067 = vdwg.mxu0
        %v1068 = vmax.f32 %v1026, 0.0
        %v1069 = vmax.f32 %v1046, 0.0
        %v1070 = vmax.f32 %v1066, 0.0
        %v1071 = vld [vmem:[%s9] sm:$0x7]
        %vm1072 = vcmp.gt.f32.partialorder %v1071, 0.5
        %v1073 = vsel %vm1072, 1, 0
        %v1074 = vperm.slane %v1073, 0
        %v1075 = vperm.slane %v1073, 1
        %v1076 = vperm.slane %v1073, 2
        %vm1077 = vcmp.eq.s32.totalorder %v1074, 1
        %vm1078 = vcmp.eq.s32.totalorder %v1075, 1
        %vm1079 = vcmp.eq.s32.totalorder %v1076, 1
        %v1080 = vsel %vm1077, %v1068, 0.0
        %v1081 = vsel %vm1078, %v1069, 0.0
        %v1082 = vsel %vm1079, %v1070, 0.0
        %1086 = vrot.lane.b32.xlu0 %v1080, 19
        %v1087 = vpop.permute.xlu0 %1086
        %1088 = vrot.lane.b32.xlu0 %v1081, 19
        %v1089 = vpop.permute.xlu0 %1088
        %1090 = vrot.lane.b32.xlu0 %v1082, 19
        %v1091 = vpop.permute.xlu0 %1090
        %vm1092 = vcmask 154624
        %v1093 = vsel %vm1092, %v1087, %v1089
        %v1094 = vsel %vm1092, %v1089, %v1091
        %vm1098 = vcmask 1047704
        %1099 = vst.msk [vmem:[#allocation3] sm:$0xff] %vm1098, %v1087
        %1100 = vst [vmem:[#allocation3 + $0x8] sm:$0xff] %v1093
        %vm1101 = vcmask 711680
        %1102 = vst.msk [vmem:[#allocation3 + $0x10] sm:$0xff] %vm1101, %v1094
        %v1103 = vld [vmem:[#allocation3] sm:$0xff]
        %v1104 = vld [vmem:[#allocation3 + $0x8] sm:$0xff]
        %v1105 = vld [vmem:[#allocation3 + $0x10] sm:$0xff]
        %1106 = vst [vmem:[#allocation4] sm:$0xff] %v1103
        %1107 = vst [vmem:[#allocation4 + $0x8] sm:$0xff] %v1104
        %1108 = vst.msk [vmem:[#allocation4 + $0x10] sm:$0xff] %vm800, %v1105
        %v1109 = vld [vmem:[#allocation3] sm:$0xff]
        %v1110 = vld [vmem:[#allocation3 + $0x8] sm:$0xff]
        %v1111 = vld [vmem:[#allocation3 + $0x10] sm:$0xff]
        %1115 = vrot.lane.b32.xlu0 %v1109, 127
        %v1116 = vpop.permute.xlu0 %1115
        %1117 = vrot.lane.b32.xlu0 %v1110, 127
        %v1118 = vpop.permute.xlu0 %1117
        %1119 = vrot.lane.b32.xlu0 %v1111, 127
        %v1120 = vpop.permute.xlu0 %1119
        %v1121 = vsel %vm814, %v1116, %v1118
        %v1122 = vsel %vm814, %v1118, %v1120
        %1126 = vst [vmem:[#allocation4 + $0x18] sm:$0xff] %v1121
        %1127 = vst [vmem:[#allocation4 + $0x20] sm:$0xff] %v1122
        %1128 = vst.msk [vmem:[#allocation4 + $0x28] sm:$0xff] %vm800, %v1120
        %v1129 = vld [vmem:[#allocation3] sm:$0xff]
        %v1130 = vld [vmem:[#allocation3 + $0x8] sm:$0xff]
        %v1131 = vld [vmem:[#allocation3 + $0x10] sm:$0xff]
        %1135 = vrot.lane.b32.xlu0 %v1129, 126
        %v1136 = vpop.permute.xlu0 %1135
        %1137 = vrot.lane.b32.xlu0 %v1130, 126
        %v1138 = vpop.permute.xlu0 %1137
        %1139 = vrot.lane.b32.xlu0 %v1131, 126
        %v1140 = vpop.permute.xlu0 %1139
        %v1141 = vsel %vm835, %v1136, %v1138
        %v1142 = vsel %vm835, %v1138, %v1140
        %1146 = vst [vmem:[#allocation4 + $0x30] sm:$0xff] %v1141
        %1147 = vst [vmem:[#allocation4 + $0x38] sm:$0xff] %v1142
        %1148 = vst.msk [vmem:[#allocation4 + $0x40] sm:$0xff] %vm800, %v1140
        %v1149 = vld [vmem:[#allocation3] sm:$0xff]
        %v1150 = vld [vmem:[#allocation3 + $0x8] sm:$0xff]
        %v1151 = vld [vmem:[#allocation3 + $0x10] sm:$0xff]
        %1155 = vrot.lane.b32.xlu0 %v1149, 110
        %v1156 = vpop.permute.xlu0 %1155
        %1157 = vrot.lane.b32.xlu0 %v1150, 110
        %v1158 = vpop.permute.xlu0 %1157
        %1159 = vrot.lane.b32.xlu0 %v1151, 110
        %v1160 = vpop.permute.xlu0 %1159
        %v1161 = vsel %vm856, %v1156, %v1158
        %v1162 = vsel %vm856, %v1158, %v1160
        %1166 = vst [vmem:[#allocation4 + $0x48] sm:$0xff] %v1161
        %1167 = vst [vmem:[#allocation4 + $0x50] sm:$0xff] %v1162
        %1168 = vst.msk [vmem:[#allocation4 + $0x58] sm:$0xff] %vm800, %v1160
        %v1169 = vld [vmem:[#allocation3] sm:$0xff]
        %v1170 = vld [vmem:[#allocation3 + $0x8] sm:$0xff]
        %v1171 = vld [vmem:[#allocation3 + $0x10] sm:$0xff]
        %1175 = vrot.lane.b32.xlu0 %v1169, 109
        %v1176 = vpop.permute.xlu0 %1175
        %1177 = vrot.lane.b32.xlu0 %v1170, 109
        %v1178 = vpop.permute.xlu0 %1177
        %1179 = vrot.lane.b32.xlu0 %v1171, 109
        %v1180 = vpop.permute.xlu0 %1179
        %v1181 = vsel %vm877, %v1176, %v1178
        %v1182 = vsel %vm877, %v1178, %v1180
        %1186 = vst [vmem:[#allocation4 + $0x60] sm:$0xff] %v1181
        %1187 = vst [vmem:[#allocation4 + $0x68] sm:$0xff] %v1182
        %1188 = vst.msk [vmem:[#allocation4 + $0x70] sm:$0xff] %vm800, %v1180
        %v1189 = vld [vmem:[#allocation3] sm:$0xff]
        %v1190 = vld [vmem:[#allocation3 + $0x8] sm:$0xff]
        %v1191 = vld [vmem:[#allocation3 + $0x10] sm:$0xff]
        %1195 = vrot.lane.b32.xlu0 %v1189, 108
        %v1196 = vpop.permute.xlu0 %1195
        %1197 = vrot.lane.b32.xlu0 %v1190, 108
        %v1198 = vpop.permute.xlu0 %1197
        %1199 = vrot.lane.b32.xlu0 %v1191, 108
        %v1200 = vpop.permute.xlu0 %1199
        %v1201 = vsel %vm898, %v1196, %v1198
        %v1202 = vsel %vm898, %v1198, %v1200
        %1206 = vst [vmem:[#allocation4 + $0x78] sm:$0xff] %v1201
        %1207 = vst [vmem:[#allocation4 + $0x80] sm:$0xff] %v1202
        %1208 = vst.msk [vmem:[#allocation4 + $0x88] sm:$0xff] %vm800, %v1200
        %v1209 = vld [vmem:[#allocation3] sm:$0xff]
        %v1210 = vld [vmem:[#allocation3 + $0x8] sm:$0xff]
        %v1211 = vld [vmem:[#allocation3 + $0x10] sm:$0xff]
        %1215 = vrot.lane.b32.xlu0 %v1209, 92
        %v1216 = vpop.permute.xlu0 %1215
        %1217 = vrot.lane.b32.xlu0 %v1210, 92
        %v1218 = vpop.permute.xlu0 %1217
        %1219 = vrot.lane.b32.xlu0 %v1211, 92
        %v1220 = vpop.permute.xlu0 %1219
        %v1221 = vsel %vm919, %v1216, %v1218
        %v1222 = vsel %vm919, %v1218, %v1220
        %1226 = vst [vmem:[#allocation4 + $0x90] sm:$0xff] %v1221
        %1227 = vst [vmem:[#allocation4 + $0x98] sm:$0xff] %v1222
        %1228 = vst.msk [vmem:[#allocation4 + $0xa0] sm:$0xff] %vm800, %v1220
        %v1229 = vld [vmem:[#allocation3] sm:$0xff]
        %v1230 = vld [vmem:[#allocation3 + $0x8] sm:$0xff]
        %v1231 = vld [vmem:[#allocation3 + $0x10] sm:$0xff]
        %1235 = vrot.lane.b32.xlu0 %v1229, 91
        %v1236 = vpop.permute.xlu0 %1235
        %1237 = vrot.lane.b32.xlu0 %v1230, 91
        %v1238 = vpop.permute.xlu0 %1237
        %1239 = vrot.lane.b32.xlu0 %v1231, 91
        %v1240 = vpop.permute.xlu0 %1239
        %v1241 = vsel %vm940, %v1236, %v1238
        %v1242 = vsel %vm940, %v1238, %v1240
        %1246 = vst [vmem:[#allocation4 + $0xa8] sm:$0xff] %v1241
        %1247 = vst [vmem:[#allocation4 + $0xb0] sm:$0xff] %v1242
        %1248 = vst.msk [vmem:[#allocation4 + $0xb8] sm:$0xff] %vm800, %v1240
        %v1249 = vld [vmem:[#allocation3] sm:$0xff]
        %v1250 = vld [vmem:[#allocation3 + $0x8] sm:$0xff]
        %v1251 = vld [vmem:[#allocation3 + $0x10] sm:$0xff]
        %1255 = vrot.lane.b32.xlu0 %v1249, 90
        %v1256 = vpop.permute.xlu0 %1255
        %1257 = vrot.lane.b32.xlu0 %v1250, 90
        %v1258 = vpop.permute.xlu0 %1257
        %1259 = vrot.lane.b32.xlu0 %v1251, 90
        %v1260 = vpop.permute.xlu0 %1259
        %v1261 = vsel %vm961, %v1256, %v1258
        %v1262 = vsel %vm961, %v1258, %v1260
        %1266 = vst [vmem:[#allocation4 + $0xc0] sm:$0xff] %v1261
        %1267 = vst [vmem:[#allocation4 + $0xc8] sm:$0xff] %v1262
        %1268 = vst.msk [vmem:[#allocation4 + $0xd0] sm:$0xff] %vm800, %v1260
        %v1269 = vld [vmem:[#allocation9] sm:$0xff]
        %v1270 = vld [vmem:[#allocation4] sm:$0xff]
        %v1271 = vld [vmem:[#allocation4 + $0x8] sm:$0xff]
        %v1272 = vld [vmem:[#allocation4 + $0x10] sm:$0xff]
        %v1273 = vld [vmem:[#allocation4 + $0x18] sm:$0xff]
        %v1274 = vld [vmem:[#allocation4 + $0x20] sm:$0xff]
        %v1275 = vld [vmem:[#allocation4 + $0x28] sm:$0xff]
        %v1276 = vld [vmem:[#allocation4 + $0x30] sm:$0xff]
        %v1277 = vld [vmem:[#allocation4 + $0x38] sm:$0xff]
        %v1278 = vld [vmem:[#allocation4 + $0x40] sm:$0xff]
        %v1279 = vld [vmem:[#allocation4 + $0x48] sm:$0xff]
        %v1280 = vld [vmem:[#allocation4 + $0x50] sm:$0xff]
        %v1281 = vld [vmem:[#allocation4 + $0x58] sm:$0xff]
        %v1282 = vld [vmem:[#allocation4 + $0x60] sm:$0xff]
        %v1283 = vld [vmem:[#allocation4 + $0x68] sm:$0xff]
        %v1284 = vld [vmem:[#allocation4 + $0x70] sm:$0xff]
        %v1285 = vld [vmem:[#allocation4 + $0x78] sm:$0xff]
        %v1286 = vld [vmem:[#allocation4 + $0x80] sm:$0xff]
        %v1287 = vld [vmem:[#allocation4 + $0x88] sm:$0xff]
        %v1288 = vld [vmem:[#allocation4 + $0x90] sm:$0xff]
        %v1289 = vld [vmem:[#allocation4 + $0x98] sm:$0xff]
        %v1290 = vld [vmem:[#allocation4 + $0xa0] sm:$0xff]
        %v1291 = vld [vmem:[#allocation4 + $0xa8] sm:$0xff]
        %v1292 = vld [vmem:[#allocation4 + $0xb0] sm:$0xff]
        %v1293 = vld [vmem:[#allocation4 + $0xb8] sm:$0xff]
        %v1294 = vld [vmem:[#allocation4 + $0xc0] sm:$0xff]
        %v1295 = vld [vmem:[#allocation4 + $0xc8] sm:$0xff]
        %v1296 = vld [vmem:[#allocation4 + $0xd0] sm:$0xff]
        %v1297 = vld [vmem:[#allocation10] sm:$0xff]
        %1299 = vset.pattern.permute.xlu0 0
        %1300 = vperm.xlu0 %1299, %v1297
        %v1301 = vpop.permute.xlu0 %1300
        %v1304 = vsel %vm1004, %v1269, 0
        %1306 = vmatpush.msra.mxu0 0.0
        %1307 = vmatpush.msra.mxu0 0.0
        %1308 = vmatpush.msra.mxu0 0.0
        %1309 = vmatpush.msra.mxu0 0.0
        %1310 = vmatpush.msra.mxu0 0.0
        %1311 = vmatpush.msra.mxu0 0.0
        %1312 = vmatpush.msra.mxu0 0.0
        %1313 = vmatpush.msra.mxu0 %v1294
        %1314 = vmatpush.msra.mxu0 %v1291
        %1315 = vmatpush.msra.mxu0 %v1288
        %1316 = vmatpush.msra.mxu0 %v1285
        %1317 = vmatpush.msra.mxu0 %v1282
        %1318 = vmatpush.msra.mxu0 %v1279
        %1319 = vmatpush.msra.mxu0 %v1276
        %1320 = vmatpush.msra.mxu0 %v1273
        %1321 = vmatpush.msra.mxu0 %v1270
        %1322 = vmatmul.f32.gmra.mxu0 %v1304
        %v1323 = vpop.f32.mrf.mxu0
        %v1324 = vadd.f32 %v1301, %v1323
        %1325 = vdwg.mxu0
        %1326 = vmatpush.msra.mxu0 0.0
        %1327 = vmatpush.msra.mxu0 0.0
        %1328 = vmatpush.msra.mxu0 0.0
        %1329 = vmatpush.msra.mxu0 0.0
        %1330 = vmatpush.msra.mxu0 0.0
        %1331 = vmatpush.msra.mxu0 0.0
        %1332 = vmatpush.msra.mxu0 0.0
        %1333 = vmatpush.msra.mxu0 %v1295
        %1334 = vmatpush.msra.mxu0 %v1292
        %1335 = vmatpush.msra.mxu0 %v1289
        %1336 = vmatpush.msra.mxu0 %v1286
        %1337 = vmatpush.msra.mxu0 %v1283
        %1338 = vmatpush.msra.mxu0 %v1280
        %1339 = vmatpush.msra.mxu0 %v1277
        %1340 = vmatpush.msra.mxu0 %v1274
        %1341 = vmatpush.msra.mxu0 %v1271
        %1342 = vmatmul.f32.gmra.mxu0 %v1304
        %v1343 = vpop.f32.mrf.mxu0
        %v1344 = vadd.f32 %v1301, %v1343
        %1345 = vdwg.mxu0
        %1346 = vmatpush.msra.mxu0 0.0
        %1347 = vmatpush.msra.mxu0 0.0
        %1348 = vmatpush.msra.mxu0 0.0
        %1349 = vmatpush.msra.mxu0 0.0
        %1350 = vmatpush.msra.mxu0 0.0
        %1351 = vmatpush.msra.mxu0 0.0
        %1352 = vmatpush.msra.mxu0 0.0
        %1353 = vmatpush.msra.mxu0 %v1296
        %1354 = vmatpush.msra.mxu0 %v1293
        %1355 = vmatpush.msra.mxu0 %v1290
        %1356 = vmatpush.msra.mxu0 %v1287
        %1357 = vmatpush.msra.mxu0 %v1284
        %1358 = vmatpush.msra.mxu0 %v1281
        %1359 = vmatpush.msra.mxu0 %v1278
        %1360 = vmatpush.msra.mxu0 %v1275
        %1361 = vmatpush.msra.mxu0 %v1272
        %1362 = vmatmul.f32.gmra.mxu0 %v1304
        %v1363 = vpop.f32.mrf.mxu0
        %v1364 = vadd.f32 %v1301, %v1363
        %1365 = vdwg.mxu0
        %v1366 = vmax.f32 %v1324, 0.0
        %v1367 = vmax.f32 %v1344, 0.0
        %v1368 = vmax.f32 %v1364, 0.0
        %v1369 = vld [vmem:[%s9] sm:$0x7]
        %vm1370 = vcmp.gt.f32.partialorder %v1369, 0.5
        %v1371 = vsel %vm1370, 1, 0
        %v1372 = vperm.slane %v1371, 0
        %v1373 = vperm.slane %v1371, 1
        %v1374 = vperm.slane %v1371, 2
        %vm1375 = vcmp.eq.s32.totalorder %v1372, 1
        %vm1376 = vcmp.eq.s32.totalorder %v1373, 1
        %vm1377 = vcmp.eq.s32.totalorder %v1374, 1
        %v1378 = vsel %vm1375, %v1366, 0.0
        %v1379 = vsel %vm1376, %v1367, 0.0
        %v1380 = vsel %vm1377, %v1368, 0.0
        %1384 = vrot.lane.b32.xlu0 %v1378, 19
        %v1385 = vpop.permute.xlu0 %1384
        %1386 = vrot.lane.b32.xlu0 %v1379, 19
        %v1387 = vpop.permute.xlu0 %1386
        %1388 = vrot.lane.b32.xlu0 %v1380, 19
        %v1389 = vpop.permute.xlu0 %1388
        %v1390 = vsel %vm1092, %v1385, %v1387
        %v1391 = vsel %vm1092, %v1387, %v1389
        %1395 = vst.msk [vmem:[#allocation2] sm:$0xff] %vm1098, %v1385
        %1396 = vst [vmem:[#allocation2 + $0x8] sm:$0xff] %v1390
        %1397 = vst.msk [vmem:[#allocation2 + $0x10] sm:$0xff] %vm1101, %v1391
        %v1398 = vld [vmem:[#allocation2] sm:$0xff]
        %v1399 = vld [vmem:[#allocation2 + $0x8] sm:$0xff]
        %v1400 = vld [vmem:[#allocation2 + $0x10] sm:$0xff]
        %1404 = vrot.lane.b32.xlu0 %v1398, 127
        %v1405 = vpop.permute.xlu0 %1404
        %1406 = vrot.lane.b32.xlu0 %v1399, 127
        %v1407 = vpop.permute.xlu0 %1406
        %1408 = vrot.lane.b32.xlu0 %v1400, 127
        %v1409 = vpop.permute.xlu0 %1408
        %v1410 = vsel %vm814, %v1405, %v1407
        %v1411 = vsel %vm814, %v1407, %v1409
        %v1415 = vmax.f32 %v1398, %v1410
        %v1416 = vmax.f32 %v1399, %v1411
        %v1417 = vmax.f32 %v1400, %v1409
        %1421 = vrot.lane.b32.xlu0 %v1415, 110
        %v1422 = vpop.permute.xlu0 %1421
        %1423 = vrot.lane.b32.xlu0 %v1416, 110
        %v1424 = vpop.permute.xlu0 %1423
        %1425 = vrot.lane.b32.xlu0 %v1417, 110
        %v1426 = vpop.permute.xlu0 %1425
        %v1427 = vsel %vm856, %v1422, %v1424
        %v1428 = vsel %vm856, %v1424, %v1426
        %v1432 = vmax.f32 %v1415, %v1427
        %v1433 = vmax.f32 %v1416, %v1428
        %v1434 = vmax.f32 %v1417, %v1426
        %v1435 = vld [vmem:[#allocation16] sm:$0xff]
        %v1436 = vld [vmem:[#allocation16 + $0x8] sm:$0xff]
        %v1437 = vld [vmem:[#allocation16 + $0x10] sm:$0xff]
        %v1438 = vld [vmem:[#allocation16 + $0x18] sm:$0xff]
        %v1439 = vld [vmem:[#allocation16 + $0x20] sm:$0xff]
        %v1440 = vld [vmem:[#allocation16 + $0x28] sm:$0xff]
        %v1441 = vld [vmem:[#allocation16 + $0x30] sm:$0xff]
        %v1442 = vld [vmem:[#allocation16 + $0x38] sm:$0xff]
        %v1443 = vld [vmem:[#allocation16 + $0x40] sm:$0xff]
        %v1444 = vld [vmem:[#allocation16 + $0x48] sm:$0xff]
        %v1445 = vld [vmem:[#allocation16 + $0x50] sm:$0xff]
        %v1446 = vld [vmem:[#allocation16 + $0x58] sm:$0xff]
        %v1447 = vld [vmem:[#allocation16 + $0x60] sm:$0xff]
        %v1448 = vld [vmem:[#allocation16 + $0x68] sm:$0xff]
        %v1449 = vld [vmem:[#allocation16 + $0x70] sm:$0xff]
        %v1450 = vld [vmem:[#allocation16 + $0x78] sm:$0xff]
        %v1451 = vld [vmem:[#allocation16 + $0x80] sm:$0xff]
        %v1452 = vld [vmem:[#allocation16 + $0x88] sm:$0xff]
        %v1453 = vld [vmem:[#allocation16 + $0x90] sm:$0xff]
        %v1454 = vld [vmem:[#allocation16 + $0x98] sm:$0xff]
        %v1455 = vld [vmem:[#allocation16 + $0xa0] sm:$0xff]
        %v1456 = vld [vmem:[#allocation16 + $0xa8] sm:$0xff]
        %v1457 = vld [vmem:[#allocation16 + $0xb0] sm:$0xff]
        %v1458 = vld [vmem:[#allocation16 + $0xb8] sm:$0xff]
        %v1459 = vld [vmem:[#allocation16 + $0xc0] sm:$0xff]
        %v1460 = vld [vmem:[#allocation16 + $0xc8] sm:$0xff]
        %v1461 = vld [vmem:[#allocation16 + $0xd0] sm:$0xff]
        %v1462 = vld [vmem:[#allocation16 + $0xd8] sm:$0xff]
        %v1463 = vld [vmem:[#allocation16 + $0xe0] sm:$0xff]
        %v1464 = vld [vmem:[#allocation16 + $0xe8] sm:$0xff]
        %v1465 = vld [vmem:[#allocation16 + $0xf0] sm:$0xff]
        %v1466 = vld [vmem:[#allocation16 + $0xf8] sm:$0xff]
        %v1467 = vld [vmem:[#allocation16 + $0x100] sm:$0xff]
        %v1468 = vld [vmem:[#allocation16 + $0x108] sm:$0xff]
        %v1469 = vld [vmem:[#allocation16 + $0x110] sm:$0xff]
        %v1470 = vld [vmem:[#allocation16 + $0x118] sm:$0xff]
        %v1471 = vld [vmem:[#allocation16 + $0x120] sm:$0xff]
        %v1472 = vld [vmem:[#allocation16 + $0x128] sm:$0xff]
        %v1473 = vld [vmem:[#allocation16 + $0x130] sm:$0xff]
        %v1474 = vld [vmem:[#allocation16 + $0x138] sm:$0xff]
        %v1475 = vld [vmem:[#allocation16 + $0x140] sm:$0xf]
        %1479 = vrot.lane.b32.xlu0 %v1432, 109
        %v1480 = vpop.permute.xlu0 %1479
        %1481 = vrot.lane.b32.xlu0 %v1433, 109
        %v1482 = vpop.permute.xlu0 %1481
        %1483 = vrot.lane.b32.xlu0 %v1434, 109
        %v1484 = vpop.permute.xlu0 %1483
        %v1485 = vsel %vm877, %v1480, %v1482
        %v1486 = vsel %vm877, %v1482, %v1484
        %v1489 = vsel %vm800, %v1484, 0
        %vm1491 = vcmask 1043456
        %v1493 = vsel %vm1491, %v1475, 0
        %1495 = vmatpush.msra.mxu0 %v1450
        %1496 = vmatpush.msra.mxu0 %v1449
        %1497 = vmatpush.msra.mxu0 %v1448
        %1498 = vmatpush.msra.mxu0 %v1447
        %1499 = vmatpush.msra.mxu0 %v1446
        %1500 = vmatpush.msra.mxu0 %v1445
        %1501 = vmatpush.msra.mxu0 %v1444
        %1502 = vmatpush.msra.mxu0 %v1443
        %1503 = vmatpush.msra.mxu0 %v1442
        %1504 = vmatpush.msra.mxu0 %v1441
        %1505 = vmatpush.msra.mxu0 %v1440
        %1506 = vmatpush.msra.mxu0 %v1439
        %1507 = vmatpush.msra.mxu0 %v1438
        %1508 = vmatpush.msra.mxu0 %v1437
        %1509 = vmatpush.msra.mxu0 %v1436
        %1510 = vmatpush.msra.mxu0 %v1435
        %1511 = vmatmul.f32.gmra.mxu0 %v1485
        %v1512 = vpop.f32.mrf.mxu0
        %v1513 = vadd.f32 0.0, %v1512
        %1514 = vdwg.mxu0
        %1515 = vmatpush.msra.mxu0 %v1466
        %1516 = vmatpush.msra.mxu0 %v1465
        %1517 = vmatpush.msra.mxu0 %v1464
        %1518 = vmatpush.msra.mxu0 %v1463
        %1519 = vmatpush.msra.mxu0 %v1462
        %1520 = vmatpush.msra.mxu0 %v1461
        %1521 = vmatpush.msra.mxu0 %v1460
        %1522 = vmatpush.msra.mxu0 %v1459
        %1523 = vmatpush.msra.mxu0 %v1458
        %1524 = vmatpush.msra.mxu0 %v1457
        %1525 = vmatpush.msra.mxu0 %v1456
        %1526 = vmatpush.msra.mxu0 %v1455
        %1527 = vmatpush.msra.mxu0 %v1454
        %1528 = vmatpush.msra.mxu0 %v1453
        %1529 = vmatpush.msra.mxu0 %v1452
        %1530 = vmatpush.msra.mxu0 %v1451
        %1531 = vmatmul.f32.gmra.mxu0 %v1486
        %v1532 = vpop.f32.mrf.mxu0
        %v1533 = vadd.f32 %v1513, %v1532
        %1534 = vdwg.mxu0
        %1535 = vmatpush.msra.mxu0 0.0
        %1536 = vmatpush.msra.mxu0 0.0
        %1537 = vmatpush.msra.mxu0 0.0
        %1538 = vmatpush.msra.mxu0 0.0
        %1539 = vmatpush.msra.mxu0 0.0
        %1540 = vmatpush.msra.mxu0 0.0
        %1541 = vmatpush.msra.mxu0 0.0
        %1542 = vmatpush.msra.mxu0 %v1493
        %1543 = vmatpush.msra.mxu0 %v1474
        %1544 = vmatpush.msra.mxu0 %v1473
        %1545 = vmatpush.msra.mxu0 %v1472
        %1546 = vmatpush.msra.mxu0 %v1471
        %1547 = vmatpush.msra.mxu0 %v1470
        %1548 = vmatpush.msra.mxu0 %v1469
        %1549 = vmatpush.msra.mxu0 %v1468
        %1550 = vmatpush.msra.mxu0 %v1467
        %1551 = vmatmul.f32.gmra.mxu0 %v1489
        %v1552 = vpop.f32.mrf.mxu0
        %v1553 = vadd.f32 %v1533, %v1552
        %1554 = vdwg.mxu0
        %1556 = vrot.lane.b32.xlu0 %v1553, 11
        %v1557 = vpop.permute.xlu0 %1556
        %vm1559 = vcmask 908376
        %1560 = vst.msk [vmem:[#allocation3] sm:$0xff] %vm1559, %v1557
        %v1561 = vld [vmem:[#allocation3] sm:$0xff]
        %vm1562 = vcmask 818176
        %1563 = vst.msk [vmem:[#allocation4] sm:$0xff] %vm1562, %v1561
        %v1564 = vld [vmem:[#allocation3] sm:$0xff]
        %1566 = vrot.lane.b32.xlu0 %v1564, 127
        %v1567 = vpop.permute.xlu0 %1566
        %1569 = vst.msk [vmem:[#allocation4 + $0x18] sm:$0xff] %vm1562, %v1567
        %v1570 = vld [vmem:[#allocation3] sm:$0xff]
        %1572 = vrot.lane.b32.xlu0 %v1570, 126
        %v1573 = vpop.permute.xlu0 %1572
        %1575 = vst.msk [vmem:[#allocation4 + $0x30] sm:$0xff] %vm1562, %v1573
        %v1576 = vld [vmem:[#allocation3] sm:$0xff]
        %1578 = vrot.lane.b32.xlu0 %v1576, 118
        %v1579 = vpop.permute.xlu0 %1578
        %1581 = vst.msk [vmem:[#allocation4 + $0x48] sm:$0xff] %vm1562, %v1579
        %v1582 = vld [vmem:[#allocation3] sm:$0xff]
        %1584 = vrot.lane.b32.xlu0 %v1582, 117
        %v1585 = vpop.permute.xlu0 %1584
        %1587 = vst.msk [vmem:[#allocation4 + $0x60] sm:$0xff] %vm1562, %v1585
        %v1588 = vld [vmem:[#allocation3] sm:$0xff]
        %1590 = vrot.lane.b32.xlu0 %v1588, 116
        %v1591 = vpop.permute.xlu0 %1590
        %1593 = vst.msk [vmem:[#allocation4 + $0x78] sm:$0xff] %vm1562, %v1591
        %v1594 = vld [vmem:[#allocation3] sm:$0xff]
        %1596 = vrot.lane.b32.xlu0 %v1594, 108
        %v1597 = vpop.permute.xlu0 %1596
        %1599 = vst.msk [vmem:[#allocation4 + $0x90] sm:$0xff] %vm1562, %v1597
        %v1600 = vld [vmem:[#allocation3] sm:$0xff]
        %1602 = vrot.lane.b32.xlu0 %v1600, 107
        %v1603 = vpop.permute.xlu0 %1602
        %1605 = vst.msk [vmem:[#allocation4 + $0xa8] sm:$0xff] %vm1562, %v1603
        %v1606 = vld [vmem:[#allocation3] sm:$0xff]
        %1608 = vrot.lane.b32.xlu0 %v1606, 106
        %v1609 = vpop.permute.xlu0 %1608
        %1611 = vst.msk [vmem:[#allocation4 + $0xc0] sm:$0xff] %vm1562, %v1609
        %v1612 = vld [vmem:[#allocation12] sm:$0xff]
        %v1613 = vld [vmem:[#allocation12 + $0x8] sm:$0xff]
        %v1614 = vld [vmem:[#allocation4] sm:$0xff]
        %v1615 = vld [vmem:[#allocation4 + $0x18] sm:$0xff]
        %v1616 = vld [vmem:[#allocation4 + $0x30] sm:$0xff]
        %v1617 = vld [vmem:[#allocation4 + $0x48] sm:$0xff]
        %v1618 = vld [vmem:[#allocation4 + $0x60] sm:$0xff]
        %v1619 = vld [vmem:[#allocation4 + $0x78] sm:$0xff]
        %v1620 = vld [vmem:[#allocation4 + $0x90] sm:$0xff]
        %v1621 = vld [vmem:[#allocation4 + $0xa8] sm:$0xff]
        %v1622 = vld [vmem:[#allocation4 + $0xc0] sm:$0xff]
        %v1623 = vld [vmem:[#allocation13] sm:$0xff]
        %v1624 = vld [vmem:[#allocation13 + $0x8] sm:$0xff]
        %1626 = vset.pattern.permute.xlu0 0
        %1627 = vperm.xlu0 %1626, %v1623
        %v1628 = vpop.permute.xlu0 %1627
        %1631 = vset.pattern.permute.xlu0 0
        %1632 = vperm.xlu0 %1631, %v1624
        %v1633 = vpop.permute.xlu0 %1632
        %v1636 = vsel %vm1004, %v1612, 0
        %v1639 = vsel %vm1004, %v1613, 0
        %1641 = vmatpush.msra.mxu0 0.0
        %1642 = vmatpush.msra.mxu0 0.0
        %1643 = vmatpush.msra.mxu0 0.0
        %1644 = vmatpush.msra.mxu0 0.0
        %1645 = vmatpush.msra.mxu0 0.0
        %1646 = vmatpush.msra.mxu0 0.0
        %1647 = vmatpush.msra.mxu0 0.0
        %1648 = vmatpush.msra.mxu0 %v1622
        %1649 = vmatpush.msra.mxu0 %v1621
        %1650 = vmatpush.msra.mxu0 %v1620
        %1651 = vmatpush.msra.mxu0 %v1619
        %1652 = vmatpush.msra.mxu0 %v1618
        %1653 = vmatpush.msra.mxu0 %v1617
        %1654 = vmatpush.msra.mxu0 %v1616
        %1655 = vmatpush.msra.mxu0 %v1615
        %1656 = vmatpush.msra.mxu0 %v1614
        %1657 = vmatmul.f32.gmra.mxu0 %v1636
        %v1658 = vpop.f32.mrf.mxu0
        %v1659 = vadd.f32 %v1628, %v1658
        %1660 = vmatmul.f32.gmra.mxu0 %v1639
        %v1661 = vpop.f32.mrf.mxu0
        %v1662 = vadd.f32 %v1633, %v1661
        %1663 = vdwg.mxu0
        %v1664 = vmax.f32 %v1659, 0.0
        %v1665 = vmax.f32 %v1662, 0.0
        %v1666 = vld [vmem:[%s10] sm:$0x1]
        %vm1667 = vcmp.gt.f32.partialorder %v1666, 0.5
        %v1668 = vsel %vm1667, 1, 0
        %v1669 = vperm.slane %v1668, 0
        %vm1670 = vcmp.eq.s32.totalorder %v1669, 1
        %v1671 = vsel %vm1670, %v1664, 0.0
        %v1672 = vsel %vm1670, %v1665, 0.0
        %1675 = vrot.lane.b32.xlu0 %v1671, 11
        %v1676 = vpop.permute.xlu0 %1675
        %1677 = vrot.lane.b32.xlu0 %v1672, 11
        %v1678 = vpop.permute.xlu0 %1677
        %1681 = vst.msk [vmem:[#allocation2] sm:$0xff] %vm1559, %v1676
        %1682 = vst.msk [vmem:[#allocation2 + $0x18] sm:$0xff] %vm1559, %v1678
        %v1683 = vld [vmem:[#allocation2] sm:$0xff]
        %v1684 = vld [vmem:[#allocation2 + $0x18] sm:$0xff]
        %1685 = vst.msk [vmem:[#allocation4] sm:$0xff] %vm1562, %v1683
        %1686 = vst.msk [vmem:[#allocation4 + $0x18] sm:$0xff] %vm1562, %v1684
        %v1687 = vld [vmem:[#allocation2] sm:$0xff]
        %v1688 = vld [vmem:[#allocation2 + $0x18] sm:$0xff]
        %1691 = vrot.lane.b32.xlu0 %v1687, 127
        %v1692 = vpop.permute.xlu0 %1691
        %1693 = vrot.lane.b32.xlu0 %v1688, 127
        %v1694 = vpop.permute.xlu0 %1693
        %1697 = vst.msk [vmem:[#allocation4 + $0x30] sm:$0xff] %vm1562, %v1692
        %1698 = vst.msk [vmem:[#allocation4 + $0x48] sm:$0xff] %vm1562, %v1694
        %v1699 = vld [vmem:[#allocation2] sm:$0xff]
        %v1700 = vld [vmem:[#allocation2 + $0x18] sm:$0xff]
        %1703 = vrot.lane.b32.xlu0 %v1699, 126
        %v1704 = vpop.permute.xlu0 %1703
        %1705 = vrot.lane.b32.xlu0 %v1700, 126
        %v1706 = vpop.permute.xlu0 %1705
        %1709 = vst.msk [vmem:[#allocation4 + $0x60] sm:$0xff] %vm1562, %v1704
        %1710 = vst.msk [vmem:[#allocation4 + $0x78] sm:$0xff] %vm1562, %v1706
        %v1711 = vld [vmem:[#allocation2] sm:$0xff]
        %v1712 = vld [vmem:[#allocation2 + $0x18] sm:$0xff]
        %1715 = vrot.lane.b32.xlu0 %v1711, 118
        %v1716 = vpop.permute.xlu0 %1715
        %1717 = vrot.lane.b32.xlu0 %v1712, 118
        %v1718 = vpop.permute.xlu0 %1717
        %1721 = vst.msk [vmem:[#allocation4 + $0x90] sm:$0xff] %vm1562, %v1716
        %1722 = vst.msk [vmem:[#allocation4 + $0xa8] sm:$0xff] %vm1562, %v1718
        %v1723 = vld [vmem:[#allocation2] sm:$0xff]
        %v1724 = vld [vmem:[#allocation2 + $0x18] sm:$0xff]
        %1727 = vrot.lane.b32.xlu0 %v1723, 117
        %v1728 = vpop.permute.xlu0 %1727
        %1729 = vrot.lane.b32.xlu0 %v1724, 117
        %v1730 = vpop.permute.xlu0 %1729
        %1733 = vst.msk [vmem:[#allocation4 + $0xc0] sm:$0xff] %vm1562, %v1728
        %1734 = vst.msk [vmem:[#allocation4 + $0xd8] sm:$0xff] %vm1562, %v1730
        %v1735 = vld [vmem:[#allocation2] sm:$0xff]
        %v1736 = vld [vmem:[#allocation2 + $0x18] sm:$0xff]
        %1739 = vrot.lane.b32.xlu0 %v1735, 116
        %v1740 = vpop.permute.xlu0 %1739
        %1741 = vrot.lane.b32.xlu0 %v1736, 116
        %v1742 = vpop.permute.xlu0 %1741
        %1745 = vst.msk [vmem:[#allocation4 + $0xf0] sm:$0xff] %vm1562, %v1740
        %1746 = vst.msk [vmem:[#allocation4 + $0x108] sm:$0xff] %vm1562, %v1742
        %v1747 = vld [vmem:[#allocation2] sm:$0xff]
        %v1748 = vld [vmem:[#allocation2 + $0x18] sm:$0xff]
        %1751 = vrot.lane.b32.xlu0 %v1747, 108
        %v1752 = vpop.permute.xlu0 %1751
        %1753 = vrot.lane.b32.xlu0 %v1748, 108
        %v1754 = vpop.permute.xlu0 %1753
        %1757 = vst.msk [vmem:[#allocation4 + $0x120] sm:$0xff] %vm1562, %v1752
        %1758 = vst.msk [vmem:[#allocation4 + $0x138] sm:$0xff] %vm1562, %v1754
        %v1759 = vld [vmem:[#allocation2] sm:$0xff]
        %v1760 = vld [vmem:[#allocation2 + $0x18] sm:$0xff]
        %1763 = vrot.lane.b32.xlu0 %v1759, 107
        %v1764 = vpop.permute.xlu0 %1763
        %1765 = vrot.lane.b32.xlu0 %v1760, 107
        %v1766 = vpop.permute.xlu0 %1765
        %1769 = vst.msk [vmem:[#allocation4 + $0x150] sm:$0xff] %vm1562, %v1764
        %1770 = vst.msk [vmem:[#allocation4 + $0x168] sm:$0xff] %vm1562, %v1766
        %v1771 = vld [vmem:[#allocation2] sm:$0xff]
        %v1772 = vld [vmem:[#allocation2 + $0x18] sm:$0xff]
        %1775 = vrot.lane.b32.xlu0 %v1771, 106
        %v1776 = vpop.permute.xlu0 %1775
        %1777 = vrot.lane.b32.xlu0 %v1772, 106
        %v1778 = vpop.permute.xlu0 %1777
        %1781 = vst.msk [vmem:[#allocation4 + $0x180] sm:$0xff] %vm1562, %v1776
        %1782 = vst.msk [vmem:[#allocation4 + $0x198] sm:$0xff] %vm1562, %v1778
        %v1783 = vld [vmem:[%s7] sm:$0xff]
        %v1784 = vld [vmem:[%s7 + $0x8] sm:$0xff]
        %v1785 = vld [vmem:[%s7 + $0x10] sm:$0xff]
        %v1786 = vld [vmem:[%s7 + $0x18] sm:$0xff]
        %v1787 = vld [vmem:[#allocation4] sm:$0xff]
        %v1788 = vld [vmem:[#allocation4 + $0x18] sm:$0xff]
        %v1789 = vld [vmem:[#allocation4 + $0x30] sm:$0xff]
        %v1790 = vld [vmem:[#allocation4 + $0x48] sm:$0xff]
        %v1791 = vld [vmem:[#allocation4 + $0x60] sm:$0xff]
        %v1792 = vld [vmem:[#allocation4 + $0x78] sm:$0xff]
        %v1793 = vld [vmem:[#allocation4 + $0x90] sm:$0xff]
        %v1794 = vld [vmem:[#allocation4 + $0xa8] sm:$0xff]
        %v1795 = vld [vmem:[#allocation4 + $0xc0] sm:$0xff]
        %v1796 = vld [vmem:[#allocation4 + $0xd8] sm:$0xff]
        %v1797 = vld [vmem:[#allocation4 + $0xf0] sm:$0xff]
        %v1798 = vld [vmem:[#allocation4 + $0x108] sm:$0xff]
        %v1799 = vld [vmem:[#allocation4 + $0x120] sm:$0xff]
        %v1800 = vld [vmem:[#allocation4 + $0x138] sm:$0xff]
        %v1801 = vld [vmem:[#allocation4 + $0x150] sm:$0xff]
        %v1802 = vld [vmem:[#allocation4 + $0x168] sm:$0xff]
        %v1803 = vld [vmem:[#allocation4 + $0x180] sm:$0xff]
        %v1804 = vld [vmem:[#allocation4 + $0x198] sm:$0xff]
        %v1805 = vld [vmem:[#allocation15] sm:$0xff]
        %v1806 = vld [vmem:[#allocation15 + $0x8] sm:$0xff]
        %1808 = vset.pattern.permute.xlu0 0
        %1809 = vperm.xlu0 %1808, %v1805
        %v1810 = vpop.permute.xlu0 %1809
        %1813 = vset.pattern.permute.xlu0 0
        %1814 = vperm.xlu0 %1813, %v1806
        %v1815 = vpop.permute.xlu0 %1814
        %vm1817 = vcmask 130048
        %v1819 = vsel %vm1817, %v1784, 0
        %v1822 = vsel %vm1817, %v1786, 0
        %1824 = vmatpush.msra.mxu0 %v1802
        %1825 = vmatpush.msra.mxu0 %v1801
        %1826 = vmatpush.msra.mxu0 %v1800
        %1827 = vmatpush.msra.mxu0 %v1799
        %1828 = vmatpush.msra.mxu0 %v1798
        %1829 = vmatpush.msra.mxu0 %v1797
        %1830 = vmatpush.msra.mxu0 %v1796
        %1831 = vmatpush.msra.mxu0 %v1795
        %1832 = vmatpush.msra.mxu0 %v1794
        %1833 = vmatpush.msra.mxu0 %v1793
        %1834 = vmatpush.msra.mxu0 %v1792
        %1835 = vmatpush.msra.mxu0 %v1791
        %1836 = vmatpush.msra.mxu0 %v1790
        %1837 = vmatpush.msra.mxu0 %v1789
        %1838 = vmatpush.msra.mxu0 %v1788
        %1839 = vmatpush.msra.mxu0 %v1787
        %1840 = vmatmul.f32.gmra.mxu0 %v1783
        %v1841 = vpop.f32.mrf.mxu0
        %v1842 = vadd.f32 %v1810, %v1841
        %1843 = vmatmul.f32.gmra.mxu0 %v1785
        %v1844 = vpop.f32.mrf.mxu0
        %v1845 = vadd.f32 %v1815, %v1844
        %1846 = vdwg.mxu0
        %1847 = vmatpush.msra.mxu0 0.0
        %1848 = vmatpush.msra.mxu0 0.0
        %1849 = vmatpush.msra.mxu0 0.0
        %1850 = vmatpush.msra.mxu0 0.0
        %1851 = vmatpush.msra.mxu0 0.0
        %1852 = vmatpush.msra.mxu0 0.0
        %1853 = vmatpush.msra.mxu0 0.0
        %1854 = vmatpush.msra.mxu0 0.0
        %1855 = vmatpush.msra.mxu0 0.0
        %1856 = vmatpush.msra.mxu0 0.0
        %1857 = vmatpush.msra.mxu0 0.0
        %1858 = vmatpush.msra.mxu0 0.0
        %1859 = vmatpush.msra.mxu0 0.0
        %1860 = vmatpush.msra.mxu0 0.0
        %1861 = vmatpush.msra.mxu0 %v1804
        %1862 = vmatpush.msra.mxu0 %v1803
        %1863 = vmatmul.f32.gmra.mxu0 %v1819
        %v1864 = vpop.f32.mrf.mxu0
        %v1865 = vadd.f32 %v1842, %v1864
        %1866 = vmatmul.f32.gmra.mxu0 %v1822
        %v1867 = vpop.f32.mrf.mxu0
        %v1868 = vadd.f32 %v1845, %v1867
        %1869 = vdwg.mxu0
        %v1870 = vmax.f32 %v1865, 0.0
        %v1871 = vmax.f32 %v1868, 0.0
        %v1872 = vld [vmem:[%s10] sm:$0x1]
        %vm1873 = vcmp.gt.f32.partialorder %v1872, 0.5
        %v1874 = vsel %vm1873, 1, 0
        %v1875 = vperm.slane %v1874, 0
        %vm1876 = vcmp.eq.s32.totalorder %v1875, 1
        %v1877 = vsel %vm1876, %v1870, 0.0
        %v1878 = vsel %vm1876, %v1871, 0.0
        %1881 = vrot.lane.b32.xlu0 %v1877, 11
        %v1882 = vpop.permute.xlu0 %1881
        %1883 = vrot.lane.b32.xlu0 %v1878, 11
        %v1884 = vpop.permute.xlu0 %1883
        %1887 = vst.msk [vmem:[#allocation3] sm:$0xff] %vm1559, %v1882
        %1888 = vst.msk [vmem:[#allocation3 + $0x18] sm:$0xff] %vm1559, %v1884
        %v1889 = vld [vmem:[#allocation3] sm:$0xff]
        %v1890 = vld [vmem:[#allocation3 + $0x18] sm:$0xff]
        %1893 = vrot.lane.b32.xlu0 %v1889, 127
        %v1894 = vpop.permute.xlu0 %1893
        %1895 = vrot.lane.b32.xlu0 %v1890, 127
        %v1896 = vpop.permute.xlu0 %1895
        %v1899 = vmax.f32 %v1889, %v1894
        %v1900 = vmax.f32 %v1890, %v1896
        %1903 = vrot.lane.b32.xlu0 %v1899, 118
        %v1904 = vpop.permute.xlu0 %1903
        %1905 = vrot.lane.b32.xlu0 %v1900, 118
        %v1906 = vpop.permute.xlu0 %1905
        %v1909 = vmax.f32 %v1899, %v1904
        %v1910 = vmax.f32 %v1900, %v1906
        %v1911 = vld [vmem:[%s12] sm:$0xff]
        %v1912 = vld [vmem:[%s12 + $0x8] sm:$0xff]
        %v1913 = vld [vmem:[%s12 + $0x10] sm:$0xff]
        %v1914 = vld [vmem:[%s12 + $0x18] sm:$0xff]
        %v1915 = vld [vmem:[%s12 + $0x20] sm:$0xff]
        %v1916 = vld [vmem:[%s12 + $0x28] sm:$0xff]
        %v1917 = vld [vmem:[%s12 + $0x30] sm:$0xff]
        %v1918 = vld [vmem:[%s12 + $0x38] sm:$0xff]
        %v1919 = vld [vmem:[%s12 + $0x40] sm:$0xff]
        %v1920 = vld [vmem:[%s12 + $0x48] sm:$0xff]
        %v1921 = vld [vmem:[%s12 + $0x50] sm:$0xff]
        %v1922 = vld [vmem:[%s12 + $0x58] sm:$0xff]
        %v1923 = vld [vmem:[%s12 + $0x60] sm:$0xf]
        %1926 = vrot.lane.b32.xlu0 %v1909, 117
        %v1927 = vpop.permute.xlu0 %1926
        %1928 = vrot.lane.b32.xlu0 %v1910, 117
        %v1929 = vpop.permute.xlu0 %1928
        %v1930 = vsel %vm1562, %v1927, 0
        %v1932 = vsel %vm1562, %v1929, 0
        %v1935 = vsel %vm1491, %v1923, 0
        %1937 = vmatpush.msra.mxu0 0.0
        %1938 = vmatpush.msra.mxu0 0.0
        %1939 = vmatpush.msra.mxu0 0.0
        %1940 = vmatpush.msra.mxu0 %v1935
        %1941 = vmatpush.msra.mxu0 %v1922
        %1942 = vmatpush.msra.mxu0 %v1921
        %1943 = vmatpush.msra.mxu0 %v1920
        %1944 = vmatpush.msra.mxu0 %v1919
        %1945 = vmatpush.msra.mxu0 %v1918
        %1946 = vmatpush.msra.mxu0 %v1917
        %1947 = vmatpush.msra.mxu0 %v1916
        %1948 = vmatpush.msra.mxu0 %v1915
        %1949 = vmatpush.msra.mxu0 %v1914
        %1950 = vmatpush.msra.mxu0 %v1913
        %1951 = vmatpush.msra.mxu0 %v1912
        %1952 = vmatpush.msra.mxu0 %v1911
        %1953 = vmatmul.f32.gmra.mxu0 %v1930
        %v1954 = vpop.f32.mrf.mxu0
        %v1955 = vadd.f32 0.0, %v1954
        %1956 = vmatmul.f32.gmra.mxu0 %v1932
        %v1957 = vpop.f32.mrf.mxu0
        %v1958 = vadd.f32 0.0, %v1957
        %1959 = vdwg.mxu0
        %v1960 = vld [vmem:[#allocation18] sm:$0xff]
        %v1961 = vld [vmem:[#allocation18 + $0x8] sm:$0xff]
        %v1962 = vld [vmem:[#allocation18 + $0x10] sm:$0xff]
        %v1963 = vld [vmem:[#allocation18 + $0x18] sm:$0xff]
        %v1964 = vld [vmem:[#allocation18 + $0x20] sm:$0xff]
        %v1965 = vld [vmem:[#allocation18 + $0x28] sm:$0xff]
        %v1966 = vld [vmem:[#allocation18 + $0x30] sm:$0xff]
        %v1967 = vld [vmem:[#allocation18 + $0x38] sm:$0xff]
        %v1968 = vld [vmem:[#allocation18 + $0x40] sm:$0xff]
        %v1969 = vld [vmem:[#allocation18 + $0x48] sm:$0xff]
        %v1970 = vld [vmem:[#allocation18 + $0x50] sm:$0xff]
        %v1971 = vld [vmem:[#allocation18 + $0x58] sm:$0xff]
        %v1972 = vld [vmem:[#allocation18 + $0x60] sm:$0xff]
        %v1973 = vld [vmem:[#allocation18 + $0x68] sm:$0xff]
        %v1974 = vld [vmem:[#allocation18 + $0x70] sm:$0xff]
        %v1975 = vld [vmem:[#allocation18 + $0x78] sm:$0xff]
        %v1976 = vld [vmem:[#allocation18 + $0x80] sm:$0xff]
        %v1977 = vld [vmem:[#allocation18 + $0x88] sm:$0xff]
        %v1978 = vld [vmem:[#allocation18 + $0x90] sm:$0xff]
        %v1979 = vld [vmem:[#allocation18 + $0x98] sm:$0xff]
        %v1980 = vmul.f32 %v1955, %v1960
        %v1981 = vmul.f32 %v1958, %v1961
        %v1982 = vmul.f32 %v1955, %v1962
        %v1983 = vmul.f32 %v1958, %v1963
        %v1984 = vmul.f32 %v1955, %v1964
        %v1985 = vmul.f32 %v1958, %v1965
        %v1986 = vmul.f32 %v1955, %v1966
        %v1987 = vmul.f32 %v1958, %v1967
        %v1988 = vmul.f32 %v1955, %v1968
        %v1989 = vmul.f32 %v1958, %v1969
        %v1990 = vmul.f32 %v1955, %v1970
        %v1991 = vmul.f32 %v1958, %v1971
        %v1992 = vmul.f32 %v1955, %v1972
        %v1993 = vmul.f32 %v1958, %v1973
        %v1994 = vmul.f32 %v1955, %v1974
        %v1995 = vmul.f32 %v1958, %v1975
        %v1996 = vmul.f32 %v1955, %v1976
        %v1997 = vmul.f32 %v1958, %v1977
        %v1998 = vmul.f32 %v1955, %v1978
        %v1999 = vmul.f32 %v1958, %v1979
        %v2000 = vsel %vm1817, %v1980, 0.0
        %2001 = vadd.xlane.f32.xlu0 %v2000
        %v2002 = vpop.xlane.xlu0 %2001
        %v2003 = vsel %vm1817, %v1981, 0.0
        %2004 = vadd.xlane.f32.xlu0 %v2003
        %v2005 = vpop.xlane.xlu0 %2004
        %v2006 = vsel %vm1817, %v1982, 0.0
        %2007 = vadd.xlane.f32.xlu0 %v2006
        %v2008 = vpop.xlane.xlu0 %2007
        %v2009 = vsel %vm1817, %v1983, 0.0
        %2010 = vadd.xlane.f32.xlu0 %v2009
        %v2011 = vpop.xlane.xlu0 %2010
        %v2012 = vsel %vm1817, %v1984, 0.0
        %2013 = vadd.xlane.f32.xlu0 %v2012
        %v2014 = vpop.xlane.xlu0 %2013
        %v2015 = vsel %vm1817, %v1985, 0.0
        %2016 = vadd.xlane.f32.xlu0 %v2015
        %v2017 = vpop.xlane.xlu0 %2016
        %v2018 = vsel %vm1817, %v1986, 0.0
        %2019 = vadd.xlane.f32.xlu0 %v2018
        %v2020 = vpop.xlane.xlu0 %2019
        %v2021 = vsel %vm1817, %v1987, 0.0
        %2022 = vadd.xlane.f32.xlu0 %v2021
        %v2023 = vpop.xlane.xlu0 %2022
        %v2024 = vsel %vm1817, %v1988, 0.0
        %2025 = vadd.xlane.f32.xlu0 %v2024
        %v2026 = vpop.xlane.xlu0 %2025
        %v2027 = vsel %vm1817, %v1989, 0.0
        %2028 = vadd.xlane.f32.xlu0 %v2027
        %v2029 = vpop.xlane.xlu0 %2028
        %v2030 = vsel %vm1817, %v1990, 0.0
        %2031 = vadd.xlane.f32.xlu0 %v2030
        %v2032 = vpop.xlane.xlu0 %2031
        %v2033 = vsel %vm1817, %v1991, 0.0
        %2034 = vadd.xlane.f32.xlu0 %v2033
        %v2035 = vpop.xlane.xlu0 %2034
        %v2036 = vsel %vm1817, %v1992, 0.0
        %2037 = vadd.xlane.f32.xlu0 %v2036
        %v2038 = vpop.xlane.xlu0 %2037
        %v2039 = vsel %vm1817, %v1993, 0.0
        %2040 = vadd.xlane.f32.xlu0 %v2039
        %v2041 = vpop.xlane.xlu0 %2040
        %v2042 = vsel %vm1817, %v1994, 0.0
        %2043 = vadd.xlane.f32.xlu0 %v2042
        %v2044 = vpop.xlane.xlu0 %2043
        %v2045 = vsel %vm1817, %v1995, 0.0
        %2046 = vadd.xlane.f32.xlu0 %v2045
        %v2047 = vpop.xlane.xlu0 %2046
        %v2048 = vsel %vm1817, %v1996, 0.0
        %2049 = vadd.xlane.f32.xlu0 %v2048
        %v2050 = vpop.xlane.xlu0 %2049
        %v2051 = vsel %vm1817, %v1997, 0.0
        %2052 = vadd.xlane.f32.xlu0 %v2051
        %v2053 = vpop.xlane.xlu0 %2052
        %v2054 = vsel %vm1817, %v1998, 0.0
        %2055 = vadd.xlane.f32.xlu0 %v2054
        %v2056 = vpop.xlane.xlu0 %2055
        %v2057 = vsel %vm1817, %v1999, 0.0
        %2058 = vadd.xlane.f32.xlu0 %v2057
        %v2059 = vpop.xlane.xlu0 %2058
        %v2080 = vlaneseq
        %v2081 = vand.u32 %v2080, 127
        %v2082 = vperm.slane %v2002, %v2081
        %v2083 = vadd.s32 %v2081, 4294967288
        %v2084 = vperm.slane %v2005, %v2083
        %vm2085 = vcmask 130112
        %v2086 = vsel %vm2085, %v2084, %v2082
        %v2087 = vperm.slane %v2008, %v2081
        %v2088 = vperm.slane %v2011, %v2083
        %v2089 = vsel %vm2085, %v2088, %v2087
        %v2090 = vperm.slane %v2014, %v2081
        %v2091 = vperm.slane %v2017, %v2083
        %v2092 = vsel %vm2085, %v2091, %v2090
        %v2093 = vperm.slane %v2020, %v2081
        %v2094 = vperm.slane %v2023, %v2083
        %v2095 = vsel %vm2085, %v2094, %v2093
        %v2096 = vperm.slane %v2026, %v2081
        %v2097 = vperm.slane %v2029, %v2083
        %v2098 = vsel %vm2085, %v2097, %v2096
        %v2099 = vperm.slane %v2032, %v2081
        %v2100 = vperm.slane %v2035, %v2083
        %v2101 = vsel %vm2085, %v2100, %v2099
        %v2102 = vperm.slane %v2038, %v2081
        %v2103 = vperm.slane %v2041, %v2083
        %v2104 = vsel %vm2085, %v2103, %v2102
        %v2105 = vperm.slane %v2044, %v2081
        %v2106 = vperm.slane %v2047, %v2083
        %v2107 = vsel %vm2085, %v2106, %v2105
        %v2108 = vperm.slane %v2050, %v2081
        %v2109 = vperm.slane %v2053, %v2083
        %v2110 = vsel %vm2085, %v2109, %v2108
        %v2111 = vperm.slane %v2056, %v2081
        %v2112 = vperm.slane %v2059, %v2083
        %v2113 = vsel %vm2085, %v2112, %v2111
        %vm2114 = vcmask 1041409
        %v2115 = vsel %vm2114, %v2089, %v2086
        %vm2116 = vcmask 1042434
        %v2117 = vsel %vm2116, %v2092, %v2115
        %vm2118 = vcmask 1043459
        %v2119 = vsel %vm2118, %v2095, %v2117
        %vm2120 = vcmask 1044484
        %v2121 = vsel %vm2120, %v2098, %v2119
        %vm2122 = vcmask 1045509
        %v2123 = vsel %vm2122, %v2101, %v2121
        %vm2124 = vcmask 1046534
        %v2125 = vsel %vm2124, %v2104, %v2123
        %vm2126 = vcmask 1047559
        %v2127 = vsel %vm2126, %v2107, %v2125
        %v2128 = vsel %vm2114, %v2113, %v2110
        %v2131 = vsel %vm1817, %v2127, 0.0
        %2132 = vadd.xlane.f32.xlu0 %v2131
        %v2133 = vpop.xlane.xlu0 %2132
        %vm2134 = vcmask 123904
        %v2135 = vsel %vm2134, %v2128, 0.0
        %2136 = vadd.xlane.f32.xlu0 %v2135
        %v2137 = vpop.xlane.xlu0 %2136
        %v2138 = vld [vmem:[%s14] sm:$0xff]
        %v2139 = vld [vmem:[%s14 + $0x8] sm:$0x3]
        %v2140 = vadd.f32 %v2133, %v2138
        %v2141 = vadd.f32 %v2137, %v2139
        %vm2142 = vcmask 7168
        %2143 = vst.msk [vmem:[%s635] sm:$0xff] %vm2142, %v2140
        %vm2144 = vcmask 1024
        %2145 = vst.msk [vmem:[%s635 + $0x8] sm:$0x3] %vm2144, %v2141
        %p2146 = scmp.lt.s32.totalorder %s31, 1
        %s2147 = scalar_select %p2146, %s31, 1
        %s2148 = smul.addr %s2147, 2
        %s2149 = smul.addr %s2148, 8
        %s2150 = scalar_lea.vmem %s15, %s2149
        // Predicated region
        $region117: #{forward.1} parent=79 // pred_check
          %p2151 = pneg %p369
        $region118: #{forward.1} parent=79 // pred_check_branch
          %2153 = sbr.rel (%p2151) target = $region120
        $region119: #{forward.1} parent=79 // pred_region
          _
        $region120: #{forward.1} parent=79 // pred_fallthru
          _
      $region80: #{forward.1} parent=5 // pred_fallthru
        _
      %p2154 = scmp.le.s32.totalorder 2, %s26
      // Predicated region
      $region121: #{forward.1} parent=5 // pred_check
        %p2155 = pneg %p2154
      $region122: #{forward.1} parent=5 // pred_check_branch
        %2157 = sbr.rel (%p2155) target = $region124
      $region123: #{forward.1} parent=5 // pred_region
        %s2158 = ssub.s32 %s26, 2
        // Predicated region
        $region125: #{forward.1} parent=123 // pred_check
          %p2159 = pneg %p375
        $region126: #{forward.1} parent=123 // pred_check_branch
          %2161 = sbr.rel (%p2159) target = $region128
        $region127: #{forward.1} parent=123 // pred_region
          %p2162 = scmp.lt.s32.totalorder %s32, 1
          %s2163 = scalar_select %p2162, %s32, 1
          %s2164 = smul.addr %s2163, 2
          %s2165 = smul.addr %s2164, 8
          %s2166 = scalar_lea.vmem %s15, %s2165
        $region128: #{forward.1} parent=123 // pred_fallthru
          _
      $region124: #{forward.1} parent=5 // pred_fallthru
        _
    $region6: #{forward.1} parent=1 // loop_footer
      %s30 = sadd.s32 1, %s26
    $region7: #{forward.1} parent=1 // loop_footer_branch
      %25 = sbr.rel target = $region3
    $region8: #{forward.1} parent=1 // loop_exit
      _
    %2167 = vsyncpa [#allocation6], 1
    %s2168 = scalar_lea.sflag [#allocation6], 1
    %2169 = vsyncpa %s2168, 1
    %2170 = vsyncpa [#allocation8], 1
    %2171 = vsyncpa [#allocation11], 1
    %2172 = vsyncpa [#allocation14], 1
    %2173 = vsyncpa [#allocation17], 1

</llo_original>
